<compile_context>
chip_gen: v7x
topology: tpu7x:2x2x1
jax: 0.10.0
libtpu: 0.0.40
codegen_flags: <defaults>
</compile_context>

<pallas_src>
import functools

import jax
import jax.numpy as jnp
from jax.experimental import pallas as pl
from jax.experimental.pallas import tpu as pltpu


def _silu(x):
    return x * jax.nn.sigmoid(x)


def _round_up(x, m):
    return ((x + m - 1) // m) * m


def _pick_tile(total, target):
    """Largest divisor of `total` <= target, preferring multiples of 128
    (lane-dense), then multiples of 8; falls back to the full extent."""
    cap = max(1, min(total, target))
    for mult in (128, 8):
        for d in range(cap, 0, -1):
            if total % d == 0 and d % mult == 0:
                return d
    return total


def _pick_row_tile(H, W, target_pixels=4096):
    """Row tile TH for conv3x3 such that TH | H and (TH*W) % 8 == 0."""
    cap = max(1, min(H, max(1, target_pixels // W)))
    for d in range(cap, 0, -1):
        if H % d == 0 and (d * W) % 8 == 0:
            return d
    return H


@functools.lru_cache(maxsize=1)
def _vmem_limit_bytes():
    """Generation-aware VMEM budget (~80% of capacity), safe fallback."""
    try:
        cap = int(pltpu.get_tpu_info().vmem_capacity_bytes)
        return max(32 * 1024 * 1024, min(int(cap * 0.8), 112 * 1024 * 1024))
    except Exception:
        return 48 * 1024 * 1024  # safe on v5e/v6e (128 MiB) and v7x (64 MiB)


def _cparams(sem):
    return pltpu.CompilerParams(dimension_semantics=sem,
                                vmem_limit_bytes=_vmem_limit_bytes())


# ---------------------------------------------------------------------------
# 1x1 conv (+ folded BN) + SiLU : tiled matmul over pixels (used when the
# input channel count is already MXU-sized; tiny stems take the XLA path).
# ---------------------------------------------------------------------------
def _pw_kernel(x_ref, w_ref, b_ref, o_ref):
    y = jnp.dot(x_ref[...], w_ref[...], preferred_element_type=jnp.float32)
    o_ref[...] = _silu(y + b_ref[...]).astype(o_ref.dtype)


def pointwise_conv(x, w, b, N, HW):
    # x: (N, HW, Cin) bf16, w: (Cin, Cout) bf16, b: (1, Cout) f32
    Cin = x.shape[-1]
    Cout = w.shape[-1]
    TM = _pick_tile(HW, 4096)
    assert HW % TM == 0
    grid = (N, HW // TM)
    return pl.pallas_call(
        _pw_kernel,
        out_shape=jax.ShapeDtypeStruct((N, HW, Cout), jnp.bfloat16),
        grid=grid,
        in_specs=[
            pl.BlockSpec((None, TM, Cin), lambda n, t: (n, t, 0)),
            pl.BlockSpec((Cin, Cout), lambda n, t: (0, 0)),
            pl.BlockSpec((1, Cout), lambda n, t: (0, 0)),
        ],
        out_specs=pl.BlockSpec((None, TM, Cout), lambda n, t: (n, t, 0)),
        compiler_params=_cparams(("parallel", "parallel")),
    )(x, w, b)


# ---------------------------------------------------------------------------
# 3x3 conv (stride 1, pad 1, + folded BN) + SiLU.
# Per row tile: read the TH-row band plus two 1-row halo blocks (clamped
# index maps), zero the boundary halos / column halo in-kernel, then 3 per-dy
# K=3*Cin im2col dots accumulated in f32.  No jnp.pad pass, no full-image
# residency in VMEM, row-tile axis fully parallel.
# ---------------------------------------------------------------------------
def _conv3x3_kernel(cur_ref, top_ref, bot_ref, w_ref, b_ref, o_ref):
    TH, W, Cp = cur_ref.shape
    Cout = o_ref.shape[-1]
    t = pl.program_id(1)
    last = pl.num_programs(1) - 1

    # Row halos: clamped neighbor rows, zeroed at the image boundary.
    top = jnp.where(t == 0, jnp.zeros_like(top_ref[...]), top_ref[...])
    bot = jnp.where(t == last, jnp.zeros_like(bot_ref[...]), bot_ref[...])
    rows = jnp.concatenate([top, cur_ref[...], bot], axis=0)       # (TH+2, W, Cp)
    # Column halo (zero padding).
    zc = jnp.zeros((TH + 2, 1, Cp), rows.dtype)
    xp = jnp.concatenate([zc, rows, zc], axis=1)                   # (TH+2, W+2, Cp)

    acc = jnp.zeros((TH * W, Cout), jnp.float32)
    for dy in range(3):
        patch = jnp.concatenate(
            [xp[dy:dy + TH, dx:dx + W, :] for dx in range(3)], axis=-1)
        patch = patch.reshape(TH * W, 3 * Cp)                      # K = 3*Cp
        acc = acc + jnp.dot(patch, w_ref[dy * 3 * Cp:(dy + 1) * 3 * Cp, :],
                            preferred_element_type=jnp.float32)
    o_ref[...] = _silu(acc + b_ref[...]).astype(o_ref.dtype)


def conv3x3(x_flat, w, b, N, H, W):
    # x_flat: (N, H*W, Cp) bf16, w: (9*Cp, Cout) bf16 (tap-major), b: (1, Cout) f32
    Cp = x_flat.shape[-1]
    Cout = w.shape[-1]
    x4 = x_flat.reshape(N, H, W, Cp)           # free reshape (row-major split)
    TH = _pick_row_tile(H, W)
    assert H % TH == 0
    grid = (N, H // TH)

    cur_map = lambda n, t: (n, t, 0, 0)
    top_map = lambda n, t: (n, jnp.maximum(t * TH - 1, 0), 0, 0)
    bot_map = lambda n, t: (n, jnp.minimum(t * TH + TH, H - 1), 0, 0)

    return pl.pallas_call(
        _conv3x3_kernel,
        out_shape=jax.ShapeDtypeStruct((N, H * W, Cout), jnp.bfloat16),
        grid=grid,
        in_specs=[
            pl.BlockSpec((None, TH, W, Cp), cur_map),
            pl.BlockSpec((None, 1, W, Cp), top_map),
            pl.BlockSpec((None, 1, W, Cp), bot_map),
            pl.BlockSpec((9 * Cp, Cout), lambda n, t: (0, 0)),
            pl.BlockSpec((1, Cout), lambda n, t: (0, 0)),
        ],
        out_specs=pl.BlockSpec((None, TH * W, Cout), lambda n, t: (n, t, 0)),
        compiler_params=_cparams(("parallel", "parallel")),
    )(x4, x4, x4, w, b)


# ---------------------------------------------------------------------------
# cv2: 1x1 conv over concat([x1, y1, y2], channel) + folded BN + SiLU, done as
# 3 dots against Cpm-aligned weight slabs (no concat temp), fused with the SE
# global-average-pool partial-sum accumulation.
# NOTE: the pooled accumulator is only correct because its output block index
# is constant across the LAST grid axis and that axis is "arbitrary"
# (sequential).  Do not mark it parallel without per-core partial sums.
# ---------------------------------------------------------------------------
def _cv2_kernel(x1_ref, y1_ref, y2_ref, w_ref, b_ref, z_ref, p_ref):
    t = pl.program_id(1)
    Cpm = x1_ref.shape[-1]
    y = jnp.dot(x1_ref[...], w_ref[:Cpm, :], preferred_element_type=jnp.float32)
    y = y + jnp.dot(y1_ref[...], w_ref[Cpm:2 * Cpm, :],
                    preferred_element_type=jnp.float32)
    y = y + jnp.dot(y2_ref[...], w_ref[2 * Cpm:, :],
                    preferred_element_type=jnp.float32)
    a = _silu(y + b_ref[...])                            # (TM, Cp2) f32
    z_ref[...] = a.astype(z_ref.dtype)

    @pl.when(t == 0)
    def _():
        p_ref[...] = jnp.zeros_like(p_ref)

    p_ref[...] = p_ref[...] + jnp.sum(a, axis=0, keepdims=True)


def cv2_fused(x1, y1, y2, w, b, N, HW):
    # x1/y1/y2: (N, HW, Cpm) bf16, w: (3*Cpm, Cp2) bf16, b: (1, Cp2) f32
    Cpm = x1.shape[-1]
    Cp2 = w.shape[-1]
    TM = _pick_tile(HW, 2048)
    assert HW % TM == 0
    grid = (N, HW // TM)
    act_spec = pl.BlockSpec((None, TM, Cpm), lambda n, t: (n, t, 0))
    z, pooled = pl.pallas_call(
        _cv2_kernel,
        out_shape=(jax.ShapeDtypeStruct((N, HW, Cp2), jnp.bfloat16),
                   jax.ShapeDtypeStruct((N, 1, Cp2), jnp.float32)),
        grid=grid,
        in_specs=[act_spec, act_spec, act_spec,
                  pl.BlockSpec((3 * Cpm, Cp2), lambda n, t: (0, 0)),
                  pl.BlockSpec((1, Cp2), lambda n, t: (0, 0))],
        out_specs=(pl.BlockSpec((None, TM, Cp2), lambda n, t: (n, t, 0)),
                   pl.BlockSpec((None, 1, Cp2), lambda n, t: (n, 0, 0))),
        compiler_params=_cparams(("parallel", "arbitrary")),
    )(x1, y1, y2, w, b)
    return z, pooled


# ---------------------------------------------------------------------------
# SE channel rescale.  The tiny SE FCs are hoisted to XLA (once per sample);
# this kernel is a pure z*s broadcast multiply that also fuses the :c2 channel
# slice and the NHWC->NCHW transpose (lane-dense (c2, TM) output blocks).
# ---------------------------------------------------------------------------
def _scale_transpose_kernel(z_ref, s_ref, o_ref):
    y = z_ref[...].astype(jnp.float32) * s_ref[...]      # (TM, Cp2) f32
    yt = jnp.transpose(y, (1, 0))                        # (Cp2, TM)
    o_ref[...] = yt[:o_ref.shape[0], :]                  # keep real c2 channels


def _scale_kernel(z_ref, s_ref, o_ref):
    o_ref[...] = (z_ref[...].astype(jnp.float32) * s_ref[...]).astype(o_ref.dtype)


def se_rescale_nchw(z, s, N, HW, c2):
    # z: (N, HW, Cp2) bf16, s: (N, 1, Cp2) f32  ->  (N, c2, HW) f32
    Cp2 = z.shape[-1]
    TM = _pick_tile(HW, 4096)
    assert HW % TM == 0
    grid = (N, HW // TM)
    z_spec = pl.BlockSpec((None, TM, Cp2), lambda n, t: (n, t, 0))
    s_spec = pl.BlockSpec((None, 1, Cp2), lambda n, t: (n, 0, 0))
    if TM % 128 == 0:
        return pl.pallas_call(
            _scale_transpose_kernel,
            out_shape=jax.ShapeDtypeStruct((N, c2, HW), jnp.float32),
            grid=grid,
            in_specs=[z_spec, s_spec],
            out_specs=pl.BlockSpec((None, c2, TM), lambda n, t: (n, 0, t)),
            compiler_params=_cparams(("parallel", "parallel")),
        )(z, s)
    # Fallback for HW without a 128-multiple tile: bf16 NHWC out + XLA tail.
    zb = pl.pallas_call(
        _scale_kernel,
        out_shape=jax.ShapeDtypeStruct((N, HW, Cp2), jnp.bfloat16),
        grid=grid,
        in_specs=[z_spec, s_spec],
        out_specs=pl.BlockSpec((None, TM, Cp2), lambda n, t: (n, t, 0)),
        compiler_params=_cparams(("parallel", "parallel")),
    )(z, s)
    return jnp.transpose(zb[:, :, :c2].astype(jnp.float32), (0, 2, 1))


# ---------------------------------------------------------------------------
# Parameter construction (deterministic, BN folded, channel-padded, bf16).
# Padded weight rows/cols and padded bias entries MUST stay exactly zero so
# padded activation channels remain 0 through every stage.
# ---------------------------------------------------------------------------
def _fold_bn(key, w_shape, cout, eps=1e-3, scale=0.1):
    k_w, k_g, k_b, k_m, k_v = jax.random.split(key, 5)
    w = jax.random.normal(k_w, w_shape, jnp.float32) * scale
    gamma = 1.0 + 0.1 * jax.random.normal(k_g, (cout,), jnp.float32)
    beta = 0.1 * jax.random.normal(k_b, (cout,), jnp.float32)
    mean = 0.1 * jax.random.normal(k_m, (cout,), jnp.float32)
    var = 0.5 + jax.random.uniform(k_v, (cout,), jnp.float32)
    s = gamma / jnp.sqrt(var + eps)
    return w * s, beta - mean * s


def make_elan_params(key, c1, c2, n=1, e=0.5):
    c_ = int(c2 * e)
    n_int = max(1, int(n))
    reduced = max(c2 // 16, 8)
    Cp1 = _round_up(c1, 128)
    Cpm = _round_up(c_, 128)
    Cp2 = _round_up(c2, 128)
    Rp = _round_up(reduced, 128)

    keys = jax.random.split(key, 3 + 2 * n_int)
    params = {}

    # cv1: 1x1 (c1 -> c_), padded to (Cp1, Cpm)
    w, b = _fold_bn(keys[0], (c1, c_), c_)
    params["cv1_w"] = (jnp.zeros((Cp1, Cpm), jnp.float32)
                       .at[:c1, :c_].set(w).astype(jnp.bfloat16))
    params["cv1_b"] = jnp.zeros((1, Cpm), jnp.float32).at[0, :c_].set(b)

    # m1 / m2: 3x3 (c_ -> c_), tap-major (dy*3+dx), padded to (9*Cpm, Cpm)
    for name, koff in (("m1", 1), ("m2", 1 + n_int)):
        for i in range(n_int):
            w, b = _fold_bn(keys[koff + i], (9, c_, c_), c_)
            wp = jnp.zeros((9, Cpm, Cpm), jnp.float32).at[:, :c_, :c_].set(w)
            params[f"{name}_{i}_w"] = wp.reshape(9 * Cpm, Cpm).astype(jnp.bfloat16)
            params[f"{name}_{i}_b"] = (jnp.zeros((1, Cpm), jnp.float32)
                                       .at[0, :c_].set(b))

    # cv2: 1x1 over cat([x1, y1, y2]); three weight slabs at Cpm-aligned rows.
    # (Matches the module's only runnable config n_int=1, where cv2 takes 3*c_.)
    w, b = _fold_bn(keys[1 + 2 * n_int], (3 * c_, c2), c2)
    wp = jnp.zeros((3, Cpm, Cp2), jnp.float32)
    for s_ in range(3):
        wp = wp.at[s_, :c_, :c2].set(w[s_ * c_:(s_ + 1) * c_])
    params["cv2_w"] = wp.reshape(3 * Cpm, Cp2).astype(jnp.bfloat16)
    params["cv2_b"] = jnp.zeros((1, Cp2), jnp.float32).at[0, :c2].set(b)

    # SE (no BN, no bias), kept in f32 (tiny).
    k1, k2 = jax.random.split(keys[2 + 2 * n_int])
    w1 = jax.random.normal(k1, (c2, reduced), jnp.float32) * 0.1
    w2 = jax.random.normal(k2, (reduced, c2), jnp.float32) * 0.1
    params["se_w1"] = jnp.zeros((Cp2, Rp), jnp.float32).at[:c2, :reduced].set(w1)
    params["se_w2"] = jnp.zeros((Rp, Cp2), jnp.float32).at[:reduced, :c2].set(w2)

    cfg = {"n_int": n_int, "c1": c1, "c2": c2, "c_": c_}
    return params, cfg


# ---------------------------------------------------------------------------
# ELAN forward (input/output in NCHW, matching the PyTorch module).
# ---------------------------------------------------------------------------
def elan_forward(x_nchw, params, cfg):
    n_int = cfg["n_int"]
    c2 = cfg["c2"]
    N, c1, H, W = x_nchw.shape
    HW = H * W
    Cp1 = params["cv1_w"].shape[0]

    xf = jnp.transpose(x_nchw, (0, 2, 3, 1)).reshape(N, HW, c1)

    if c1 < 64:
        # Stem special-case: tiny c1 -> plain XLA matmul (avoids padding the
        # input channel dim to 128 in HBM and 32x dead MXU work).
        y = jnp.einsum("npc,ck->npk", xf.astype(jnp.bfloat16),
                       params["cv1_w"][:c1],
                       preferred_element_type=jnp.float32)
        x1 = _silu(y + params["cv1_b"]).astype(jnp.bfloat16)
    else:
        xp_ = jnp.pad(xf, ((0, 0), (0, 0), (0, Cp1 - c1))).astype(jnp.bfloat16)
        x1 = pointwise_conv(xp_, params["cv1_w"], params["cv1_b"], N, HW)

    y = x1
    for i in range(n_int):                                             # m1
        y = conv3x3(y, params[f"m1_{i}_w"], params[f"m1_{i}_b"], N, H, W)
    y1 = y
    for i in range(n_int):                                             # m2
        y = conv3x3(y, params[f"m2_{i}_w"], params[f"m2_{i}_b"], N, H, W)
    y2 = y

    # cv2(cat) fused with SE pooled-sum accumulation.
    z, pooled = cv2_fused(x1, y1, y2, params["cv2_w"], params["cv2_b"], N, HW)

    # SE FCs hoisted off the per-tile critical path: tiny (N,1,C) XLA matmuls.
    mean = pooled * (1.0 / HW)                                   # (N,1,Cp2) f32
    h = _silu(jnp.matmul(mean, params["se_w1"]))
    s = jax.nn.sigmoid(jnp.matmul(h, params["se_w2"]))           # (N,1,Cp2) f32

    out = se_rescale_nchw(z, s, N, HW, c2)                       # (N,c2,HW) f32
    return out.reshape(N, c2, H, W)


# ---------------------------------------------------------------------------
# Pure-JAX reference (same bf16 storage points / f32 accumulation).
# bf16 activations => expect ~1e-3-level relative deviation vs the kernels;
# the in-script tolerance of 2e-2 is intentionally generous.
# ---------------------------------------------------------------------------
def elan_reference(x_nchw, params, cfg):
    n_int = cfg["n_int"]
    c2 = cfg["c2"]
    N, c1, H, W = x_nchw.shape
    Cpm = params["cv1_w"].shape[1]

    x = jnp.transpose(x_nchw, (0, 2, 3, 1)).astype(jnp.bfloat16)      # NHWC
    y = jnp.einsum("nhwc,ck->nhwk", x, params["cv1_w"][:c1],
                   preferred_element_type=jnp.float32)
    x1 = _silu(y + params["cv1_b"][0]).astype(jnp.bfloat16)

    def conv3_ref(xin, wkey, bkey):
        wr = params[wkey].reshape(3, 3, Cpm, Cpm)
        yy = jax.lax.conv_general_dilated(
            xin, wr, (1, 1), "SAME",
            dimension_numbers=("NHWC", "HWIO", "NHWC"),
            preferred_element_type=jnp.float32)
        return _silu(yy + params[bkey][0]).astype(jnp.bfloat16)

    yv = x1
    for i in range(n_int):
        yv = conv3_ref(yv, f"m1_{i}_w", f"m1_{i}_b")
    y1 = yv
    for i in range(n_int):
        yv = conv3_ref(yv, f"m2_{i}_w", f"m2_{i}_b")
    y2 = yv

    xc = jnp.concatenate([x1, y1, y2], axis=-1)
    zz = jnp.einsum("nhwc,ck->nhwk", xc, params["cv2_w"],
                    preferred_element_type=jnp.float32)
    a = _silu(zz + params["cv2_b"][0])                                 # f32
    z = a.astype(jnp.bfloat16)

    mean = jnp.mean(a, axis=(1, 2))                                    # (N,Cp2)
    h = _silu(mean @ params["se_w1"])
    s = jax.nn.sigmoid(h @ params["se_w2"])                            # (N,Cp2)

    out = z.astype(jnp.float32) * s[:, None, None, :]
    out = out[..., :c2]
    return jnp.transpose(out, (0, 3, 1, 2))


if __name__ == "__main__":
    # Small deterministic example: batch=2, c1=4, 16x16 spatial, c2=32, e=0.5.
    key = jax.random.PRNGKey(0)
    k_x, k_p = jax.random.split(key)
    N, C1, H, W = 2, 4, 16, 16
    C2 = 32
    x = jax.random.normal(k_x, (N, C1, H, W), jnp.float32)

    params, cfg = make_elan_params(k_p, C1, C2, n=1, e=0.5)

    fwd = jax.jit(functools.partial(elan_forward, cfg=cfg))
    out = fwd(x, params)
    jax.block_until_ready(out)

    assert out.shape == (N, C2, H, W), out.shape
    assert bool(jnp.isfinite(out).all())

    ref = elan_reference(x, params, cfg)
    assert bool(jnp.allclose(out, ref, rtol=2e-2, atol=2e-2)), \
        float(jnp.max(jnp.abs(out - ref)))
    print("KERNEL_OK")
</pallas_src>

<mosaic_0001>
module attributes {stable_mosaic.version = 11 : i64} {
  func.func @_conv3x3_kernel(%arg0: i32, %arg1: i32, %arg2: memref<1x16x16x128xbf16, #tpu.memory_space<vmem>>, %arg3: memref<1x1x16x128xbf16, #tpu.memory_space<vmem>>, %arg4: memref<1x1x16x128xbf16, #tpu.memory_space<vmem>>, %arg5: memref<1152x128xbf16, #tpu.memory_space<vmem>>, %arg6: memref<1x128xf32, #tpu.memory_space<vmem>>, %arg7: memref<1x256x128xbf16, #tpu.memory_space<vmem>>) attributes {dimension_semantics = [#tpu.dimension_semantics<parallel>, #tpu.dimension_semantics<parallel>], iteration_bounds = array<i64: 2, 1>, scalar_prefetch = 0 : i64, scratch_operands = 0 : i64, tpu.core_type = #tpu.core_type<tc>, window_params = [{transform_indices = @transform_0, window_bounds = array<i64: 1, 16, 16, 128>}, {transform_indices = @transform_1, window_bounds = array<i64: 1, 1, 16, 128>}, {transform_indices = @transform_2, window_bounds = array<i64: 1, 1, 16, 128>}, {pipeline_mode = #tpu.pipeline_mode<synchronous>, transform_indices = @transform_3, window_bounds = array<i64: 1152, 128>}, {pipeline_mode = #tpu.pipeline_mode<synchronous>, transform_indices = @transform_4, window_bounds = array<i64: 1, 128>}, {transform_indices = @transform_5, window_bounds = array<i64: 1, 256, 128>}]} {
    %c0_i32 = arith.constant 0 : i32
    %0 = arith.cmpi eq, %arg1, %c0_i32 : i32
    %cst = arith.constant 0.000000e+00 : bf16
    %1 = vector.broadcast %cst : bf16 to vector<1x16x128xbf16>
    %c0 = arith.constant 0 : index
    %c0_0 = arith.constant 0 : index
    %c0_1 = arith.constant 0 : index
    %c0_2 = arith.constant 0 : index
    %2 = vector.load %arg3[%c0, %c0_0, %c0_1, %c0_2] : memref<1x1x16x128xbf16, #tpu.memory_space<vmem>>, vector<1x1x16x128xbf16>
    %3 = vector.shape_cast %2 : vector<1x1x16x128xbf16> to vector<1x16x128xbf16>
    %4 = arith.select %0, %1, %3 : vector<1x16x128xbf16>
    %c0_i32_3 = arith.constant 0 : i32
    %5 = arith.cmpi eq, %arg1, %c0_i32_3 : i32
    %cst_4 = arith.constant 0.000000e+00 : bf16
    %6 = vector.broadcast %cst_4 : bf16 to vector<1x16x128xbf16>
    %c0_5 = arith.constant 0 : index
    %c0_6 = arith.constant 0 : index
    %c0_7 = arith.constant 0 : index
    %c0_8 = arith.constant 0 : index
    %7 = vector.load %arg4[%c0_5, %c0_6, %c0_7, %c0_8] : memref<1x1x16x128xbf16, #tpu.memory_space<vmem>>, vector<1x1x16x128xbf16>
    %8 = vector.shape_cast %7 : vector<1x1x16x128xbf16> to vector<1x16x128xbf16>
    %9 = arith.select %5, %6, %8 : vector<1x16x128xbf16>
    %c0_9 = arith.constant 0 : index
    %c0_10 = arith.constant 0 : index
    %c0_11 = arith.constant 0 : index
    %c0_12 = arith.constant 0 : index
    %10 = vector.load %arg2[%c0_9, %c0_10, %c0_11, %c0_12] : memref<1x16x16x128xbf16, #tpu.memory_space<vmem>>, vector<1x16x16x128xbf16>
    %11 = vector.shape_cast %10 : vector<1x16x16x128xbf16> to vector<16x16x128xbf16>
    %12 = tpu.concatenate %4, %11, %9 in 0 : vector<1x16x128xbf16>, vector<16x16x128xbf16>, vector<1x16x128xbf16> -> vector<18x16x128xbf16>
    %cst_13 = arith.constant 0.000000e+00 : bf16
    %13 = vector.broadcast %cst_13 : bf16 to vector<18x1x128xbf16>
    %14 = tpu.concatenate %13, %12, %13 in 1 : vector<18x1x128xbf16>, vector<18x16x128xbf16>, vector<18x1x128xbf16> -> vector<18x18x128xbf16>
    %cst_14 = arith.constant 0.000000e+00 : f32
    %15 = vector.broadcast %cst_14 : f32 to vector<256x128xf32>
    %16 = vector.extract_strided_slice %14 {offsets = [0, 0, 0], sizes = [16, 16, 128], strides = [1, 1, 1]} : vector<18x18x128xbf16> to vector<16x16x128xbf16>
    %17 = vector.extract_strided_slice %14 {offsets = [0, 1, 0], sizes = [16, 16, 128], strides = [1, 1, 1]} : vector<18x18x128xbf16> to vector<16x16x128xbf16>
    %18 = vector.extract_strided_slice %14 {offsets = [0, 2, 0], sizes = [16, 16, 128], strides = [1, 1, 1]} : vector<18x18x128xbf16> to vector<16x16x128xbf16>
    %19 = tpu.concatenate %16, %17, %18 in 2 : vector<16x16x128xbf16>, vector<16x16x128xbf16>, vector<16x16x128xbf16> -> vector<16x16x384xbf16>
    %20 = vector.shape_cast %19 : vector<16x16x384xbf16> to vector<256x384xbf16>
    %c0_15 = arith.constant 0 : index
    %c0_16 = arith.constant 0 : index
    %21 = vector.load %arg5[%c0_15, %c0_16] : memref<1152x128xbf16, #tpu.memory_space<vmem>>, vector<384x128xbf16>
    %cst_17 = arith.constant dense<0.000000e+00> : vector<256x128xf32>
    %22 = tpu.matmul %20, %21, %cst_17 {dimension_numbers = #tpu.dot_dimension_numbers<[1], [0], [0], [1], [0, 0, 1, 1], [], []>} : vector<256x384xbf16>, vector<384x128xbf16>, vector<256x128xf32> -> vector<256x128xf32>
    %23 = arith.addf %15, %22 : vector<256x128xf32>
    %24 = vector.extract_strided_slice %14 {offsets = [1, 0, 0], sizes = [16, 16, 128], strides = [1, 1, 1]} : vector<18x18x128xbf16> to vector<16x16x128xbf16>
    %25 = vector.extract_strided_slice %14 {offsets = [1, 1, 0], sizes = [16, 16, 128], strides = [1, 1, 1]} : vector<18x18x128xbf16> to vector<16x16x128xbf16>
    %26 = vector.extract_strided_slice %14 {offsets = [1, 2, 0], sizes = [16, 16, 128], strides = [1, 1, 1]} : vector<18x18x128xbf16> to vector<16x16x128xbf16>
    %27 = tpu.concatenate %24, %25, %26 in 2 : vector<16x16x128xbf16>, vector<16x16x128xbf16>, vector<16x16x128xbf16> -> vector<16x16x384xbf16>
    %28 = vector.shape_cast %27 : vector<16x16x384xbf16> to vector<256x384xbf16>
    %c384 = arith.constant 384 : index
    %c0_18 = arith.constant 0 : index
    %29 = vector.load %arg5[%c384, %c0_18] : memref<1152x128xbf16, #tpu.memory_space<vmem>>, vector<384x128xbf16>
    %cst_19 = arith.constant dense<0.000000e+00> : vector<256x128xf32>
    %30 = tpu.matmul %28, %29, %cst_19 {dimension_numbers = #tpu.dot_dimension_numbers<[1], [0], [0], [1], [0, 0, 1, 1], [], []>} : vector<256x384xbf16>, vector<384x128xbf16>, vector<256x128xf32> -> vector<256x128xf32>
    %31 = arith.addf %23, %30 : vector<256x128xf32>
    %32 = vector.extract_strided_slice %14 {offsets = [2, 0, 0], sizes = [16, 16, 128], strides = [1, 1, 1]} : vector<18x18x128xbf16> to vector<16x16x128xbf16>
    %33 = vector.extract_strided_slice %14 {offsets = [2, 1, 0], sizes = [16, 16, 128], strides = [1, 1, 1]} : vector<18x18x128xbf16> to vector<16x16x128xbf16>
    %34 = vector.extract_strided_slice %14 {offsets = [2, 2, 0], sizes = [16, 16, 128], strides = [1, 1, 1]} : vector<18x18x128xbf16> to vector<16x16x128xbf16>
    %35 = tpu.concatenate %32, %33, %34 in 2 : vector<16x16x128xbf16>, vector<16x16x128xbf16>, vector<16x16x128xbf16> -> vector<16x16x384xbf16>
    %36 = vector.shape_cast %35 : vector<16x16x384xbf16> to vector<256x384xbf16>
    %c768 = arith.constant 768 : index
    %c0_20 = arith.constant 0 : index
    %37 = vector.load %arg5[%c768, %c0_20] : memref<1152x128xbf16, #tpu.memory_space<vmem>>, vector<384x128xbf16>
    %cst_21 = arith.constant dense<0.000000e+00> : vector<256x128xf32>
    %38 = tpu.matmul %36, %37, %cst_21 {dimension_numbers = #tpu.dot_dimension_numbers<[1], [0], [0], [1], [0, 0, 1, 1], [], []>} : vector<256x384xbf16>, vector<384x128xbf16>, vector<256x128xf32> -> vector<256x128xf32>
    %39 = arith.addf %31, %38 : vector<256x128xf32>
    %c0_22 = arith.constant 0 : index
    %c0_23 = arith.constant 0 : index
    %40 = vector.load %arg6[%c0_22, %c0_23] : memref<1x128xf32, #tpu.memory_space<vmem>>, vector<1x128xf32>
    %41 = vector.broadcast %40 : vector<1x128xf32> to vector<256x128xf32>
    %42 = arith.addf %39, %41 : vector<256x128xf32>
    %43 = arith.negf %42 : vector<256x128xf32>
    %44 = math.exp %43 : vector<256x128xf32>
    %cst_24 = arith.constant 1.000000e+00 : f32
    %45 = vector.broadcast %cst_24 : f32 to vector<256x128xf32>
    %46 = arith.addf %45, %44 : vector<256x128xf32>
    %47 = arith.divf %45, %46 : vector<256x128xf32>
    %48 = arith.mulf %42, %47 : vector<256x128xf32>
    %49 = arith.truncf %48 : vector<256x128xf32> to vector<256x128xbf16>
    %c0_25 = arith.constant 0 : index
    %c0_26 = arith.constant 0 : index
    %c0_27 = arith.constant 0 : index
    %50 = vector.load %arg7[%c0_25, %c0_26, %c0_27] : memref<1x256x128xbf16, #tpu.memory_space<vmem>>, vector<1x256x128xbf16>
    %51 = vector.shape_cast %50 : vector<1x256x128xbf16> to vector<256x128xbf16>
    %52 = vector.shape_cast %49 : vector<256x128xbf16> to vector<1x256x128xbf16>
    tpu.vector_store %arg7[%c0_25, %c0_26, %c0_27], %52 {strides = array<i32>} : memref<1x256x128xbf16, #tpu.memory_space<vmem>>, vector<1x256x128xbf16>,
    return
  }
  func.func @transform_0(%arg0: i32, %arg1: i32) -> (i32, i32, i32, i32) {
    %c0_i32 = arith.constant 0 : i32
    %c0_i32_0 = arith.constant 0 : i32
    %c0_i32_1 = arith.constant 0 : i32
    return %arg0, %arg1, %c0_i32, %c0_i32_0 : i32, i32, i32, i32
  }
  func.func @transform_1(%arg0: i32, %arg1: i32) -> (i32, i32, i32, i32) {
    %c16_i32 = arith.constant 16 : i32
    %0 = arith.muli %arg1, %c16_i32 : i32
    %c1_i32 = arith.constant 1 : i32
    %1 = arith.subi %0, %c1_i32 : i32
    %c0_i32 = arith.constant 0 : i32
    %2 = arith.maxsi %1, %c0_i32 : i32
    %c0_i32_0 = arith.constant 0 : i32
    %c0_i32_1 = arith.constant 0 : i32
    %c0_i32_2 = arith.constant 0 : i32
    return %arg0, %2, %c0_i32_0, %c0_i32_1 : i32, i32, i32, i32
  }
  func.func @transform_2(%arg0: i32, %arg1: i32) -> (i32, i32, i32, i32) {
    %c16_i32 = arith.constant 16 : i32
    %0 = arith.muli %arg1, %c16_i32 : i32
    %c16_i32_0 = arith.constant 16 : i32
    %1 = arith.addi %0, %c16_i32_0 : i32
    %c15_i32 = arith.constant 15 : i32
    %2 = arith.minsi %1, %c15_i32 : i32
    %c0_i32 = arith.constant 0 : i32
    %c0_i32_1 = arith.constant 0 : i32
    %c0_i32_2 = arith.constant 0 : i32
    return %arg0, %2, %c0_i32, %c0_i32_1 : i32, i32, i32, i32
  }
  func.func @transform_3(%arg0: i32, %arg1: i32) -> (i32, i32) {
    %c0_i32 = arith.constant 0 : i32
    %c0_i32_0 = arith.constant 0 : i32
    %c0_i32_1 = arith.constant 0 : i32
    return %c0_i32, %c0_i32_0 : i32, i32
  }
  func.func @transform_4(%arg0: i32, %arg1: i32) -> (i32, i32) {
    %c0_i32 = arith.constant 0 : i32
    %c0_i32_0 = arith.constant 0 : i32
    %c0_i32_1 = arith.constant 0 : i32
    return %c0_i32, %c0_i32_0 : i32, i32
  }
  func.func @transform_5(%arg0: i32, %arg1: i32) -> (i32, i32, i32) {
    %c0_i32 = arith.constant 0 : i32
    %c0_i32_0 = arith.constant 0 : i32
    return %arg0, %arg1, %c0_i32 : i32, i32, i32
  }
}

module attributes {stable_mosaic.version = 11 : i64} {
  func.func @_cv2_kernel(%arg0: i32, %arg1: i32, %arg2: memref<1x256x128xbf16, #tpu.memory_space<vmem>>, %arg3: memref<1x256x128xbf16, #tpu.memory_space<vmem>>, %arg4: memref<1x256x128xbf16, #tpu.memory_space<vmem>>, %arg5: memref<384x128xbf16, #tpu.memory_space<vmem>>, %arg6: memref<1x128xf32, #tpu.memory_space<vmem>>, %arg7: memref<1x256x128xbf16, #tpu.memory_space<vmem>>, %arg8: memref<1x1x128xf32, #tpu.memory_space<vmem>>) attributes {dimension_semantics = [#tpu.dimension_semantics<parallel>, #tpu.dimension_semantics<arbitrary>], iteration_bounds = array<i64: 2, 1>, scalar_prefetch = 0 : i64, scratch_operands = 0 : i64, tpu.core_type = #tpu.core_type<tc>, window_params = [{transform_indices = @transform_0, window_bounds = array<i64: 1, 256, 128>}, {transform_indices = @transform_1, window_bounds = array<i64: 1, 256, 128>}, {transform_indices = @transform_2, window_bounds = array<i64: 1, 256, 128>}, {pipeline_mode = #tpu.pipeline_mode<synchronous>, transform_indices = @transform_3, window_bounds = array<i64: 384, 128>}, {pipeline_mode = #tpu.pipeline_mode<synchronous>, transform_indices = @transform_4, window_bounds = array<i64: 1, 128>}, {transform_indices = @transform_5, window_bounds = array<i64: 1, 256, 128>}, {transform_indices = @transform_6, window_bounds = array<i64: 1, 1, 128>}]} {
    %c0 = arith.constant 0 : index
    %c0_0 = arith.constant 0 : index
    %c0_1 = arith.constant 0 : index
    %0 = vector.load %arg2[%c0, %c0_0, %c0_1] : memref<1x256x128xbf16, #tpu.memory_space<vmem>>, vector<1x256x128xbf16>
    %1 = vector.shape_cast %0 : vector<1x256x128xbf16> to vector<256x128xbf16>
    %c0_2 = arith.constant 0 : index
    %c0_3 = arith.constant 0 : index
    %2 = vector.load %arg5[%c0_2, %c0_3] : memref<384x128xbf16, #tpu.memory_space<vmem>>, vector<128x128xbf16>
    %cst = arith.constant dense<0.000000e+00> : vector<256x128xf32>
    %3 = tpu.matmul %1, %2, %cst {dimension_numbers = #tpu.dot_dimension_numbers<[1], [0], [0], [1], [0, 0, 1, 1], [], []>} : vector<256x128xbf16>, vector<128x128xbf16>, vector<256x128xf32> -> vector<256x128xf32>
    %c0_4 = arith.constant 0 : index
    %c0_5 = arith.constant 0 : index
    %c0_6 = arith.constant 0 : index
    %4 = vector.load %arg3[%c0_4, %c0_5, %c0_6] : memref<1x256x128xbf16, #tpu.memory_space<vmem>>, vector<1x256x128xbf16>
    %5 = vector.shape_cast %4 : vector<1x256x128xbf16> to vector<256x128xbf16>
    %c128 = arith.constant 128 : index
    %c0_7 = arith.constant 0 : index
    %6 = vector.load %arg5[%c128, %c0_7] : memref<384x128xbf16, #tpu.memory_space<vmem>>, vector<128x128xbf16>
    %cst_8 = arith.constant dense<0.000000e+00> : vector<256x128xf32>
    %7 = tpu.matmul %5, %6, %cst_8 {dimension_numbers = #tpu.dot_dimension_numbers<[1], [0], [0], [1], [0, 0, 1, 1], [], []>} : vector<256x128xbf16>, vector<128x128xbf16>, vector<256x128xf32> -> vector<256x128xf32>
    %8 = arith.addf %3, %7 : vector<256x128xf32>
    %c0_9 = arith.constant 0 : index
    %c0_10 = arith.constant 0 : index
    %c0_11 = arith.constant 0 : index
    %9 = vector.load %arg4[%c0_9, %c0_10, %c0_11] : memref<1x256x128xbf16, #tpu.memory_space<vmem>>, vector<1x256x128xbf16>
    %10 = vector.shape_cast %9 : vector<1x256x128xbf16> to vector<256x128xbf16>
    %c256 = arith.constant 256 : index
    %c0_12 = arith.constant 0 : index
    %11 = vector.load %arg5[%c256, %c0_12] : memref<384x128xbf16, #tpu.memory_space<vmem>>, vector<128x128xbf16>
    %cst_13 = arith.constant dense<0.000000e+00> : vector<256x128xf32>
    %12 = tpu.matmul %10, %11, %cst_13 {dimension_numbers = #tpu.dot_dimension_numbers<[1], [0], [0], [1], [0, 0, 1, 1], [], []>} : vector<256x128xbf16>, vector<128x128xbf16>, vector<256x128xf32> -> vector<256x128xf32>
    %13 = arith.addf %8, %12 : vector<256x128xf32>
    %c0_14 = arith.constant 0 : index
    %c0_15 = arith.constant 0 : index
    %14 = vector.load %arg6[%c0_14, %c0_15] : memref<1x128xf32, #tpu.memory_space<vmem>>, vector<1x128xf32>
    %15 = vector.broadcast %14 : vector<1x128xf32> to vector<256x128xf32>
    %16 = arith.addf %13, %15 : vector<256x128xf32>
    %17 = arith.negf %16 : vector<256x128xf32>
    %18 = math.exp %17 : vector<256x128xf32>
    %cst_16 = arith.constant 1.000000e+00 : f32
    %19 = vector.broadcast %cst_16 : f32 to vector<256x128xf32>
    %20 = arith.addf %19, %18 : vector<256x128xf32>
    %21 = arith.divf %19, %20 : vector<256x128xf32>
    %22 = arith.mulf %16, %21 : vector<256x128xf32>
    %23 = arith.truncf %22 : vector<256x128xf32> to vector<256x128xbf16>
    %c0_17 = arith.constant 0 : index
    %c0_18 = arith.constant 0 : index
    %c0_19 = arith.constant 0 : index
    %24 = vector.load %arg7[%c0_17, %c0_18, %c0_19] : memref<1x256x128xbf16, #tpu.memory_space<vmem>>, vector<1x256x128xbf16>
    %25 = vector.shape_cast %24 : vector<1x256x128xbf16> to vector<256x128xbf16>
    %26 = vector.shape_cast %23 : vector<256x128xbf16> to vector<1x256x128xbf16>
    tpu.vector_store %arg7[%c0_17, %c0_18, %c0_19], %26 {strides = array<i32>} : memref<1x256x128xbf16, #tpu.memory_space<vmem>>, vector<1x256x128xbf16>,
    %c0_i32 = arith.constant 0 : i32
    %27 = arith.cmpi eq, %arg1, %c0_i32 : i32
    %28 = arith.extui %27 : i1 to i32
    %c0_i32_20 = arith.constant 0 : i32
    %29 = arith.cmpi ne, %28, %c0_i32_20 : i32
    scf.if %29 {
      %cst_28 = arith.constant 0.000000e+00 : f32
      %38 = vector.broadcast %cst_28 : f32 to vector<1x128xf32>
      %c0_29 = arith.constant 0 : index
      %c0_30 = arith.constant 0 : index
      %c0_31 = arith.constant 0 : index
      %39 = vector.load %arg8[%c0_29, %c0_30, %c0_31] : memref<1x1x128xf32, #tpu.memory_space<vmem>>, vector<1x1x128xf32>
      %40 = vector.shape_cast %39 : vector<1x1x128xf32> to vector<1x128xf32>
      %41 = vector.shape_cast %38 : vector<1x128xf32> to vector<1x1x128xf32>
      tpu.vector_store %arg8[%c0_29, %c0_30, %c0_31], %41 {strides = array<i32>} : memref<1x1x128xf32, #tpu.memory_space<vmem>>, vector<1x1x128xf32>,
    } else {
    }
    %c0_21 = arith.constant 0 : index
    %c0_22 = arith.constant 0 : index
    %c0_23 = arith.constant 0 : index
    %30 = vector.load %arg8[%c0_21, %c0_22, %c0_23] : memref<1x1x128xf32, #tpu.memory_space<vmem>>, vector<1x1x128xf32>
    %31 = vector.shape_cast %30 : vector<1x1x128xf32> to vector<1x128xf32>
    %cst_24 = arith.constant dense<0.000000e+00> : vector<128xf32>
    %32 = vector.multi_reduction <add>, %22, %cst_24 [0] : vector<256x128xf32> to vector<128xf32>
    %33 = vector.shape_cast %32 : vector<128xf32> to vector<1x128xf32>
    %34 = arith.addf %31, %33 : vector<1x128xf32>
    %c0_25 = arith.constant 0 : index
    %c0_26 = arith.constant 0 : index
    %c0_27 = arith.constant 0 : index
    %35 = vector.load %arg8[%c0_25, %c0_26, %c0_27] : memref<1x1x128xf32, #tpu.memory_space<vmem>>, vector<1x1x128xf32>
    %36 = vector.shape_cast %35 : vector<1x1x128xf32> to vector<1x128xf32>
    %37 = vector.shape_cast %34 : vector<1x128xf32> to vector<1x1x128xf32>
    tpu.vector_store %arg8[%c0_25, %c0_26, %c0_27], %37 {strides = array<i32>} : memref<1x1x128xf32, #tpu.memory_space<vmem>>, vector<1x1x128xf32>,
    return
  }
  func.func @transform_0(%arg0: i32, %arg1: i32) -> (i32, i32, i32) {
    %c0_i32 = arith.constant 0 : i32
    %c0_i32_0 = arith.constant 0 : i32
    return %arg0, %arg1, %c0_i32 : i32, i32, i32
  }
  func.func @transform_1(%arg0: i32, %arg1: i32) -> (i32, i32, i32) {
    %c0_i32 = arith.constant 0 : i32
    %c0_i32_0 = arith.constant 0 : i32
    return %arg0, %arg1, %c0_i32 : i32, i32, i32
  }
  func.func @transform_2(%arg0: i32, %arg1: i32) -> (i32, i32, i32) {
    %c0_i32 = arith.constant 0 : i32
    %c0_i32_0 = arith.constant 0 : i32
    return %arg0, %arg1, %c0_i32 : i32, i32, i32
  }
  func.func @transform_3(%arg0: i32, %arg1: i32) -> (i32, i32) {
    %c0_i32 = arith.constant 0 : i32
    %c0_i32_0 = arith.constant 0 : i32
    %c0_i32_1 = arith.constant 0 : i32
    return %c0_i32, %c0_i32_0 : i32, i32
  }
  func.func @transform_4(%arg0: i32, %arg1: i32) -> (i32, i32) {
    %c0_i32 = arith.constant 0 : i32
    %c0_i32_0 = arith.constant 0 : i32
    %c0_i32_1 = arith.constant 0 : i32
    return %c0_i32, %c0_i32_0 : i32, i32
  }
  func.func @transform_5(%arg0: i32, %arg1: i32) -> (i32, i32, i32) {
    %c0_i32 = arith.constant 0 : i32
    %c0_i32_0 = arith.constant 0 : i32
    return %arg0, %arg1, %c0_i32 : i32, i32, i32
  }
  func.func @transform_6(%arg0: i32, %arg1: i32) -> (i32, i32, i32) {
    %c0_i32 = arith.constant 0 : i32
    %c0_i32_0 = arith.constant 0 : i32
    %c0_i32_1 = arith.constant 0 : i32
    return %arg0, %c0_i32, %c0_i32_0 : i32, i32, i32
  }
}

module attributes {stable_mosaic.version = 11 : i64} {
  func.func @_scale_transpose_kernel(%arg0: i32, %arg1: i32, %arg2: memref<1x256x128xbf16, #tpu.memory_space<vmem>>, %arg3: memref<1x1x128xf32, #tpu.memory_space<vmem>>, %arg4: memref<1x32x256xf32, #tpu.memory_space<vmem>>) attributes {dimension_semantics = [#tpu.dimension_semantics<parallel>, #tpu.dimension_semantics<parallel>], iteration_bounds = array<i64: 2, 1>, scalar_prefetch = 0 : i64, scratch_operands = 0 : i64, tpu.core_type = #tpu.core_type<tc>, window_params = [{transform_indices = @transform_0, window_bounds = array<i64: 1, 256, 128>}, {transform_indices = @transform_1, window_bounds = array<i64: 1, 1, 128>}, {transform_indices = @transform_2, window_bounds = array<i64: 1, 32, 256>}]} {
    %c0 = arith.constant 0 : index
    %c0_0 = arith.constant 0 : index
    %c0_1 = arith.constant 0 : index
    %0 = vector.load %arg2[%c0, %c0_0, %c0_1] : memref<1x256x128xbf16, #tpu.memory_space<vmem>>, vector<1x256x128xbf16>
    %1 = vector.shape_cast %0 : vector<1x256x128xbf16> to vector<256x128xbf16>
    %2 = arith.extf %1 : vector<256x128xbf16> to vector<256x128xf32>
    %c0_2 = arith.constant 0 : index
    %c0_3 = arith.constant 0 : index
    %c0_4 = arith.constant 0 : index
    %3 = vector.load %arg3[%c0_2, %c0_3, %c0_4] : memref<1x1x128xf32, #tpu.memory_space<vmem>>, vector<1x1x128xf32>
    %4 = vector.shape_cast %3 : vector<1x1x128xf32> to vector<1x128xf32>
    %5 = vector.broadcast %4 : vector<1x128xf32> to vector<256x128xf32>
    %6 = arith.mulf %2, %5 : vector<256x128xf32>
    %7 = tpu.transpose %6, [1, 0] : vector<256x128xf32> -> vector<128x256xf32>
    %8 = vector.extract_strided_slice %7 {offsets = [0, 0], sizes = [32, 256], strides = [1, 1]} : vector<128x256xf32> to vector<32x256xf32>
    %c0_5 = arith.constant 0 : index
    %c0_6 = arith.constant 0 : index
    %c0_7 = arith.constant 0 : index
    %9 = vector.load %arg4[%c0_5, %c0_6, %c0_7] : memref<1x32x256xf32, #tpu.memory_space<vmem>>, vector<1x32x256xf32>
    %10 = vector.shape_cast %9 : vector<1x32x256xf32> to vector<32x256xf32>
    %11 = vector.shape_cast %8 : vector<32x256xf32> to vector<1x32x256xf32>
    tpu.vector_store %arg4[%c0_5, %c0_6, %c0_7], %11 {strides = array<i32>} : memref<1x32x256xf32, #tpu.memory_space<vmem>>, vector<1x32x256xf32>,
    return
  }
  func.func @transform_0(%arg0: i32, %arg1: i32) -> (i32, i32, i32) {
    %c0_i32 = arith.constant 0 : i32
    %c0_i32_0 = arith.constant 0 : i32
    return %arg0, %arg1, %c0_i32 : i32, i32, i32
  }
  func.func @transform_1(%arg0: i32, %arg1: i32) -> (i32, i32, i32) {
    %c0_i32 = arith.constant 0 : i32
    %c0_i32_0 = arith.constant 0 : i32
    %c0_i32_1 = arith.constant 0 : i32
    return %arg0, %c0_i32, %c0_i32_0 : i32, i32, i32
  }
  func.func @transform_2(%arg0: i32, %arg1: i32) -> (i32, i32, i32) {
    %c0_i32 = arith.constant 0 : i32
    %c0_i32_0 = arith.constant 0 : i32
    return %arg0, %c0_i32, %arg1 : i32, i32, i32
  }
}

</mosaic_0001>

<llo_original>
// kernel: elan_forward.7
$region0: #{elan_forward.7}
  #allocation0 [shape = 'u32[]', space=smem, size = 0x4, offset = 0x4, fixed_abs, tag = 'smem constant byte address 0x4 - core index']
  #allocation1 [shape = 'u32[144,128]{1,0:T(1,128)}', space=vmem, size = 0x12000, scoped, tag = 'internal scratch']
  %s0 = inlined_call_operand.vmem [shape: bf16[2,256,128], index: 0, kind: input, shape index: {}]
  %s1 = inlined_call_operand.vmem [shape: f32[2,1,128], index: 1, kind: input, shape index: {}]
  %s2 = inlined_call_operand.vmem [shape: f32[2,32,256], index: 2, kind: output, shape index: {}]
  %s3 = sld [smem:[#allocation0]]
  $region41: #{elan_forward.7} parent=0
    _
  %s5 = ssub.s32 1, %s3
  %s6 = scalar_select 0, %s5, %s3
  loop: start=0, step=1, limit=4
  $region2: #{elan_forward.7} parent=0 // loop_pre_header
    _
  $region3: #{elan_forward.7} parent=0 // loop_header
    %s8 = sphi 0, %s12
    %p9 = scmp.ge.s32.totalorder %s8, 4
    %s15 = sphi 0, %s27
    %s16 = sphi 0, %s23
    %s17 = sphi 0, %s15
    %s18 = sphi 0, %s16
    %s19 = sphi 0, %s17
    %s20 = sphi 0, %s18
    %s32 = sphi 0, %s34
    %s35 = sphi 0, %s32
    %s36 = sphi 0, %s35
    %s52 = sphi 0, %s36
    %s58 = sphi 0, %s60
    %s61 = sphi 0, %s58
    %s62 = sphi 0, %s61
    %s78 = sphi 0, %s62
    %s86 = sphi 0, %s88
    %s89 = sphi 0, %s86
    %s90 = sphi 0, %s89
    %s106 = sphi 0, %s90
  $region4: #{elan_forward.7} parent=0 // loop_header_branch
    %11 = sbr.rel (%p9) target = $region8
  $region5: #{elan_forward.7} parent=0 // loop_body
    %s13 = ssub.s32 %s8, 1
    %s14 = ssub.s32 %s8, 2
    %s21 = sadd.s32 1, %s16
    %p22 = scmp.ge.s32.totalorder %s21, 1
    %s23 = scalar_select %p22, 0, %s21
    %s24 = sadd.s32 1, %s15
    %s25 = scalar_select %p22, %s24, %s15
    %p26 = scmp.ge.s32.totalorder %s25, 2
    %s27 = scalar_select %p26, 0, %s25
    %s28 = ssub.s32 %s15, %s27
    %s29 = ssub.s32 %s16, %s23
    %s30 = sor.u32 %s28, %s29
    %p31 = scmp.eq.s32.totalorder %s30, 0
    %s33 = sadd.s32 %s32, 1
    %s34 = scalar_select %p31, %s32, %s33
    %p37 = pneg %p31
    %p38 = scmp.eq.s32.totalorder %s8, 1
    %p39 = por %p37, %p38
    %p40 = scmp.ne.s32.totalorder %s32, %s35
    %p41 = scmp.eq.s32.totalorder %s8, 0
    %p42 = por %p40, %p41
    %p43 = scmp.ne.s32.totalorder %s32, %s35
    %p44 = scmp.eq.s32.totalorder %s13, 1
    %p45 = por %p43, %p44
    %p46 = scmp.ne.s32.totalorder %s35, %s36
    %p47 = scmp.eq.s32.totalorder %s13, 0
    %p48 = por %p46, %p47
    %p49 = scmp.ne.s32.totalorder %s35, %s36
    %p50 = scmp.eq.s32.totalorder %s14, 1
    %p51 = por %p49, %p50
    %p53 = scmp.ne.s32.totalorder %s36, %s52
    %p54 = scmp.eq.s32.totalorder %s14, 0
    %p55 = por %p53, %p54
    %s56 = ssub.s32 %s15, %s27
    %p57 = scmp.eq.s32.totalorder %s56, 0
    %s59 = sadd.s32 %s58, 1
    %s60 = scalar_select %p57, %s58, %s59
    %p63 = pneg %p57
    %p64 = scmp.eq.s32.totalorder %s8, 1
    %p65 = por %p63, %p64
    %p66 = scmp.ne.s32.totalorder %s58, %s61
    %p67 = scmp.eq.s32.totalorder %s8, 0
    %p68 = por %p66, %p67
    %p69 = scmp.ne.s32.totalorder %s58, %s61
    %p70 = scmp.eq.s32.totalorder %s13, 1
    %p71 = por %p69, %p70
    %p72 = scmp.ne.s32.totalorder %s61, %s62
    %p73 = scmp.eq.s32.totalorder %s13, 0
    %p74 = por %p72, %p73
    %p75 = scmp.ne.s32.totalorder %s61, %s62
    %p76 = scmp.eq.s32.totalorder %s14, 1
    %p77 = por %p75, %p76
    %p79 = scmp.ne.s32.totalorder %s62, %s78
    %p80 = scmp.eq.s32.totalorder %s14, 0
    %p81 = por %p79, %p80
    %s82 = ssub.s32 %s15, %s27
    %s83 = ssub.s32 %s16, %s23
    %s84 = sor.u32 %s82, %s83
    %p85 = scmp.eq.s32.totalorder %s84, 0
    %s87 = sadd.s32 %s86, 1
    %s88 = scalar_select %p85, %s86, %s87
    %p91 = pneg %p85
    %p92 = scmp.eq.s32.totalorder %s8, 1
    %p93 = por %p91, %p92
    %p94 = scmp.ne.s32.totalorder %s86, %s89
    %p95 = scmp.eq.s32.totalorder %s8, 0
    %p96 = por %p94, %p95
    %p97 = scmp.ne.s32.totalorder %s86, %s89
    %p98 = scmp.eq.s32.totalorder %s13, 1
    %p99 = por %p97, %p98
    %p100 = scmp.ne.s32.totalorder %s89, %s90
    %p101 = scmp.eq.s32.totalorder %s13, 0
    %p102 = por %p100, %p101
    %p103 = scmp.ne.s32.totalorder %s89, %s90
    %p104 = scmp.eq.s32.totalorder %s14, 1
    %p105 = por %p103, %p104
    %p107 = scmp.ne.s32.totalorder %s90, %s106
    %p108 = scmp.eq.s32.totalorder %s14, 0
    %p109 = por %p107, %p108
    %p110 = scmp.le.s32.totalorder 1, %s8
    %p111 = scmp.lt.s32.totalorder %s8, 3
    %p112 = pnand %p110, %p111
    %p113 = pneg %p112
    // Predicated region
    $region9: #{elan_forward.7} parent=5 // pred_check
      _
    $region10: #{elan_forward.7} parent=5 // pred_check_branch
      %115 = sbr.rel (%p112) target = $region12
    $region11: #{elan_forward.7} parent=5 // pred_region
      %s116 = ssub.s32 %s8, 1
    $region12: #{elan_forward.7} parent=5 // pred_fallthru
      _
    %p117 = scmp.lt.s32.totalorder %s8, 2
    // Predicated region
    $region13: #{elan_forward.7} parent=5 // pred_check
      %p118 = pneg %p117
    $region14: #{elan_forward.7} parent=5 // pred_check_branch
      %120 = sbr.rel (%p118) target = $region16
    $region15: #{elan_forward.7} parent=5 // pred_region
      // Predicated region
      $region17: #{elan_forward.7} parent=15 // pred_check
        %p121 = pneg %p42
      $region18: #{elan_forward.7} parent=15 // pred_check_branch
        %123 = sbr.rel (%p121) target = $region20
      $region19: #{elan_forward.7} parent=15 // pred_region
        %s124 = smul.u32 32, %s16
        %p125 = scmp.lt.s32.totalorder %s15, 1
        %s126 = scalar_select %p125, %s15, 1
        %p127 = scmp.lt.s32.totalorder %s124, 31
        %s128 = scalar_select %p127, %s124, 31
        %s129 = smul.addr %s126, 32
        %s130 = sadd.s32 %s128, %s129
        %s131 = smul.addr %s130, 4
        %s132 = scalar_lea.vmem %s0, %s131
        %s133 = smul.u32 32, %s16
      $region20: #{elan_forward.7} parent=15 // pred_fallthru
        _
      // Predicated region
      $region21: #{elan_forward.7} parent=15 // pred_check
        %p134 = pneg %p68
      $region22: #{elan_forward.7} parent=15 // pred_check_branch
        %136 = sbr.rel (%p134) target = $region24
      $region23: #{elan_forward.7} parent=15 // pred_region
        %p137 = scmp.lt.s32.totalorder %s15, 1
        %s138 = scalar_select %p137, %s15, 1
        %s139 = scalar_lea.vmem %s1, %s138
      $region24: #{elan_forward.7} parent=15 // pred_fallthru
        _
    $region16: #{elan_forward.7} parent=5 // pred_fallthru
      _
    %p140 = scmp.le.s32.totalorder 1, %s8
    %p141 = scmp.lt.s32.totalorder %s8, 3
    %p142 = pnand %p140, %p141
    %p143 = pneg %p142
    // Predicated region
    $region25: #{elan_forward.7} parent=5 // pred_check
      _
    $region26: #{elan_forward.7} parent=5 // pred_check_branch
      %145 = sbr.rel (%p142) target = $region28
    $region27: #{elan_forward.7} parent=5 // pred_region
      %s146 = ssub.s32 %s8, 1
      %s147 = smul.u32 32, %s18
      %p148 = scmp.lt.s32.totalorder %s17, 1
      %s149 = scalar_select %p148, %s17, 1
      %p150 = scmp.lt.s32.totalorder %s147, 31
      %s151 = scalar_select %p150, %s147, 31
      %s152 = smul.addr %s149, 32
      %s153 = sadd.s32 %s151, %s152
      %s154 = smul.addr %s153, 4
      %s155 = scalar_lea.vmem %s0, %s154
      %p156 = pneg %p48
      %p157 = pneg %p45
      %p158 = scmp.lt.s32.totalorder %s17, 1
      %s159 = scalar_select %p158, %s17, 1
      %s160 = scalar_lea.vmem %s1, %s159
      %p161 = pneg %p74
      %p162 = pneg %p71
      %p163 = pneg %p102
      %p164 = pneg %p99
      %s165 = smul.u32 2, %s18
      %p166 = scmp.lt.s32.totalorder %s17, 1
      %s167 = scalar_select %p166, %s17, 1
      %p168 = scmp.lt.s32.totalorder %s165, 1
      %s169 = scalar_select %p168, %s165, 1
      %s170 = smul.addr %s167, 8
      %s171 = sadd.s32 %s169, %s170
      %s172 = smul.addr %s171, 8
      %s173 = scalar_lea.vmem %s2, %s172
      %s174 = smul.u32 32, %s18
      %p175 = scmp.lt.s32.totalorder %s17, 1
      %s176 = scalar_select %p175, %s17, 1
      %p177 = scmp.lt.s32.totalorder %s174, 31
      %s178 = scalar_select %p177, %s174, 31
      %s179 = smul.addr %s176, 32
      %s180 = sadd.s32 %s178, %s179
      %s181 = smul.addr %s180, 4
      %s182 = scalar_lea.vmem %s0, %s181
      %s183 = smul.u32 32, %s18
      %p184 = scmp.lt.s32.totalorder %s17, 1
      %s185 = scalar_select %p184, %s17, 1
      %s186 = scalar_lea.vmem %s1, %s185
      %s187 = smul.u32 2, %s18
      %p188 = scmp.lt.s32.totalorder %s17, 1
      %s189 = scalar_select %p188, %s17, 1
      %p190 = scmp.lt.s32.totalorder %s187, 1
      %s191 = scalar_select %p190, %s187, 1
      %s192 = smul.addr %s189, 8
      %s193 = sadd.s32 %s191, %s192
      %s194 = smul.addr %s193, 8
      %s195 = scalar_lea.vmem %s2, %s194
      %s196 = smul.u32 2, %s18
      %v197 = vld [vmem:[%s182] sm:$0xf]
      %v198 = vld [vmem:[%s182 + $0x4] sm:$0xf]
      %v199 = vld [vmem:[%s182 + $0x8] sm:$0xf]
      %v200 = vld [vmem:[%s182 + $0xc] sm:$0xf]
      %v201 = vld [vmem:[%s182 + $0x10] sm:$0xf]
      %v202 = vld [vmem:[%s182 + $0x14] sm:$0xf]
      %v203 = vld [vmem:[%s182 + $0x18] sm:$0xf]
      %v204 = vld [vmem:[%s182 + $0x1c] sm:$0xf]
      %v205 = vld [vmem:[%s182 + $0x20] sm:$0xf]
      %v206 = vld [vmem:[%s182 + $0x24] sm:$0xf]
      %v207 = vld [vmem:[%s182 + $0x28] sm:$0xf]
      %v208 = vld [vmem:[%s182 + $0x2c] sm:$0xf]
      %v209 = vld [vmem:[%s182 + $0x30] sm:$0xf]
      %v210 = vld [vmem:[%s182 + $0x34] sm:$0xf]
      %v211 = vld [vmem:[%s182 + $0x38] sm:$0xf]
      %v212 = vld [vmem:[%s182 + $0x3c] sm:$0xf]
      %v213 = vld [vmem:[%s182 + $0x40] sm:$0xf]
      %v214 = vld [vmem:[%s182 + $0x44] sm:$0xf]
      %v215 = vld [vmem:[%s182 + $0x48] sm:$0xf]
      %v216 = vld [vmem:[%s182 + $0x4c] sm:$0xf]
      %v217 = vld [vmem:[%s182 + $0x50] sm:$0xf]
      %v218 = vld [vmem:[%s182 + $0x54] sm:$0xf]
      %v219 = vld [vmem:[%s182 + $0x58] sm:$0xf]
      %v220 = vld [vmem:[%s182 + $0x5c] sm:$0xf]
      %v221 = vld [vmem:[%s182 + $0x60] sm:$0xf]
      %v222 = vld [vmem:[%s182 + $0x64] sm:$0xf]
      %v223 = vld [vmem:[%s182 + $0x68] sm:$0xf]
      %v224 = vld [vmem:[%s182 + $0x6c] sm:$0xf]
      %v225 = vld [vmem:[%s182 + $0x70] sm:$0xf]
      %v226 = vld [vmem:[%s182 + $0x74] sm:$0xf]
      %v227 = vld [vmem:[%s182 + $0x78] sm:$0xf]
      %v228 = vld [vmem:[%s182 + $0x7c] sm:$0xf]
      %v229 = vunpack.c.l.bf16 %v197
      %v230 = vunpack.c.l.bf16 %v198
      %v231 = vunpack.c.l.bf16 %v199
      %v232 = vunpack.c.l.bf16 %v200
      %v233 = vunpack.c.l.bf16 %v201
      %v234 = vunpack.c.l.bf16 %v202
      %v235 = vunpack.c.l.bf16 %v203
      %v236 = vunpack.c.l.bf16 %v204
      %v237 = vunpack.c.l.bf16 %v205
      %v238 = vunpack.c.l.bf16 %v206
      %v239 = vunpack.c.l.bf16 %v207
      %v240 = vunpack.c.l.bf16 %v208
      %v241 = vunpack.c.l.bf16 %v209
      %v242 = vunpack.c.l.bf16 %v210
      %v243 = vunpack.c.l.bf16 %v211
      %v244 = vunpack.c.l.bf16 %v212
      %v245 = vunpack.c.l.bf16 %v213
      %v246 = vunpack.c.l.bf16 %v214
      %v247 = vunpack.c.l.bf16 %v215
      %v248 = vunpack.c.l.bf16 %v216
      %v249 = vunpack.c.l.bf16 %v217
      %v250 = vunpack.c.l.bf16 %v218
      %v251 = vunpack.c.l.bf16 %v219
      %v252 = vunpack.c.l.bf16 %v220
      %v253 = vunpack.c.l.bf16 %v221
      %v254 = vunpack.c.l.bf16 %v222
      %v255 = vunpack.c.l.bf16 %v223
      %v256 = vunpack.c.l.bf16 %v224
      %v257 = vunpack.c.l.bf16 %v225
      %v258 = vunpack.c.l.bf16 %v226
      %v259 = vunpack.c.l.bf16 %v227
      %v260 = vunpack.c.l.bf16 %v228
      %v261 = vld [vmem:[%s186] sm:$0x1]
      %v263 = vlaneseq
      %v264 = vshrl.u32 %v263, 7
      %v265 = vsub.s32 0, %v264
      %v266 = vrot.slane %v261, %v265
      %v268 = vmul.f32 %v229, %v266
      %v269 = vmul.f32 %v230, %v266
      %v270 = vmul.f32 %v231, %v266
      %v271 = vmul.f32 %v232, %v266
      %v272 = vmul.f32 %v233, %v266
      %v273 = vmul.f32 %v234, %v266
      %v274 = vmul.f32 %v235, %v266
      %v275 = vmul.f32 %v236, %v266
      %v276 = vmul.f32 %v237, %v266
      %v277 = vmul.f32 %v238, %v266
      %v278 = vmul.f32 %v239, %v266
      %v279 = vmul.f32 %v240, %v266
      %v280 = vmul.f32 %v241, %v266
      %v281 = vmul.f32 %v242, %v266
      %v282 = vmul.f32 %v243, %v266
      %v283 = vmul.f32 %v244, %v266
      %v284 = vmul.f32 %v245, %v266
      %v285 = vmul.f32 %v246, %v266
      %v286 = vmul.f32 %v247, %v266
      %v287 = vmul.f32 %v248, %v266
      %v288 = vmul.f32 %v249, %v266
      %v289 = vmul.f32 %v250, %v266
      %v290 = vmul.f32 %v251, %v266
      %v291 = vmul.f32 %v252, %v266
      %v292 = vmul.f32 %v253, %v266
      %v293 = vmul.f32 %v254, %v266
      %v294 = vmul.f32 %v255, %v266
      %v295 = vmul.f32 %v256, %v266
      %v296 = vmul.f32 %v257, %v266
      %v297 = vmul.f32 %v258, %v266
      %v298 = vmul.f32 %v259, %v266
      %v299 = vmul.f32 %v260, %v266
      %300 = vxpose.xlu0.b32.start [1/16] %v268, 128
      %301 = vxpose.xlu0.b32.cont [2/16] %v269, 128
      %302 = vxpose.xlu0.b32.cont [3/16] %v270, 128
      %303 = vxpose.xlu0.b32.cont [4/16] %v271, 128
      %304 = vxpose.xlu0.b32.cont [5/16] %v272, 128
      %305 = vxpose.xlu0.b32.cont [6/16] %v273, 128
      %306 = vxpose.xlu0.b32.cont [7/16] %v274, 128
      %307 = vxpose.xlu0.b32.cont [8/16] %v275, 128
      %308 = vxpose.xlu0.b32.cont [9/16] %v276, 128
      %309 = vxpose.xlu0.b32.cont [10/16] %v277, 128
      %310 = vxpose.xlu0.b32.cont [11/16] %v278, 128
      %311 = vxpose.xlu0.b32.cont [12/16] %v279, 128
      %312 = vxpose.xlu0.b32.cont [13/16] %v280, 128
      %313 = vxpose.xlu0.b32.cont [14/16] %v281, 128
      %314 = vxpose.xlu0.b32.cont [15/16] %v282, 128
      %315 = vxpose.xlu0.b32.end [16/16] %v283, 128
      %v316 = vpop.trf.xlu0
      %v317 = vpop.trf.xlu0
      %v318 = vpop.trf.xlu0
      %v319 = vpop.trf.xlu0
      %v320 = vpop.trf.xlu0
      %v321 = vpop.trf.xlu0
      %v322 = vpop.trf.xlu0
      %v323 = vpop.trf.xlu0
      %v324 = vpop.trf.xlu0
      %v325 = vpop.trf.xlu0
      %v326 = vpop.trf.xlu0
      %v327 = vpop.trf.xlu0
      %v328 = vpop.trf.xlu0
      %v329 = vpop.trf.xlu0
      %v330 = vpop.trf.xlu0
      %v331 = vpop.trf.xlu0
      %332 = vxpose.xlu0.b32.start [1/16] %v284, 128
      %333 = vxpose.xlu0.b32.cont [2/16] %v285, 128
      %334 = vxpose.xlu0.b32.cont [3/16] %v286, 128
      %335 = vxpose.xlu0.b32.cont [4/16] %v287, 128
      %336 = vxpose.xlu0.b32.cont [5/16] %v288, 128
      %337 = vxpose.xlu0.b32.cont [6/16] %v289, 128
      %338 = vxpose.xlu0.b32.cont [7/16] %v290, 128
      %339 = vxpose.xlu0.b32.cont [8/16] %v291, 128
      %340 = vxpose.xlu0.b32.cont [9/16] %v292, 128
      %341 = vxpose.xlu0.b32.cont [10/16] %v293, 128
      %342 = vxpose.xlu0.b32.cont [11/16] %v294, 128
      %343 = vxpose.xlu0.b32.cont [12/16] %v295, 128
      %344 = vxpose.xlu0.b32.cont [13/16] %v296, 128
      %345 = vxpose.xlu0.b32.cont [14/16] %v297, 128
      %346 = vxpose.xlu0.b32.cont [15/16] %v298, 128
      %347 = vxpose.xlu0.b32.end [16/16] %v299, 128
      %v348 = vpop.trf.xlu0
      %v349 = vpop.trf.xlu0
      %v350 = vpop.trf.xlu0
      %v351 = vpop.trf.xlu0
      %v352 = vpop.trf.xlu0
      %v353 = vpop.trf.xlu0
      %v354 = vpop.trf.xlu0
      %v355 = vpop.trf.xlu0
      %v356 = vpop.trf.xlu0
      %v357 = vpop.trf.xlu0
      %v358 = vpop.trf.xlu0
      %v359 = vpop.trf.xlu0
      %v360 = vpop.trf.xlu0
      %v361 = vpop.trf.xlu0
      %v362 = vpop.trf.xlu0
      %v363 = vpop.trf.xlu0
      %364 = vst [vmem:[%s195] sm:$0xff] %v316
      %365 = vst [vmem:[%s195 + $0x8] sm:$0xff] %v348
      %366 = vst [vmem:[%s195 + $0x10] sm:$0xff] %v317
      %367 = vst [vmem:[%s195 + $0x18] sm:$0xff] %v349
      %368 = vst [vmem:[%s195 + $0x20] sm:$0xff] %v318
      %369 = vst [vmem:[%s195 + $0x28] sm:$0xff] %v350
      %370 = vst [vmem:[%s195 + $0x30] sm:$0xff] %v319
      %371 = vst [vmem:[%s195 + $0x38] sm:$0xff] %v351
      %s372 = smul.u32 2, %s18
      %p373 = scmp.lt.s32.totalorder %s17, 1
      %s374 = scalar_select %p373, %s17, 1
      %p375 = scmp.lt.s32.totalorder %s372, 1
      %s376 = scalar_select %p375, %s372, 1
      %s377 = smul.addr %s374, 8
      %s378 = sadd.s32 %s376, %s377
      %s379 = smul.addr %s378, 8
      %s380 = scalar_lea.vmem %s2, %s379
      // Predicated region
      $region29: #{elan_forward.7} parent=27 // pred_check
        %p381 = pneg %p99
      $region30: #{elan_forward.7} parent=27 // pred_check_branch
        %383 = sbr.rel (%p381) target = $region32
      $region31: #{elan_forward.7} parent=27 // pred_region
        %s384 = smul.u32 2, %s18
      $region32: #{elan_forward.7} parent=27 // pred_fallthru
        _
    $region28: #{elan_forward.7} parent=5 // pred_fallthru
      _
    %p385 = scmp.le.s32.totalorder 2, %s8
    // Predicated region
    $region33: #{elan_forward.7} parent=5 // pred_check
      %p386 = pneg %p385
    $region34: #{elan_forward.7} parent=5 // pred_check_branch
      %388 = sbr.rel (%p386) target = $region36
    $region35: #{elan_forward.7} parent=5 // pred_region
      %s389 = ssub.s32 %s8, 2
      // Predicated region
      $region37: #{elan_forward.7} parent=35 // pred_check
        %p390 = pneg %p105
      $region38: #{elan_forward.7} parent=35 // pred_check_branch
        %392 = sbr.rel (%p390) target = $region40
      $region39: #{elan_forward.7} parent=35 // pred_region
        %s393 = smul.u32 2, %s20
        %p394 = scmp.lt.s32.totalorder %s19, 1
        %s395 = scalar_select %p394, %s19, 1
        %p396 = scmp.lt.s32.totalorder %s393, 1
        %s397 = scalar_select %p396, %s393, 1
        %s398 = smul.addr %s395, 8
        %s399 = sadd.s32 %s397, %s398
        %s400 = smul.addr %s399, 8
        %s401 = scalar_lea.vmem %s2, %s400
      $region40: #{elan_forward.7} parent=35 // pred_fallthru
        _
    $region36: #{elan_forward.7} parent=5 // pred_fallthru
      _
  $region6: #{elan_forward.7} parent=0 // loop_footer
    %s12 = sadd.s32 1, %s8
  $region7: #{elan_forward.7} parent=0 // loop_footer_branch
    %7 = sbr.rel target = $region3
  $region8: #{elan_forward.7} parent=0 // loop_exit
    _

// kernel: elan_forward.6
$region0: #{elan_forward.6}
  #allocation0 [shape = 'u32[]', space=smem, size = 0x4, offset = 0x4, fixed_abs, tag = 'smem constant byte address 0x4 - core index']
  #allocation1 [shape = 'u32[144,128]{1,0:T(1,128)}', space=vmem, size = 0x12000, scoped, tag = 'internal scratch']
  %s0 = inlined_call_operand.vmem [shape: bf16[2,256,128], index: 0, kind: input, shape index: {}]
  %s1 = inlined_call_operand.vmem [shape: bf16[2,256,128], index: 1, kind: input, shape index: {}]
  %s2 = inlined_call_operand.vmem [shape: bf16[2,256,128], index: 2, kind: input, shape index: {}]
  %s3 = inlined_call_operand.vmem [shape: bf16[384,128], index: 3, kind: input, shape index: {}]
  %s4 = inlined_call_operand.vmem [shape: f32[1,128], index: 4, kind: input, shape index: {}]
  %s5 = inlined_call_operand.vmem [shape: bf16[2,256,128], index: 5, kind: output, shape index: {0}]
  %s6 = inlined_call_operand.vmem [shape: f32[2,1,128], index: 6, kind: output, shape index: {1}]
  %7 = xla_tuple %s5, %s6
  %s8 = sld [smem:[#allocation0]]
  $region65: #{elan_forward.6} parent=0
    _
  %s10 = ssub.s32 1, %s8
  %s11 = scalar_select 0, %s10, %s8
  loop: start=0, step=1, limit=4
  $region2: #{elan_forward.6} parent=0 // loop_pre_header
    _
  $region3: #{elan_forward.6} parent=0 // loop_header
    %s13 = sphi 0, %s17
    %p14 = scmp.ge.s32.totalorder %s13, 4
    %s20 = sphi 0, %s32
    %s21 = sphi 0, %s28
    %s22 = sphi 0, %s20
    %s23 = sphi 0, %s21
    %s24 = sphi 0, %s22
    %s25 = sphi 0, %s23
    %s37 = sphi 0, %s39
    %s40 = sphi 0, %s37
    %s41 = sphi 0, %s40
    %s57 = sphi 0, %s41
    %s65 = sphi 0, %s67
    %s68 = sphi 0, %s65
    %s69 = sphi 0, %s68
    %s85 = sphi 0, %s69
    %s93 = sphi 0, %s95
    %s96 = sphi 0, %s93
    %s97 = sphi 0, %s96
    %s113 = sphi 0, %s97
    %s117 = sphi 0, %s117
    %s119 = sphi 0, %s117
    %s120 = sphi 0, %s119
    %s134 = sphi 0, %s120
    %s138 = sphi 0, %s138
    %s140 = sphi 0, %s138
    %s141 = sphi 0, %s140
    %s155 = sphi 0, %s141
    %s163 = sphi 0, %s165
    %s166 = sphi 0, %s163
    %s167 = sphi 0, %s166
    %s183 = sphi 0, %s167
    %s189 = sphi 0, %s191
    %s192 = sphi 0, %s189
    %s193 = sphi 0, %s192
    %s209 = sphi 0, %s193
  $region4: #{elan_forward.6} parent=0 // loop_header_branch
    %16 = sbr.rel (%p14) target = $region8
  $region5: #{elan_forward.6} parent=0 // loop_body
    %s18 = ssub.s32 %s13, 1
    %s19 = ssub.s32 %s13, 2
    %s26 = sadd.s32 1, %s21
    %p27 = scmp.ge.s32.totalorder %s26, 1
    %s28 = scalar_select %p27, 0, %s26
    %s29 = sadd.s32 1, %s20
    %s30 = scalar_select %p27, %s29, %s20
    %p31 = scmp.ge.s32.totalorder %s30, 2
    %s32 = scalar_select %p31, 0, %s30
    %s33 = ssub.s32 %s20, %s32
    %s34 = ssub.s32 %s21, %s28
    %s35 = sor.u32 %s33, %s34
    %p36 = scmp.eq.s32.totalorder %s35, 0
    %s38 = sadd.s32 %s37, 1
    %s39 = scalar_select %p36, %s37, %s38
    %p42 = pneg %p36
    %p43 = scmp.eq.s32.totalorder %s13, 1
    %p44 = por %p42, %p43
    %p45 = scmp.ne.s32.totalorder %s37, %s40
    %p46 = scmp.eq.s32.totalorder %s13, 0
    %p47 = por %p45, %p46
    %p48 = scmp.ne.s32.totalorder %s37, %s40
    %p49 = scmp.eq.s32.totalorder %s18, 1
    %p50 = por %p48, %p49
    %p51 = scmp.ne.s32.totalorder %s40, %s41
    %p52 = scmp.eq.s32.totalorder %s18, 0
    %p53 = por %p51, %p52
    %p54 = scmp.ne.s32.totalorder %s40, %s41
    %p55 = scmp.eq.s32.totalorder %s19, 1
    %p56 = por %p54, %p55
    %p58 = scmp.ne.s32.totalorder %s41, %s57
    %p59 = scmp.eq.s32.totalorder %s19, 0
    %p60 = por %p58, %p59
    %s61 = ssub.s32 %s20, %s32
    %s62 = ssub.s32 %s21, %s28
    %s63 = sor.u32 %s61, %s62
    %p64 = scmp.eq.s32.totalorder %s63, 0
    %s66 = sadd.s32 %s65, 1
    %s67 = scalar_select %p64, %s65, %s66
    %p70 = pneg %p64
    %p71 = scmp.eq.s32.totalorder %s13, 1
    %p72 = por %p70, %p71
    %p73 = scmp.ne.s32.totalorder %s65, %s68
    %p74 = scmp.eq.s32.totalorder %s13, 0
    %p75 = por %p73, %p74
    %p76 = scmp.ne.s32.totalorder %s65, %s68
    %p77 = scmp.eq.s32.totalorder %s18, 1
    %p78 = por %p76, %p77
    %p79 = scmp.ne.s32.totalorder %s68, %s69
    %p80 = scmp.eq.s32.totalorder %s18, 0
    %p81 = por %p79, %p80
    %p82 = scmp.ne.s32.totalorder %s68, %s69
    %p83 = scmp.eq.s32.totalorder %s19, 1
    %p84 = por %p82, %p83
    %p86 = scmp.ne.s32.totalorder %s69, %s85
    %p87 = scmp.eq.s32.totalorder %s19, 0
    %p88 = por %p86, %p87
    %s89 = ssub.s32 %s20, %s32
    %s90 = ssub.s32 %s21, %s28
    %s91 = sor.u32 %s89, %s90
    %p92 = scmp.eq.s32.totalorder %s91, 0
    %s94 = sadd.s32 %s93, 1
    %s95 = scalar_select %p92, %s93, %s94
    %p98 = pneg %p92
    %p99 = scmp.eq.s32.totalorder %s13, 1
    %p100 = por %p98, %p99
    %p101 = scmp.ne.s32.totalorder %s93, %s96
    %p102 = scmp.eq.s32.totalorder %s13, 0
    %p103 = por %p101, %p102
    %p104 = scmp.ne.s32.totalorder %s93, %s96
    %p105 = scmp.eq.s32.totalorder %s18, 1
    %p106 = por %p104, %p105
    %p107 = scmp.ne.s32.totalorder %s96, %s97
    %p108 = scmp.eq.s32.totalorder %s18, 0
    %p109 = por %p107, %p108
    %p110 = scmp.ne.s32.totalorder %s96, %s97
    %p111 = scmp.eq.s32.totalorder %s19, 1
    %p112 = por %p110, %p111
    %p114 = scmp.ne.s32.totalorder %s97, %s113
    %p115 = scmp.eq.s32.totalorder %s19, 0
    %p116 = por %p114, %p115
    %s118 = sadd.s32 %s117, 1
    %p121 = scmp.eq.s32.totalorder %s13, 1
    %p122 = scmp.ne.s32.totalorder %s117, %s119
    %p123 = scmp.eq.s32.totalorder %s13, 0
    %p124 = por %p122, %p123
    %p125 = scmp.ne.s32.totalorder %s117, %s119
    %p126 = scmp.eq.s32.totalorder %s18, 1
    %p127 = por %p125, %p126
    %p128 = scmp.ne.s32.totalorder %s119, %s120
    %p129 = scmp.eq.s32.totalorder %s18, 0
    %p130 = por %p128, %p129
    %p131 = scmp.ne.s32.totalorder %s119, %s120
    %p132 = scmp.eq.s32.totalorder %s19, 1
    %p133 = por %p131, %p132
    %p135 = scmp.ne.s32.totalorder %s120, %s134
    %p136 = scmp.eq.s32.totalorder %s19, 0
    %p137 = por %p135, %p136
    %s139 = sadd.s32 %s138, 1
    %p142 = scmp.eq.s32.totalorder %s13, 1
    %p143 = scmp.ne.s32.totalorder %s138, %s140
    %p144 = scmp.eq.s32.totalorder %s13, 0
    %p145 = por %p143, %p144
    %p146 = scmp.ne.s32.totalorder %s138, %s140
    %p147 = scmp.eq.s32.totalorder %s18, 1
    %p148 = por %p146, %p147
    %p149 = scmp.ne.s32.totalorder %s140, %s141
    %p150 = scmp.eq.s32.totalorder %s18, 0
    %p151 = por %p149, %p150
    %p152 = scmp.ne.s32.totalorder %s140, %s141
    %p153 = scmp.eq.s32.totalorder %s19, 1
    %p154 = por %p152, %p153
    %p156 = scmp.ne.s32.totalorder %s141, %s155
    %p157 = scmp.eq.s32.totalorder %s19, 0
    %p158 = por %p156, %p157
    %s159 = ssub.s32 %s20, %s32
    %s160 = ssub.s32 %s21, %s28
    %s161 = sor.u32 %s159, %s160
    %p162 = scmp.eq.s32.totalorder %s161, 0
    %s164 = sadd.s32 %s163, 1
    %s165 = scalar_select %p162, %s163, %s164
    %p168 = pneg %p162
    %p169 = scmp.eq.s32.totalorder %s13, 1
    %p170 = por %p168, %p169
    %p171 = scmp.ne.s32.totalorder %s163, %s166
    %p172 = scmp.eq.s32.totalorder %s13, 0
    %p173 = por %p171, %p172
    %p174 = scmp.ne.s32.totalorder %s163, %s166
    %p175 = scmp.eq.s32.totalorder %s18, 1
    %p176 = por %p174, %p175
    %p177 = scmp.ne.s32.totalorder %s166, %s167
    %p178 = scmp.eq.s32.totalorder %s18, 0
    %p179 = por %p177, %p178
    %p180 = scmp.ne.s32.totalorder %s166, %s167
    %p181 = scmp.eq.s32.totalorder %s19, 1
    %p182 = por %p180, %p181
    %p184 = scmp.ne.s32.totalorder %s167, %s183
    %p185 = scmp.eq.s32.totalorder %s19, 0
    %p186 = por %p184, %p185
    %s187 = ssub.s32 %s20, %s32
    %p188 = scmp.eq.s32.totalorder %s187, 0
    %s190 = sadd.s32 %s189, 1
    %s191 = scalar_select %p188, %s189, %s190
    %p194 = pneg %p188
    %p195 = scmp.eq.s32.totalorder %s13, 1
    %p196 = por %p194, %p195
    %p197 = scmp.ne.s32.totalorder %s189, %s192
    %p198 = scmp.eq.s32.totalorder %s13, 0
    %p199 = por %p197, %p198
    %p200 = scmp.ne.s32.totalorder %s189, %s192
    %p201 = scmp.eq.s32.totalorder %s18, 1
    %p202 = por %p200, %p201
    %p203 = scmp.ne.s32.totalorder %s192, %s193
    %p204 = scmp.eq.s32.totalorder %s18, 0
    %p205 = por %p203, %p204
    %p206 = scmp.ne.s32.totalorder %s192, %s193
    %p207 = scmp.eq.s32.totalorder %s19, 1
    %p208 = por %p206, %p207
    %p210 = scmp.ne.s32.totalorder %s193, %s209
    %p211 = scmp.eq.s32.totalorder %s19, 0
    %p212 = por %p210, %p211
    %p213 = scmp.le.s32.totalorder 1, %s13
    %p214 = scmp.lt.s32.totalorder %s13, 3
    %p215 = pnand %p213, %p214
    %p216 = pneg %p215
    // Predicated region
    $region9: #{elan_forward.6} parent=5 // pred_check
      _
    $region10: #{elan_forward.6} parent=5 // pred_check_branch
      %218 = sbr.rel (%p215) target = $region12
    $region11: #{elan_forward.6} parent=5 // pred_region
      %s219 = ssub.s32 %s13, 1
      // Predicated region
      $region13: #{elan_forward.6} parent=11 // pred_check
        %p220 = pneg %p130
      $region14: #{elan_forward.6} parent=11 // pred_check_branch
        %222 = sbr.rel (%p220) target = $region16
      $region15: #{elan_forward.6} parent=11 // pred_region
        _
      $region16: #{elan_forward.6} parent=11 // pred_fallthru
        _
      // Predicated region
      $region17: #{elan_forward.6} parent=11 // pred_check
        %p223 = pneg %p151
      $region18: #{elan_forward.6} parent=11 // pred_check_branch
        %225 = sbr.rel (%p223) target = $region20
      $region19: #{elan_forward.6} parent=11 // pred_region
        _
      $region20: #{elan_forward.6} parent=11 // pred_fallthru
        _
    $region12: #{elan_forward.6} parent=5 // pred_fallthru
      _
    %p226 = scmp.lt.s32.totalorder %s13, 2
    // Predicated region
    $region21: #{elan_forward.6} parent=5 // pred_check
      %p227 = pneg %p226
    $region22: #{elan_forward.6} parent=5 // pred_check_branch
      %229 = sbr.rel (%p227) target = $region24
    $region23: #{elan_forward.6} parent=5 // pred_region
      // Predicated region
      $region25: #{elan_forward.6} parent=23 // pred_check
        %p230 = pneg %p47
      $region26: #{elan_forward.6} parent=23 // pred_check_branch
        %232 = sbr.rel (%p230) target = $region28
      $region27: #{elan_forward.6} parent=23 // pred_region
        %s233 = smul.u32 32, %s21
        %p234 = scmp.lt.s32.totalorder %s20, 1
        %s235 = scalar_select %p234, %s20, 1
        %p236 = scmp.lt.s32.totalorder %s233, 31
        %s237 = scalar_select %p236, %s233, 31
        %s238 = smul.addr %s235, 32
        %s239 = sadd.s32 %s237, %s238
        %s240 = smul.addr %s239, 4
        %s241 = scalar_lea.vmem %s0, %s240
        %s242 = smul.u32 32, %s21
      $region28: #{elan_forward.6} parent=23 // pred_fallthru
        _
      // Predicated region
      $region29: #{elan_forward.6} parent=23 // pred_check
        %p243 = pneg %p75
      $region30: #{elan_forward.6} parent=23 // pred_check_branch
        %245 = sbr.rel (%p243) target = $region32
      $region31: #{elan_forward.6} parent=23 // pred_region
        %s246 = smul.u32 32, %s21
        %p247 = scmp.lt.s32.totalorder %s20, 1
        %s248 = scalar_select %p247, %s20, 1
        %p249 = scmp.lt.s32.totalorder %s246, 31
        %s250 = scalar_select %p249, %s246, 31
        %s251 = smul.addr %s248, 32
        %s252 = sadd.s32 %s250, %s251
        %s253 = smul.addr %s252, 4
        %s254 = scalar_lea.vmem %s1, %s253
        %s255 = smul.u32 32, %s21
      $region32: #{elan_forward.6} parent=23 // pred_fallthru
        _
      // Predicated region
      $region33: #{elan_forward.6} parent=23 // pred_check
        %p256 = pneg %p103
      $region34: #{elan_forward.6} parent=23 // pred_check_branch
        %258 = sbr.rel (%p256) target = $region36
      $region35: #{elan_forward.6} parent=23 // pred_region
        %s259 = smul.u32 32, %s21
        %p260 = scmp.lt.s32.totalorder %s20, 1
        %s261 = scalar_select %p260, %s20, 1
        %p262 = scmp.lt.s32.totalorder %s259, 31
        %s263 = scalar_select %p262, %s259, 31
        %s264 = smul.addr %s261, 32
        %s265 = sadd.s32 %s263, %s264
        %s266 = smul.addr %s265, 4
        %s267 = scalar_lea.vmem %s2, %s266
        %s268 = smul.u32 32, %s21
      $region36: #{elan_forward.6} parent=23 // pred_fallthru
        _
    $region24: #{elan_forward.6} parent=5 // pred_fallthru
      _
    %p269 = scmp.le.s32.totalorder 1, %s13
    %p270 = scmp.lt.s32.totalorder %s13, 3
    %p271 = pnand %p269, %p270
    %p272 = pneg %p271
    // Predicated region
    $region37: #{elan_forward.6} parent=5 // pred_check
      _
    $region38: #{elan_forward.6} parent=5 // pred_check_branch
      %274 = sbr.rel (%p271) target = $region40
    $region39: #{elan_forward.6} parent=5 // pred_region
      %s275 = ssub.s32 %s13, 1
      %s276 = smul.u32 32, %s23
      %p277 = scmp.lt.s32.totalorder %s22, 1
      %s278 = scalar_select %p277, %s22, 1
      %p279 = scmp.lt.s32.totalorder %s276, 31
      %s280 = scalar_select %p279, %s276, 31
      %s281 = smul.addr %s278, 32
      %s282 = sadd.s32 %s280, %s281
      %s283 = smul.addr %s282, 4
      %s284 = scalar_lea.vmem %s0, %s283
      %p285 = pneg %p53
      %p286 = pneg %p50
      %s287 = smul.u32 32, %s23
      %p288 = scmp.lt.s32.totalorder %s22, 1
      %s289 = scalar_select %p288, %s22, 1
      %p290 = scmp.lt.s32.totalorder %s287, 31
      %s291 = scalar_select %p290, %s287, 31
      %s292 = smul.addr %s289, 32
      %s293 = sadd.s32 %s291, %s292
      %s294 = smul.addr %s293, 4
      %s295 = scalar_lea.vmem %s1, %s294
      %p296 = pneg %p81
      %p297 = pneg %p78
      %s298 = smul.u32 32, %s23
      %p299 = scmp.lt.s32.totalorder %s22, 1
      %s300 = scalar_select %p299, %s22, 1
      %p301 = scmp.lt.s32.totalorder %s298, 31
      %s302 = scalar_select %p301, %s298, 31
      %s303 = smul.addr %s300, 32
      %s304 = sadd.s32 %s302, %s303
      %s305 = smul.addr %s304, 4
      %s306 = scalar_lea.vmem %s2, %s305
      %p307 = pneg %p109
      %p308 = pneg %p106
      %p309 = pneg %p130
      %p310 = pneg %p127
      %p311 = pneg %p151
      %p312 = pneg %p148
      %p313 = pneg %p179
      %p314 = pneg %p176
      %s315 = smul.u32 32, %s23
      %p316 = scmp.lt.s32.totalorder %s22, 1
      %s317 = scalar_select %p316, %s22, 1
      %p318 = scmp.lt.s32.totalorder %s315, 31
      %s319 = scalar_select %p318, %s315, 31
      %s320 = smul.addr %s317, 32
      %s321 = sadd.s32 %s319, %s320
      %s322 = smul.addr %s321, 4
      %s323 = scalar_lea.vmem %s5, %s322
      %p324 = pneg %p205
      %p325 = pneg %p202
      %p326 = scmp.lt.s32.totalorder %s22, 1
      %s327 = scalar_select %p326, %s22, 1
      %s328 = scalar_lea.vmem %s6, %s327
      %s329 = smul.u32 32, %s23
      %p330 = scmp.lt.s32.totalorder %s22, 1
      %s331 = scalar_select %p330, %s22, 1
      %p332 = scmp.lt.s32.totalorder %s329, 31
      %s333 = scalar_select %p332, %s329, 31
      %s334 = smul.addr %s331, 32
      %s335 = sadd.s32 %s333, %s334
      %s336 = smul.addr %s335, 4
      %s337 = scalar_lea.vmem %s0, %s336
      %s338 = smul.u32 32, %s23
      %s339 = smul.u32 32, %s23
      %p340 = scmp.lt.s32.totalorder %s22, 1
      %s341 = scalar_select %p340, %s22, 1
      %p342 = scmp.lt.s32.totalorder %s339, 31
      %s343 = scalar_select %p342, %s339, 31
      %s344 = smul.addr %s341, 32
      %s345 = sadd.s32 %s343, %s344
      %s346 = smul.addr %s345, 4
      %s347 = scalar_lea.vmem %s1, %s346
      %s348 = smul.u32 32, %s23
      %s349 = smul.u32 32, %s23
      %p350 = scmp.lt.s32.totalorder %s22, 1
      %s351 = scalar_select %p350, %s22, 1
      %p352 = scmp.lt.s32.totalorder %s349, 31
      %s353 = scalar_select %p352, %s349, 31
      %s354 = smul.addr %s351, 32
      %s355 = sadd.s32 %s353, %s354
      %s356 = smul.addr %s355, 4
      %s357 = scalar_lea.vmem %s2, %s356
      %s358 = smul.u32 32, %s23
      %s359 = smul.u32 32, %s23
      %p360 = scmp.lt.s32.totalorder %s22, 1
      %s361 = scalar_select %p360, %s22, 1
      %p362 = scmp.lt.s32.totalorder %s359, 31
      %s363 = scalar_select %p362, %s359, 31
      %s364 = smul.addr %s361, 32
      %s365 = sadd.s32 %s363, %s364
      %s366 = smul.addr %s365, 4
      %s367 = scalar_lea.vmem %s5, %s366
      %s368 = smul.u32 32, %s23
      %p369 = scmp.lt.s32.totalorder %s22, 1
      %s370 = scalar_select %p369, %s22, 1
      %s371 = scalar_lea.vmem %s6, %s370
      %v373 = vld [vmem:[%s337] sm:$0xf]
      %v374 = vld [vmem:[%s337 + $0x4] sm:$0xf]
      %v375 = vld [vmem:[%s337 + $0x8] sm:$0xf]
      %v376 = vld [vmem:[%s337 + $0xc] sm:$0xf]
      %v377 = vld [vmem:[%s337 + $0x10] sm:$0xf]
      %v378 = vld [vmem:[%s337 + $0x14] sm:$0xf]
      %v379 = vld [vmem:[%s337 + $0x18] sm:$0xf]
      %v380 = vld [vmem:[%s337 + $0x1c] sm:$0xf]
      %v381 = vld [vmem:[%s337 + $0x20] sm:$0xf]
      %v382 = vld [vmem:[%s337 + $0x24] sm:$0xf]
      %v383 = vld [vmem:[%s337 + $0x28] sm:$0xf]
      %v384 = vld [vmem:[%s337 + $0x2c] sm:$0xf]
      %v385 = vld [vmem:[%s337 + $0x30] sm:$0xf]
      %v386 = vld [vmem:[%s337 + $0x34] sm:$0xf]
      %v387 = vld [vmem:[%s337 + $0x38] sm:$0xf]
      %v388 = vld [vmem:[%s337 + $0x3c] sm:$0xf]
      %v389 = vld [vmem:[%s337 + $0x40] sm:$0xf]
      %v390 = vld [vmem:[%s337 + $0x44] sm:$0xf]
      %v391 = vld [vmem:[%s337 + $0x48] sm:$0xf]
      %v392 = vld [vmem:[%s337 + $0x4c] sm:$0xf]
      %v393 = vld [vmem:[%s337 + $0x50] sm:$0xf]
      %v394 = vld [vmem:[%s337 + $0x54] sm:$0xf]
      %v395 = vld [vmem:[%s337 + $0x58] sm:$0xf]
      %v396 = vld [vmem:[%s337 + $0x5c] sm:$0xf]
      %v397 = vld [vmem:[%s337 + $0x60] sm:$0xf]
      %v398 = vld [vmem:[%s337 + $0x64] sm:$0xf]
      %v399 = vld [vmem:[%s337 + $0x68] sm:$0xf]
      %v400 = vld [vmem:[%s337 + $0x6c] sm:$0xf]
      %v401 = vld [vmem:[%s337 + $0x70] sm:$0xf]
      %v402 = vld [vmem:[%s337 + $0x74] sm:$0xf]
      %v403 = vld [vmem:[%s337 + $0x78] sm:$0xf]
      %v404 = vld [vmem:[%s337 + $0x7c] sm:$0xf]
      %v405 = vld [vmem:[%s3] sm:$0xf]
      %v406 = vld [vmem:[%s3 + $0x4] sm:$0xf]
      %v407 = vld [vmem:[%s3 + $0x8] sm:$0xf]
      %v408 = vld [vmem:[%s3 + $0xc] sm:$0xf]
      %v409 = vld [vmem:[%s3 + $0x10] sm:$0xf]
      %v410 = vld [vmem:[%s3 + $0x14] sm:$0xf]
      %v411 = vld [vmem:[%s3 + $0x18] sm:$0xf]
      %v412 = vld [vmem:[%s3 + $0x1c] sm:$0xf]
      %v413 = vld [vmem:[%s3 + $0x20] sm:$0xf]
      %v414 = vld [vmem:[%s3 + $0x24] sm:$0xf]
      %v415 = vld [vmem:[%s3 + $0x28] sm:$0xf]
      %v416 = vld [vmem:[%s3 + $0x2c] sm:$0xf]
      %v417 = vld [vmem:[%s3 + $0x30] sm:$0xf]
      %v418 = vld [vmem:[%s3 + $0x34] sm:$0xf]
      %v419 = vld [vmem:[%s3 + $0x38] sm:$0xf]
      %v420 = vld [vmem:[%s3 + $0x3c] sm:$0xf]
      %v421 = vld [vmem:[%s347] sm:$0xf]
      %v422 = vld [vmem:[%s347 + $0x4] sm:$0xf]
      %v423 = vld [vmem:[%s347 + $0x8] sm:$0xf]
      %v424 = vld [vmem:[%s347 + $0xc] sm:$0xf]
      %v425 = vld [vmem:[%s347 + $0x10] sm:$0xf]
      %v426 = vld [vmem:[%s347 + $0x14] sm:$0xf]
      %v427 = vld [vmem:[%s347 + $0x18] sm:$0xf]
      %v428 = vld [vmem:[%s347 + $0x1c] sm:$0xf]
      %v429 = vld [vmem:[%s347 + $0x20] sm:$0xf]
      %v430 = vld [vmem:[%s347 + $0x24] sm:$0xf]
      %v431 = vld [vmem:[%s347 + $0x28] sm:$0xf]
      %v432 = vld [vmem:[%s347 + $0x2c] sm:$0xf]
      %v433 = vld [vmem:[%s347 + $0x30] sm:$0xf]
      %v434 = vld [vmem:[%s347 + $0x34] sm:$0xf]
      %v435 = vld [vmem:[%s347 + $0x38] sm:$0xf]
      %v436 = vld [vmem:[%s347 + $0x3c] sm:$0xf]
      %v437 = vld [vmem:[%s347 + $0x40] sm:$0xf]
      %v438 = vld [vmem:[%s347 + $0x44] sm:$0xf]
      %v439 = vld [vmem:[%s347 + $0x48] sm:$0xf]
      %v440 = vld [vmem:[%s347 + $0x4c] sm:$0xf]
      %v441 = vld [vmem:[%s347 + $0x50] sm:$0xf]
      %v442 = vld [vmem:[%s347 + $0x54] sm:$0xf]
      %v443 = vld [vmem:[%s347 + $0x58] sm:$0xf]
      %v444 = vld [vmem:[%s347 + $0x5c] sm:$0xf]
      %v445 = vld [vmem:[%s347 + $0x60] sm:$0xf]
      %v446 = vld [vmem:[%s347 + $0x64] sm:$0xf]
      %v447 = vld [vmem:[%s347 + $0x68] sm:$0xf]
      %v448 = vld [vmem:[%s347 + $0x6c] sm:$0xf]
      %v449 = vld [vmem:[%s347 + $0x70] sm:$0xf]
      %v450 = vld [vmem:[%s347 + $0x74] sm:$0xf]
      %v451 = vld [vmem:[%s347 + $0x78] sm:$0xf]
      %v452 = vld [vmem:[%s347 + $0x7c] sm:$0xf]
      %v453 = vld [vmem:[%s3 + $0x40] sm:$0xf]
      %v454 = vld [vmem:[%s3 + $0x44] sm:$0xf]
      %v455 = vld [vmem:[%s3 + $0x48] sm:$0xf]
      %v456 = vld [vmem:[%s3 + $0x4c] sm:$0xf]
      %v457 = vld [vmem:[%s3 + $0x50] sm:$0xf]
      %v458 = vld [vmem:[%s3 + $0x54] sm:$0xf]
      %v459 = vld [vmem:[%s3 + $0x58] sm:$0xf]
      %v460 = vld [vmem:[%s3 + $0x5c] sm:$0xf]
      %v461 = vld [vmem:[%s3 + $0x60] sm:$0xf]
      %v462 = vld [vmem:[%s3 + $0x64] sm:$0xf]
      %v463 = vld [vmem:[%s3 + $0x68] sm:$0xf]
      %v464 = vld [vmem:[%s3 + $0x6c] sm:$0xf]
      %v465 = vld [vmem:[%s3 + $0x70] sm:$0xf]
      %v466 = vld [vmem:[%s3 + $0x74] sm:$0xf]
      %v467 = vld [vmem:[%s3 + $0x78] sm:$0xf]
      %v468 = vld [vmem:[%s3 + $0x7c] sm:$0xf]
      %v501 = vunpack.c.l.b16 %v421
      %v502 = vunpack.c.l.b16 %v422
      %v503 = vunpack.c.l.b16 %v423
      %v504 = vunpack.c.l.b16 %v424
      %v505 = vunpack.c.l.b16 %v425
      %v506 = vunpack.c.l.b16 %v426
      %v507 = vunpack.c.l.b16 %v427
      %v508 = vunpack.c.l.b16 %v428
      %v509 = vunpack.c.l.b16 %v429
      %v510 = vunpack.c.l.b16 %v430
      %v511 = vunpack.c.l.b16 %v431
      %v512 = vunpack.c.l.b16 %v432
      %v513 = vunpack.c.l.b16 %v433
      %v514 = vunpack.c.l.b16 %v434
      %v515 = vunpack.c.l.b16 %v435
      %v516 = vunpack.c.l.b16 %v436
      %v517 = vunpack.c.l.b16 %v437
      %v518 = vunpack.c.l.b16 %v438
      %v519 = vunpack.c.l.b16 %v439
      %v520 = vunpack.c.l.b16 %v440
      %v521 = vunpack.c.l.b16 %v441
      %v522 = vunpack.c.l.b16 %v442
      %v523 = vunpack.c.l.b16 %v443
      %v524 = vunpack.c.l.b16 %v444
      %v525 = vunpack.c.l.b16 %v445
      %v526 = vunpack.c.l.b16 %v446
      %v527 = vunpack.c.l.b16 %v447
      %v528 = vunpack.c.l.b16 %v448
      %v529 = vunpack.c.l.b16 %v449
      %v530 = vunpack.c.l.b16 %v450
      %v531 = vunpack.c.l.b16 %v451
      %v532 = vunpack.c.l.b16 %v452
      %v533 = vpack.c.b16 %v502, %v501
      %v534 = vpack.c.b16 %v504, %v503
      %v535 = vpack.c.b16 %v506, %v505
      %v536 = vpack.c.b16 %v508, %v507
      %v537 = vpack.c.b16 %v510, %v509
      %v538 = vpack.c.b16 %v512, %v511
      %v539 = vpack.c.b16 %v514, %v513
      %v540 = vpack.c.b16 %v516, %v515
      %v541 = vpack.c.b16 %v518, %v517
      %v542 = vpack.c.b16 %v520, %v519
      %v543 = vpack.c.b16 %v522, %v521
      %v544 = vpack.c.b16 %v524, %v523
      %v545 = vpack.c.b16 %v526, %v525
      %v546 = vpack.c.b16 %v528, %v527
      %v547 = vpack.c.b16 %v530, %v529
      %v548 = vpack.c.b16 %v532, %v531
      %v581 = vunpack.c.l.b16 %v453
      %v582 = vunpack.c.l.b16 %v454
      %v583 = vunpack.c.l.b16 %v455
      %v584 = vunpack.c.l.b16 %v456
      %v585 = vunpack.c.l.b16 %v457
      %v586 = vunpack.c.l.b16 %v458
      %v587 = vunpack.c.l.b16 %v459
      %v588 = vunpack.c.l.b16 %v460
      %v589 = vunpack.c.l.b16 %v461
      %v590 = vunpack.c.l.b16 %v462
      %v591 = vunpack.c.l.b16 %v463
      %v592 = vunpack.c.l.b16 %v464
      %v593 = vunpack.c.l.b16 %v465
      %v594 = vunpack.c.l.b16 %v466
      %v595 = vunpack.c.l.b16 %v467
      %v596 = vunpack.c.l.b16 %v468
      %v597 = vpack.c.b16 %v582, %v581
      %v598 = vpack.c.b16 %v584, %v583
      %v599 = vpack.c.b16 %v586, %v585
      %v600 = vpack.c.b16 %v588, %v587
      %v601 = vpack.c.b16 %v590, %v589
      %v602 = vpack.c.b16 %v592, %v591
      %v603 = vpack.c.b16 %v594, %v593
      %v604 = vpack.c.b16 %v596, %v595
      %613 = vmatprep.subr.bf16.mxu0 0
      %614 = vmatpush1.bf16.msra.mxu0 %v597
      %615 = vmatprep.subr.bf16.mxu0 0
      %616 = vmatpush1.bf16.msra.mxu0 %v598
      %617 = vmatprep.subr.bf16.mxu0 0
      %618 = vmatpush1.bf16.msra.mxu0 %v599
      %619 = vmatprep.subr.bf16.mxu0 0
      %620 = vmatpush1.bf16.msra.mxu0 %v600
      %621 = vmatprep.subr.bf16.mxu0 0
      %622 = vmatpush1.bf16.msra.mxu0 %v601
      %623 = vmatprep.subr.bf16.mxu0 0
      %624 = vmatpush1.bf16.msra.mxu0 %v602
      %625 = vmatprep.subr.bf16.mxu0 0
      %626 = vmatpush1.bf16.msra.mxu0 %v603
      %627 = vmatprep.subr.bf16.mxu0 0
      %628 = vmatpush1.bf16.msra.mxu0 %v604
      %629 = vmatprep.subr.bf16.mxu0 0
      %630 = vmatpush1.bf16.msra.mxu0 0
      %631 = vmatprep.subr.bf16.mxu0 0
      %632 = vmatpush1.bf16.msra.mxu0 0
      %633 = vmatprep.subr.bf16.mxu0 0
      %634 = vmatpush1.bf16.msra.mxu0 0
      %635 = vmatprep.subr.bf16.mxu0 0
      %636 = vmatpush1.bf16.msra.mxu0 0
      %637 = vmatprep.subr.bf16.mxu0 0
      %638 = vmatpush1.bf16.msra.mxu0 0
      %639 = vmatprep.subr.bf16.mxu0 0
      %640 = vmatpush1.bf16.msra.mxu0 0
      %641 = vmatprep.subr.bf16.mxu0 0
      %642 = vmatpush1.bf16.msra.mxu0 0
      %643 = vmatprep.subr.bf16.mxu0 0
      %644 = vmatpush1.bf16.msra.mxu0 0
      %645 = vmatprep.mubr.bf16.mxu0 0
      %646 = vmatmul.mubr.bf16.gmra.mrb[0].mxu0 %v533
      %v647 = vpop.f32.mrb[0].mxu0
      %v648 = vadd.f32 0.0, %v647
      %v649 = vpop.f32.mrb[0].mxu0
      %v650 = vpop.f32.mrb[0].mxu0
      %v651 = vadd.f32 0.0, %v650
      %v652 = vpop.f32.mrb[0].mxu0
      %653 = vmatprep.mubr.bf16.mxu0 0
      %654 = vmatmul.mubr.bf16.gmra.mrb[0].mxu0 %v534
      %v655 = vpop.f32.mrb[0].mxu0
      %v656 = vadd.f32 0.0, %v655
      %v657 = vpop.f32.mrb[0].mxu0
      %v658 = vpop.f32.mrb[0].mxu0
      %v659 = vadd.f32 0.0, %v658
      %v660 = vpop.f32.mrb[0].mxu0
      %661 = vmatprep.mubr.bf16.mxu0 0
      %662 = vmatmul.mubr.bf16.gmra.mrb[0].mxu0 %v535
      %v663 = vpop.f32.mrb[0].mxu0
      %v664 = vadd.f32 0.0, %v663
      %v665 = vpop.f32.mrb[0].mxu0
      %v666 = vpop.f32.mrb[0].mxu0
      %v667 = vadd.f32 0.0, %v666
      %v668 = vpop.f32.mrb[0].mxu0
      %669 = vmatprep.mubr.bf16.mxu0 0
      %670 = vmatmul.mubr.bf16.gmra.mrb[0].mxu0 %v536
      %v671 = vpop.f32.mrb[0].mxu0
      %v672 = vadd.f32 0.0, %v671
      %v673 = vpop.f32.mrb[0].mxu0
      %v674 = vpop.f32.mrb[0].mxu0
      %v675 = vadd.f32 0.0, %v674
      %v676 = vpop.f32.mrb[0].mxu0
      %677 = vmatprep.mubr.bf16.mxu0 0
      %678 = vmatmul.mubr.bf16.gmra.mrb[0].mxu0 %v537
      %v679 = vpop.f32.mrb[0].mxu0
      %v680 = vadd.f32 0.0, %v679
      %v681 = vpop.f32.mrb[0].mxu0
      %v682 = vpop.f32.mrb[0].mxu0
      %v683 = vadd.f32 0.0, %v682
      %v684 = vpop.f32.mrb[0].mxu0
      %685 = vmatprep.mubr.bf16.mxu0 0
      %686 = vmatmul.mubr.bf16.gmra.mrb[0].mxu0 %v538
      %v687 = vpop.f32.mrb[0].mxu0
      %v688 = vadd.f32 0.0, %v687
      %v689 = vpop.f32.mrb[0].mxu0
      %v690 = vpop.f32.mrb[0].mxu0
      %v691 = vadd.f32 0.0, %v690
      %v692 = vpop.f32.mrb[0].mxu0
      %693 = vmatprep.mubr.bf16.mxu0 0
      %694 = vmatmul.mubr.bf16.gmra.mrb[0].mxu0 %v539
      %v695 = vpop.f32.mrb[0].mxu0
      %v696 = vadd.f32 0.0, %v695
      %v697 = vpop.f32.mrb[0].mxu0
      %v698 = vpop.f32.mrb[0].mxu0
      %v699 = vadd.f32 0.0, %v698
      %v700 = vpop.f32.mrb[0].mxu0
      %701 = vmatprep.mubr.bf16.mxu0 0
      %702 = vmatmul.mubr.bf16.gmra.mrb[0].mxu0 %v540
      %v703 = vpop.f32.mrb[0].mxu0
      %v704 = vadd.f32 0.0, %v703
      %v705 = vpop.f32.mrb[0].mxu0
      %v706 = vpop.f32.mrb[0].mxu0
      %v707 = vadd.f32 0.0, %v706
      %v708 = vpop.f32.mrb[0].mxu0
      %709 = vmatprep.mubr.bf16.mxu0 0
      %710 = vmatmul.mubr.bf16.gmra.mrb[0].mxu0 %v541
      %v711 = vpop.f32.mrb[0].mxu0
      %v712 = vadd.f32 0.0, %v711
      %v713 = vpop.f32.mrb[0].mxu0
      %v714 = vpop.f32.mrb[0].mxu0
      %v715 = vadd.f32 0.0, %v714
      %v716 = vpop.f32.mrb[0].mxu0
      %717 = vmatprep.mubr.bf16.mxu0 0
      %718 = vmatmul.mubr.bf16.gmra.mrb[0].mxu0 %v542
      %v719 = vpop.f32.mrb[0].mxu0
      %v720 = vadd.f32 0.0, %v719
      %v721 = vpop.f32.mrb[0].mxu0
      %v722 = vpop.f32.mrb[0].mxu0
      %v723 = vadd.f32 0.0, %v722
      %v724 = vpop.f32.mrb[0].mxu0
      %725 = vmatprep.mubr.bf16.mxu0 0
      %726 = vmatmul.mubr.bf16.gmra.mrb[0].mxu0 %v543
      %v727 = vpop.f32.mrb[0].mxu0
      %v728 = vadd.f32 0.0, %v727
      %v729 = vpop.f32.mrb[0].mxu0
      %v730 = vpop.f32.mrb[0].mxu0
      %v731 = vadd.f32 0.0, %v730
      %v732 = vpop.f32.mrb[0].mxu0
      %733 = vmatprep.mubr.bf16.mxu0 0
      %734 = vmatmul.mubr.bf16.gmra.mrb[0].mxu0 %v544
      %v735 = vpop.f32.mrb[0].mxu0
      %v736 = vadd.f32 0.0, %v735
      %v737 = vpop.f32.mrb[0].mxu0
      %v738 = vpop.f32.mrb[0].mxu0
      %v739 = vadd.f32 0.0, %v738
      %v740 = vpop.f32.mrb[0].mxu0
      %741 = vmatprep.mubr.bf16.mxu0 0
      %742 = vmatmul.mubr.bf16.gmra.mrb[0].mxu0 %v545
      %v743 = vpop.f32.mrb[0].mxu0
      %v744 = vadd.f32 0.0, %v743
      %v745 = vpop.f32.mrb[0].mxu0
      %v746 = vpop.f32.mrb[0].mxu0
      %v747 = vadd.f32 0.0, %v746
      %v748 = vpop.f32.mrb[0].mxu0
      %749 = vmatprep.mubr.bf16.mxu0 0
      %750 = vmatmul.mubr.bf16.gmra.mrb[0].mxu0 %v546
      %v751 = vpop.f32.mrb[0].mxu0
      %v752 = vadd.f32 0.0, %v751
      %v753 = vpop.f32.mrb[0].mxu0
      %v754 = vpop.f32.mrb[0].mxu0
      %v755 = vadd.f32 0.0, %v754
      %v756 = vpop.f32.mrb[0].mxu0
      %757 = vmatprep.mubr.bf16.mxu0 0
      %758 = vmatmul.mubr.bf16.gmra.mrb[0].mxu0 %v547
      %v759 = vpop.f32.mrb[0].mxu0
      %v760 = vadd.f32 0.0, %v759
      %v761 = vpop.f32.mrb[0].mxu0
      %v762 = vpop.f32.mrb[0].mxu0
      %v763 = vadd.f32 0.0, %v762
      %v764 = vpop.f32.mrb[0].mxu0
      %765 = vmatprep.mubr.bf16.mxu0 0
      %766 = vmatmul.mubr.bf16.gmra.mrb[0].mxu0 %v548
      %v767 = vpop.f32.mrb[0].mxu0
      %v768 = vadd.f32 0.0, %v767
      %v769 = vpop.f32.mrb[0].mxu0
      %v770 = vpop.f32.mrb[0].mxu0
      %v771 = vadd.f32 0.0, %v770
      %v772 = vpop.f32.mrb[0].mxu0
      %773 = vdwg.mxu0
      %v806 = vunpack.c.l.b16 %v373
      %v807 = vunpack.c.l.b16 %v374
      %v808 = vunpack.c.l.b16 %v375
      %v809 = vunpack.c.l.b16 %v376
      %v810 = vunpack.c.l.b16 %v377
      %v811 = vunpack.c.l.b16 %v378
      %v812 = vunpack.c.l.b16 %v379
      %v813 = vunpack.c.l.b16 %v380
      %v814 = vunpack.c.l.b16 %v381
      %v815 = vunpack.c.l.b16 %v382
      %v816 = vunpack.c.l.b16 %v383
      %v817 = vunpack.c.l.b16 %v384
      %v818 = vunpack.c.l.b16 %v385
      %v819 = vunpack.c.l.b16 %v386
      %v820 = vunpack.c.l.b16 %v387
      %v821 = vunpack.c.l.b16 %v388
      %v822 = vunpack.c.l.b16 %v389
      %v823 = vunpack.c.l.b16 %v390
      %v824 = vunpack.c.l.b16 %v391
      %v825 = vunpack.c.l.b16 %v392
      %v826 = vunpack.c.l.b16 %v393
      %v827 = vunpack.c.l.b16 %v394
      %v828 = vunpack.c.l.b16 %v395
      %v829 = vunpack.c.l.b16 %v396
      %v830 = vunpack.c.l.b16 %v397
      %v831 = vunpack.c.l.b16 %v398
      %v832 = vunpack.c.l.b16 %v399
      %v833 = vunpack.c.l.b16 %v400
      %v834 = vunpack.c.l.b16 %v401
      %v835 = vunpack.c.l.b16 %v402
      %v836 = vunpack.c.l.b16 %v403
      %v837 = vunpack.c.l.b16 %v404
      %v838 = vpack.c.b16 %v807, %v806
      %v839 = vpack.c.b16 %v809, %v808
      %v840 = vpack.c.b16 %v811, %v810
      %v841 = vpack.c.b16 %v813, %v812
      %v842 = vpack.c.b16 %v815, %v814
      %v843 = vpack.c.b16 %v817, %v816
      %v844 = vpack.c.b16 %v819, %v818
      %v845 = vpack.c.b16 %v821, %v820
      %v846 = vpack.c.b16 %v823, %v822
      %v847 = vpack.c.b16 %v825, %v824
      %v848 = vpack.c.b16 %v827, %v826
      %v849 = vpack.c.b16 %v829, %v828
      %v850 = vpack.c.b16 %v831, %v830
      %v851 = vpack.c.b16 %v833, %v832
      %v852 = vpack.c.b16 %v835, %v834
      %v853 = vpack.c.b16 %v837, %v836
      %v886 = vunpack.c.l.b16 %v405
      %v887 = vunpack.c.l.b16 %v406
      %v888 = vunpack.c.l.b16 %v407
      %v889 = vunpack.c.l.b16 %v408
      %v890 = vunpack.c.l.b16 %v409
      %v891 = vunpack.c.l.b16 %v410
      %v892 = vunpack.c.l.b16 %v411
      %v893 = vunpack.c.l.b16 %v412
      %v894 = vunpack.c.l.b16 %v413
      %v895 = vunpack.c.l.b16 %v414
      %v896 = vunpack.c.l.b16 %v415
      %v897 = vunpack.c.l.b16 %v416
      %v898 = vunpack.c.l.b16 %v417
      %v899 = vunpack.c.l.b16 %v418
      %v900 = vunpack.c.l.b16 %v419
      %v901 = vunpack.c.l.b16 %v420
      %v902 = vpack.c.b16 %v887, %v886
      %v903 = vpack.c.b16 %v889, %v888
      %v904 = vpack.c.b16 %v891, %v890
      %v905 = vpack.c.b16 %v893, %v892
      %v906 = vpack.c.b16 %v895, %v894
      %v907 = vpack.c.b16 %v897, %v896
      %v908 = vpack.c.b16 %v899, %v898
      %v909 = vpack.c.b16 %v901, %v900
      %918 = vmatprep.subr.bf16.mxu0 0
      %919 = vmatpush1.bf16.msra.mxu0 %v902
      %920 = vmatprep.subr.bf16.mxu0 0
      %921 = vmatpush1.bf16.msra.mxu0 %v903
      %922 = vmatprep.subr.bf16.mxu0 0
      %923 = vmatpush1.bf16.msra.mxu0 %v904
      %924 = vmatprep.subr.bf16.mxu0 0
      %925 = vmatpush1.bf16.msra.mxu0 %v905
      %926 = vmatprep.subr.bf16.mxu0 0
      %927 = vmatpush1.bf16.msra.mxu0 %v906
      %928 = vmatprep.subr.bf16.mxu0 0
      %929 = vmatpush1.bf16.msra.mxu0 %v907
      %930 = vmatprep.subr.bf16.mxu0 0
      %931 = vmatpush1.bf16.msra.mxu0 %v908
      %932 = vmatprep.subr.bf16.mxu0 0
      %933 = vmatpush1.bf16.msra.mxu0 %v909
      %934 = vmatprep.subr.bf16.mxu0 0
      %935 = vmatpush1.bf16.msra.mxu0 0
      %936 = vmatprep.subr.bf16.mxu0 0
      %937 = vmatpush1.bf16.msra.mxu0 0
      %938 = vmatprep.subr.bf16.mxu0 0
      %939 = vmatpush1.bf16.msra.mxu0 0
      %940 = vmatprep.subr.bf16.mxu0 0
      %941 = vmatpush1.bf16.msra.mxu0 0
      %942 = vmatprep.subr.bf16.mxu0 0
      %943 = vmatpush1.bf16.msra.mxu0 0
      %944 = vmatprep.subr.bf16.mxu0 0
      %945 = vmatpush1.bf16.msra.mxu0 0
      %946 = vmatprep.subr.bf16.mxu0 0
      %947 = vmatpush1.bf16.msra.mxu0 0
      %948 = vmatprep.subr.bf16.mxu0 0
      %949 = vmatpush1.bf16.msra.mxu0 0
      %950 = vmatprep.mubr.bf16.mxu0 0
      %951 = vmatmul.mubr.bf16.gmra.mrb[0].mxu0 %v838
      %v952 = vpop.f32.mrb[0].mxu0
      %v953 = vadd.f32 %v648, %v952
      %v954 = vpop.f32.mrb[0].mxu0
      %v955 = vpop.f32.mrb[0].mxu0
      %v956 = vadd.f32 %v651, %v955
      %v957 = vpop.f32.mrb[0].mxu0
      %958 = vmatprep.mubr.bf16.mxu0 0
      %959 = vmatmul.mubr.bf16.gmra.mrb[0].mxu0 %v839
      %v960 = vpop.f32.mrb[0].mxu0
      %v961 = vadd.f32 %v656, %v960
      %v962 = vpop.f32.mrb[0].mxu0
      %v963 = vpop.f32.mrb[0].mxu0
      %v964 = vadd.f32 %v659, %v963
      %v965 = vpop.f32.mrb[0].mxu0
      %966 = vmatprep.mubr.bf16.mxu0 0
      %967 = vmatmul.mubr.bf16.gmra.mrb[0].mxu0 %v840
      %v968 = vpop.f32.mrb[0].mxu0
      %v969 = vadd.f32 %v664, %v968
      %v970 = vpop.f32.mrb[0].mxu0
      %v971 = vpop.f32.mrb[0].mxu0
      %v972 = vadd.f32 %v667, %v971
      %v973 = vpop.f32.mrb[0].mxu0
      %974 = vmatprep.mubr.bf16.mxu0 0
      %975 = vmatmul.mubr.bf16.gmra.mrb[0].mxu0 %v841
      %v976 = vpop.f32.mrb[0].mxu0
      %v977 = vadd.f32 %v672, %v976
      %v978 = vpop.f32.mrb[0].mxu0
      %v979 = vpop.f32.mrb[0].mxu0
      %v980 = vadd.f32 %v675, %v979
      %v981 = vpop.f32.mrb[0].mxu0
      %982 = vmatprep.mubr.bf16.mxu0 0
      %983 = vmatmul.mubr.bf16.gmra.mrb[0].mxu0 %v842
      %v984 = vpop.f32.mrb[0].mxu0
      %v985 = vadd.f32 %v680, %v984
      %v986 = vpop.f32.mrb[0].mxu0
      %v987 = vpop.f32.mrb[0].mxu0
      %v988 = vadd.f32 %v683, %v987
      %v989 = vpop.f32.mrb[0].mxu0
      %990 = vmatprep.mubr.bf16.mxu0 0
      %991 = vmatmul.mubr.bf16.gmra.mrb[0].mxu0 %v843
      %v992 = vpop.f32.mrb[0].mxu0
      %v993 = vadd.f32 %v688, %v992
      %v994 = vpop.f32.mrb[0].mxu0
      %v995 = vpop.f32.mrb[0].mxu0
      %v996 = vadd.f32 %v691, %v995
      %v997 = vpop.f32.mrb[0].mxu0
      %998 = vmatprep.mubr.bf16.mxu0 0
      %999 = vmatmul.mubr.bf16.gmra.mrb[0].mxu0 %v844
      %v1000 = vpop.f32.mrb[0].mxu0
      %v1001 = vadd.f32 %v696, %v1000
      %v1002 = vpop.f32.mrb[0].mxu0
      %v1003 = vpop.f32.mrb[0].mxu0
      %v1004 = vadd.f32 %v699, %v1003
      %v1005 = vpop.f32.mrb[0].mxu0
      %1006 = vmatprep.mubr.bf16.mxu0 0
      %1007 = vmatmul.mubr.bf16.gmra.mrb[0].mxu0 %v845
      %v1008 = vpop.f32.mrb[0].mxu0
      %v1009 = vadd.f32 %v704, %v1008
      %v1010 = vpop.f32.mrb[0].mxu0
      %v1011 = vpop.f32.mrb[0].mxu0
      %v1012 = vadd.f32 %v707, %v1011
      %v1013 = vpop.f32.mrb[0].mxu0
      %1014 = vmatprep.mubr.bf16.mxu0 0
      %1015 = vmatmul.mubr.bf16.gmra.mrb[0].mxu0 %v846
      %v1016 = vpop.f32.mrb[0].mxu0
      %v1017 = vadd.f32 %v712, %v1016
      %v1018 = vpop.f32.mrb[0].mxu0
      %v1019 = vpop.f32.mrb[0].mxu0
      %v1020 = vadd.f32 %v715, %v1019
      %v1021 = vpop.f32.mrb[0].mxu0
      %1022 = vmatprep.mubr.bf16.mxu0 0
      %1023 = vmatmul.mubr.bf16.gmra.mrb[0].mxu0 %v847
      %v1024 = vpop.f32.mrb[0].mxu0
      %v1025 = vadd.f32 %v720, %v1024
      %v1026 = vpop.f32.mrb[0].mxu0
      %v1027 = vpop.f32.mrb[0].mxu0
      %v1028 = vadd.f32 %v723, %v1027
      %v1029 = vpop.f32.mrb[0].mxu0
      %1030 = vmatprep.mubr.bf16.mxu0 0
      %1031 = vmatmul.mubr.bf16.gmra.mrb[0].mxu0 %v848
      %v1032 = vpop.f32.mrb[0].mxu0
      %v1033 = vadd.f32 %v728, %v1032
      %v1034 = vpop.f32.mrb[0].mxu0
      %v1035 = vpop.f32.mrb[0].mxu0
      %v1036 = vadd.f32 %v731, %v1035
      %v1037 = vpop.f32.mrb[0].mxu0
      %1038 = vmatprep.mubr.bf16.mxu0 0
      %1039 = vmatmul.mubr.bf16.gmra.mrb[0].mxu0 %v849
      %v1040 = vpop.f32.mrb[0].mxu0
      %v1041 = vadd.f32 %v736, %v1040
      %v1042 = vpop.f32.mrb[0].mxu0
      %v1043 = vpop.f32.mrb[0].mxu0
      %v1044 = vadd.f32 %v739, %v1043
      %v1045 = vpop.f32.mrb[0].mxu0
      %1046 = vmatprep.mubr.bf16.mxu0 0
      %1047 = vmatmul.mubr.bf16.gmra.mrb[0].mxu0 %v850
      %v1048 = vpop.f32.mrb[0].mxu0
      %v1049 = vadd.f32 %v744, %v1048
      %v1050 = vpop.f32.mrb[0].mxu0
      %v1051 = vpop.f32.mrb[0].mxu0
      %v1052 = vadd.f32 %v747, %v1051
      %v1053 = vpop.f32.mrb[0].mxu0
      %1054 = vmatprep.mubr.bf16.mxu0 0
      %1055 = vmatmul.mubr.bf16.gmra.mrb[0].mxu0 %v851
      %v1056 = vpop.f32.mrb[0].mxu0
      %v1057 = vadd.f32 %v752, %v1056
      %v1058 = vpop.f32.mrb[0].mxu0
      %v1059 = vpop.f32.mrb[0].mxu0
      %v1060 = vadd.f32 %v755, %v1059
      %v1061 = vpop.f32.mrb[0].mxu0
      %1062 = vmatprep.mubr.bf16.mxu0 0
      %1063 = vmatmul.mubr.bf16.gmra.mrb[0].mxu0 %v852
      %v1064 = vpop.f32.mrb[0].mxu0
      %v1065 = vadd.f32 %v760, %v1064
      %v1066 = vpop.f32.mrb[0].mxu0
      %v1067 = vpop.f32.mrb[0].mxu0
      %v1068 = vadd.f32 %v763, %v1067
      %v1069 = vpop.f32.mrb[0].mxu0
      %1070 = vmatprep.mubr.bf16.mxu0 0
      %1071 = vmatmul.mubr.bf16.gmra.mrb[0].mxu0 %v853
      %v1072 = vpop.f32.mrb[0].mxu0
      %v1073 = vadd.f32 %v768, %v1072
      %v1074 = vpop.f32.mrb[0].mxu0
      %v1075 = vpop.f32.mrb[0].mxu0
      %v1076 = vadd.f32 %v771, %v1075
      %v1077 = vpop.f32.mrb[0].mxu0
      %1078 = vdwg.mxu0
      %v1079 = vld [vmem:[%s357] sm:$0xf]
      %v1080 = vld [vmem:[%s357 + $0x4] sm:$0xf]
      %v1081 = vld [vmem:[%s357 + $0x8] sm:$0xf]
      %v1082 = vld [vmem:[%s357 + $0xc] sm:$0xf]
      %v1083 = vld [vmem:[%s357 + $0x10] sm:$0xf]
      %v1084 = vld [vmem:[%s357 + $0x14] sm:$0xf]
      %v1085 = vld [vmem:[%s357 + $0x18] sm:$0xf]
      %v1086 = vld [vmem:[%s357 + $0x1c] sm:$0xf]
      %v1087 = vld [vmem:[%s357 + $0x20] sm:$0xf]
      %v1088 = vld [vmem:[%s357 + $0x24] sm:$0xf]
      %v1089 = vld [vmem:[%s357 + $0x28] sm:$0xf]
      %v1090 = vld [vmem:[%s357 + $0x2c] sm:$0xf]
      %v1091 = vld [vmem:[%s357 + $0x30] sm:$0xf]
      %v1092 = vld [vmem:[%s357 + $0x34] sm:$0xf]
      %v1093 = vld [vmem:[%s357 + $0x38] sm:$0xf]
      %v1094 = vld [vmem:[%s357 + $0x3c] sm:$0xf]
      %v1095 = vld [vmem:[%s357 + $0x40] sm:$0xf]
      %v1096 = vld [vmem:[%s357 + $0x44] sm:$0xf]
      %v1097 = vld [vmem:[%s357 + $0x48] sm:$0xf]
      %v1098 = vld [vmem:[%s357 + $0x4c] sm:$0xf]
      %v1099 = vld [vmem:[%s357 + $0x50] sm:$0xf]
      %v1100 = vld [vmem:[%s357 + $0x54] sm:$0xf]
      %v1101 = vld [vmem:[%s357 + $0x58] sm:$0xf]
      %v1102 = vld [vmem:[%s357 + $0x5c] sm:$0xf]
      %v1103 = vld [vmem:[%s357 + $0x60] sm:$0xf]
      %v1104 = vld [vmem:[%s357 + $0x64] sm:$0xf]
      %v1105 = vld [vmem:[%s357 + $0x68] sm:$0xf]
      %v1106 = vld [vmem:[%s357 + $0x6c] sm:$0xf]
      %v1107 = vld [vmem:[%s357 + $0x70] sm:$0xf]
      %v1108 = vld [vmem:[%s357 + $0x74] sm:$0xf]
      %v1109 = vld [vmem:[%s357 + $0x78] sm:$0xf]
      %v1110 = vld [vmem:[%s357 + $0x7c] sm:$0xf]
      %v1111 = vld [vmem:[%s3 + $0x80] sm:$0xf]
      %v1112 = vld [vmem:[%s3 + $0x84] sm:$0xf]
      %v1113 = vld [vmem:[%s3 + $0x88] sm:$0xf]
      %v1114 = vld [vmem:[%s3 + $0x8c] sm:$0xf]
      %v1115 = vld [vmem:[%s3 + $0x90] sm:$0xf]
      %v1116 = vld [vmem:[%s3 + $0x94] sm:$0xf]
      %v1117 = vld [vmem:[%s3 + $0x98] sm:$0xf]
      %v1118 = vld [vmem:[%s3 + $0x9c] sm:$0xf]
      %v1119 = vld [vmem:[%s3 + $0xa0] sm:$0xf]
      %v1120 = vld [vmem:[%s3 + $0xa4] sm:$0xf]
      %v1121 = vld [vmem:[%s3 + $0xa8] sm:$0xf]
      %v1122 = vld [vmem:[%s3 + $0xac] sm:$0xf]
      %v1123 = vld [vmem:[%s3 + $0xb0] sm:$0xf]
      %v1124 = vld [vmem:[%s3 + $0xb4] sm:$0xf]
      %v1125 = vld [vmem:[%s3 + $0xb8] sm:$0xf]
      %v1126 = vld [vmem:[%s3 + $0xbc] sm:$0xf]
      %v1159 = vunpack.c.l.b16 %v1079
      %v1160 = vunpack.c.l.b16 %v1080
      %v1161 = vunpack.c.l.b16 %v1081
      %v1162 = vunpack.c.l.b16 %v1082
      %v1163 = vunpack.c.l.b16 %v1083
      %v1164 = vunpack.c.l.b16 %v1084
      %v1165 = vunpack.c.l.b16 %v1085
      %v1166 = vunpack.c.l.b16 %v1086
      %v1167 = vunpack.c.l.b16 %v1087
      %v1168 = vunpack.c.l.b16 %v1088
      %v1169 = vunpack.c.l.b16 %v1089
      %v1170 = vunpack.c.l.b16 %v1090
      %v1171 = vunpack.c.l.b16 %v1091
      %v1172 = vunpack.c.l.b16 %v1092
      %v1173 = vunpack.c.l.b16 %v1093
      %v1174 = vunpack.c.l.b16 %v1094
      %v1175 = vunpack.c.l.b16 %v1095
      %v1176 = vunpack.c.l.b16 %v1096
      %v1177 = vunpack.c.l.b16 %v1097
      %v1178 = vunpack.c.l.b16 %v1098
      %v1179 = vunpack.c.l.b16 %v1099
      %v1180 = vunpack.c.l.b16 %v1100
      %v1181 = vunpack.c.l.b16 %v1101
      %v1182 = vunpack.c.l.b16 %v1102
      %v1183 = vunpack.c.l.b16 %v1103
      %v1184 = vunpack.c.l.b16 %v1104
      %v1185 = vunpack.c.l.b16 %v1105
      %v1186 = vunpack.c.l.b16 %v1106
      %v1187 = vunpack.c.l.b16 %v1107
      %v1188 = vunpack.c.l.b16 %v1108
      %v1189 = vunpack.c.l.b16 %v1109
      %v1190 = vunpack.c.l.b16 %v1110
      %v1191 = vpack.c.b16 %v1160, %v1159
      %v1192 = vpack.c.b16 %v1162, %v1161
      %v1193 = vpack.c.b16 %v1164, %v1163
      %v1194 = vpack.c.b16 %v1166, %v1165
      %v1195 = vpack.c.b16 %v1168, %v1167
      %v1196 = vpack.c.b16 %v1170, %v1169
      %v1197 = vpack.c.b16 %v1172, %v1171
      %v1198 = vpack.c.b16 %v1174, %v1173
      %v1199 = vpack.c.b16 %v1176, %v1175
      %v1200 = vpack.c.b16 %v1178, %v1177
      %v1201 = vpack.c.b16 %v1180, %v1179
      %v1202 = vpack.c.b16 %v1182, %v1181
      %v1203 = vpack.c.b16 %v1184, %v1183
      %v1204 = vpack.c.b16 %v1186, %v1185
      %v1205 = vpack.c.b16 %v1188, %v1187
      %v1206 = vpack.c.b16 %v1190, %v1189
      %v1239 = vunpack.c.l.b16 %v1111
      %v1240 = vunpack.c.l.b16 %v1112
      %v1241 = vunpack.c.l.b16 %v1113
      %v1242 = vunpack.c.l.b16 %v1114
      %v1243 = vunpack.c.l.b16 %v1115
      %v1244 = vunpack.c.l.b16 %v1116
      %v1245 = vunpack.c.l.b16 %v1117
      %v1246 = vunpack.c.l.b16 %v1118
      %v1247 = vunpack.c.l.b16 %v1119
      %v1248 = vunpack.c.l.b16 %v1120
      %v1249 = vunpack.c.l.b16 %v1121
      %v1250 = vunpack.c.l.b16 %v1122
      %v1251 = vunpack.c.l.b16 %v1123
      %v1252 = vunpack.c.l.b16 %v1124
      %v1253 = vunpack.c.l.b16 %v1125
      %v1254 = vunpack.c.l.b16 %v1126
      %v1255 = vpack.c.b16 %v1240, %v1239
      %v1256 = vpack.c.b16 %v1242, %v1241
      %v1257 = vpack.c.b16 %v1244, %v1243
      %v1258 = vpack.c.b16 %v1246, %v1245
      %v1259 = vpack.c.b16 %v1248, %v1247
      %v1260 = vpack.c.b16 %v1250, %v1249
      %v1261 = vpack.c.b16 %v1252, %v1251
      %v1262 = vpack.c.b16 %v1254, %v1253
      %1271 = vmatprep.subr.bf16.mxu0 0
      %1272 = vmatpush1.bf16.msra.mxu0 %v1255
      %1273 = vmatprep.subr.bf16.mxu0 0
      %1274 = vmatpush1.bf16.msra.mxu0 %v1256
      %1275 = vmatprep.subr.bf16.mxu0 0
      %1276 = vmatpush1.bf16.msra.mxu0 %v1257
      %1277 = vmatprep.subr.bf16.mxu0 0
      %1278 = vmatpush1.bf16.msra.mxu0 %v1258
      %1279 = vmatprep.subr.bf16.mxu0 0
      %1280 = vmatpush1.bf16.msra.mxu0 %v1259
      %1281 = vmatprep.subr.bf16.mxu0 0
      %1282 = vmatpush1.bf16.msra.mxu0 %v1260
      %1283 = vmatprep.subr.bf16.mxu0 0
      %1284 = vmatpush1.bf16.msra.mxu0 %v1261
      %1285 = vmatprep.subr.bf16.mxu0 0
      %1286 = vmatpush1.bf16.msra.mxu0 %v1262
      %1287 = vmatprep.subr.bf16.mxu0 0
      %1288 = vmatpush1.bf16.msra.mxu0 0
      %1289 = vmatprep.subr.bf16.mxu0 0
      %1290 = vmatpush1.bf16.msra.mxu0 0
      %1291 = vmatprep.subr.bf16.mxu0 0
      %1292 = vmatpush1.bf16.msra.mxu0 0
      %1293 = vmatprep.subr.bf16.mxu0 0
      %1294 = vmatpush1.bf16.msra.mxu0 0
      %1295 = vmatprep.subr.bf16.mxu0 0
      %1296 = vmatpush1.bf16.msra.mxu0 0
      %1297 = vmatprep.subr.bf16.mxu0 0
      %1298 = vmatpush1.bf16.msra.mxu0 0
      %1299 = vmatprep.subr.bf16.mxu0 0
      %1300 = vmatpush1.bf16.msra.mxu0 0
      %1301 = vmatprep.subr.bf16.mxu0 0
      %1302 = vmatpush1.bf16.msra.mxu0 0
      %1303 = vmatprep.mubr.bf16.mxu0 0
      %1304 = vmatmul.mubr.bf16.gmra.mrb[0].mxu0 %v1191
      %v1305 = vpop.f32.mrb[0].mxu0
      %v1306 = vadd.f32 0.0, %v1305
      %v1307 = vpop.f32.mrb[0].mxu0
      %v1308 = vpop.f32.mrb[0].mxu0
      %v1309 = vadd.f32 0.0, %v1308
      %v1310 = vpop.f32.mrb[0].mxu0
      %1311 = vmatprep.mubr.bf16.mxu0 0
      %1312 = vmatmul.mubr.bf16.gmra.mrb[0].mxu0 %v1192
      %v1313 = vpop.f32.mrb[0].mxu0
      %v1314 = vadd.f32 0.0, %v1313
      %v1315 = vpop.f32.mrb[0].mxu0
      %v1316 = vpop.f32.mrb[0].mxu0
      %v1317 = vadd.f32 0.0, %v1316
      %v1318 = vpop.f32.mrb[0].mxu0
      %1319 = vmatprep.mubr.bf16.mxu0 0
      %1320 = vmatmul.mubr.bf16.gmra.mrb[0].mxu0 %v1193
      %v1321 = vpop.f32.mrb[0].mxu0
      %v1322 = vadd.f32 0.0, %v1321
      %v1323 = vpop.f32.mrb[0].mxu0
      %v1324 = vpop.f32.mrb[0].mxu0
      %v1325 = vadd.f32 0.0, %v1324
      %v1326 = vpop.f32.mrb[0].mxu0
      %1327 = vmatprep.mubr.bf16.mxu0 0
      %1328 = vmatmul.mubr.bf16.gmra.mrb[0].mxu0 %v1194
      %v1329 = vpop.f32.mrb[0].mxu0
      %v1330 = vadd.f32 0.0, %v1329
      %v1331 = vpop.f32.mrb[0].mxu0
      %v1332 = vpop.f32.mrb[0].mxu0
      %v1333 = vadd.f32 0.0, %v1332
      %v1334 = vpop.f32.mrb[0].mxu0
      %1335 = vmatprep.mubr.bf16.mxu0 0
      %1336 = vmatmul.mubr.bf16.gmra.mrb[0].mxu0 %v1195
      %v1337 = vpop.f32.mrb[0].mxu0
      %v1338 = vadd.f32 0.0, %v1337
      %v1339 = vpop.f32.mrb[0].mxu0
      %v1340 = vpop.f32.mrb[0].mxu0
      %v1341 = vadd.f32 0.0, %v1340
      %v1342 = vpop.f32.mrb[0].mxu0
      %1343 = vmatprep.mubr.bf16.mxu0 0
      %1344 = vmatmul.mubr.bf16.gmra.mrb[0].mxu0 %v1196
      %v1345 = vpop.f32.mrb[0].mxu0
      %v1346 = vadd.f32 0.0, %v1345
      %v1347 = vpop.f32.mrb[0].mxu0
      %v1348 = vpop.f32.mrb[0].mxu0
      %v1349 = vadd.f32 0.0, %v1348
      %v1350 = vpop.f32.mrb[0].mxu0
      %1351 = vmatprep.mubr.bf16.mxu0 0
      %1352 = vmatmul.mubr.bf16.gmra.mrb[0].mxu0 %v1197
      %v1353 = vpop.f32.mrb[0].mxu0
      %v1354 = vadd.f32 0.0, %v1353
      %v1355 = vpop.f32.mrb[0].mxu0
      %v1356 = vpop.f32.mrb[0].mxu0
      %v1357 = vadd.f32 0.0, %v1356
      %v1358 = vpop.f32.mrb[0].mxu0
      %1359 = vmatprep.mubr.bf16.mxu0 0
      %1360 = vmatmul.mubr.bf16.gmra.mrb[0].mxu0 %v1198
      %v1361 = vpop.f32.mrb[0].mxu0
      %v1362 = vadd.f32 0.0, %v1361
      %v1363 = vpop.f32.mrb[0].mxu0
      %v1364 = vpop.f32.mrb[0].mxu0
      %v1365 = vadd.f32 0.0, %v1364
      %v1366 = vpop.f32.mrb[0].mxu0
      %1367 = vmatprep.mubr.bf16.mxu0 0
      %1368 = vmatmul.mubr.bf16.gmra.mrb[0].mxu0 %v1199
      %v1369 = vpop.f32.mrb[0].mxu0
      %v1370 = vadd.f32 0.0, %v1369
      %v1371 = vpop.f32.mrb[0].mxu0
      %v1372 = vpop.f32.mrb[0].mxu0
      %v1373 = vadd.f32 0.0, %v1372
      %v1374 = vpop.f32.mrb[0].mxu0
      %1375 = vmatprep.mubr.bf16.mxu0 0
      %1376 = vmatmul.mubr.bf16.gmra.mrb[0].mxu0 %v1200
      %v1377 = vpop.f32.mrb[0].mxu0
      %v1378 = vadd.f32 0.0, %v1377
      %v1379 = vpop.f32.mrb[0].mxu0
      %v1380 = vpop.f32.mrb[0].mxu0
      %v1381 = vadd.f32 0.0, %v1380
      %v1382 = vpop.f32.mrb[0].mxu0
      %1383 = vmatprep.mubr.bf16.mxu0 0
      %1384 = vmatmul.mubr.bf16.gmra.mrb[0].mxu0 %v1201
      %v1385 = vpop.f32.mrb[0].mxu0
      %v1386 = vadd.f32 0.0, %v1385
      %v1387 = vpop.f32.mrb[0].mxu0
      %v1388 = vpop.f32.mrb[0].mxu0
      %v1389 = vadd.f32 0.0, %v1388
      %v1390 = vpop.f32.mrb[0].mxu0
      %1391 = vmatprep.mubr.bf16.mxu0 0
      %1392 = vmatmul.mubr.bf16.gmra.mrb[0].mxu0 %v1202
      %v1393 = vpop.f32.mrb[0].mxu0
      %v1394 = vadd.f32 0.0, %v1393
      %v1395 = vpop.f32.mrb[0].mxu0
      %v1396 = vpop.f32.mrb[0].mxu0
      %v1397 = vadd.f32 0.0, %v1396
      %v1398 = vpop.f32.mrb[0].mxu0
      %1399 = vmatprep.mubr.bf16.mxu0 0
      %1400 = vmatmul.mubr.bf16.gmra.mrb[0].mxu0 %v1203
      %v1401 = vpop.f32.mrb[0].mxu0
      %v1402 = vadd.f32 0.0, %v1401
      %v1403 = vpop.f32.mrb[0].mxu0
      %v1404 = vpop.f32.mrb[0].mxu0
      %v1405 = vadd.f32 0.0, %v1404
      %v1406 = vpop.f32.mrb[0].mxu0
      %1407 = vmatprep.mubr.bf16.mxu0 0
      %1408 = vmatmul.mubr.bf16.gmra.mrb[0].mxu0 %v1204
      %v1409 = vpop.f32.mrb[0].mxu0
      %v1410 = vadd.f32 0.0, %v1409
      %v1411 = vpop.f32.mrb[0].mxu0
      %v1412 = vpop.f32.mrb[0].mxu0
      %v1413 = vadd.f32 0.0, %v1412
      %v1414 = vpop.f32.mrb[0].mxu0
      %1415 = vmatprep.mubr.bf16.mxu0 0
      %1416 = vmatmul.mubr.bf16.gmra.mrb[0].mxu0 %v1205
      %v1417 = vpop.f32.mrb[0].mxu0
      %v1418 = vadd.f32 0.0, %v1417
      %v1419 = vpop.f32.mrb[0].mxu0
      %v1420 = vpop.f32.mrb[0].mxu0
      %v1421 = vadd.f32 0.0, %v1420
      %v1422 = vpop.f32.mrb[0].mxu0
      %1423 = vmatprep.mubr.bf16.mxu0 0
      %1424 = vmatmul.mubr.bf16.gmra.mrb[0].mxu0 %v1206
      %v1425 = vpop.f32.mrb[0].mxu0
      %v1426 = vadd.f32 0.0, %v1425
      %v1427 = vpop.f32.mrb[0].mxu0
      %v1428 = vpop.f32.mrb[0].mxu0
      %v1429 = vadd.f32 0.0, %v1428
      %v1430 = vpop.f32.mrb[0].mxu0
      %1431 = vdwg.mxu0
      %v1432 = vadd.f32 %v953, %v1306
      %v1433 = vadd.f32 %v956, %v1309
      %v1434 = vadd.f32 %v961, %v1314
      %v1435 = vadd.f32 %v964, %v1317
      %v1436 = vadd.f32 %v969, %v1322
      %v1437 = vadd.f32 %v972, %v1325
      %v1438 = vadd.f32 %v977, %v1330
      %v1439 = vadd.f32 %v980, %v1333
      %v1440 = vadd.f32 %v985, %v1338
      %v1441 = vadd.f32 %v988, %v1341
      %v1442 = vadd.f32 %v993, %v1346
      %v1443 = vadd.f32 %v996, %v1349
      %v1444 = vadd.f32 %v1001, %v1354
      %v1445 = vadd.f32 %v1004, %v1357
      %v1446 = vadd.f32 %v1009, %v1362
      %v1447 = vadd.f32 %v1012, %v1365
      %v1448 = vadd.f32 %v1017, %v1370
      %v1449 = vadd.f32 %v1020, %v1373
      %v1450 = vadd.f32 %v1025, %v1378
      %v1451 = vadd.f32 %v1028, %v1381
      %v1452 = vadd.f32 %v1033, %v1386
      %v1453 = vadd.f32 %v1036, %v1389
      %v1454 = vadd.f32 %v1041, %v1394
      %v1455 = vadd.f32 %v1044, %v1397
      %v1456 = vadd.f32 %v1049, %v1402
      %v1457 = vadd.f32 %v1052, %v1405
      %v1458 = vadd.f32 %v1057, %v1410
      %v1459 = vadd.f32 %v1060, %v1413
      %v1460 = vadd.f32 %v1065, %v1418
      %v1461 = vadd.f32 %v1068, %v1421
      %v1462 = vadd.f32 %v1073, %v1426
      %v1463 = vadd.f32 %v1076, %v1429
      %v1464 = vld [vmem:[%s4] sm:$0x1]
      %v1466 = vlaneseq
      %v1467 = vshrl.u32 %v1466, 7
      %v1468 = vsub.s32 0, %v1467
      %v1469 = vrot.slane %v1464, %v1468
      %v1471 = vadd.f32 %v1432, %v1469
      %v1472 = vadd.f32 %v1433, %v1469
      %v1473 = vadd.f32 %v1434, %v1469
      %v1474 = vadd.f32 %v1435, %v1469
      %v1475 = vadd.f32 %v1436, %v1469
      %v1476 = vadd.f32 %v1437, %v1469
      %v1477 = vadd.f32 %v1438, %v1469
      %v1478 = vadd.f32 %v1439, %v1469
      %v1479 = vadd.f32 %v1440, %v1469
      %v1480 = vadd.f32 %v1441, %v1469
      %v1481 = vadd.f32 %v1442, %v1469
      %v1482 = vadd.f32 %v1443, %v1469
      %v1483 = vadd.f32 %v1444, %v1469
      %v1484 = vadd.f32 %v1445, %v1469
      %v1485 = vadd.f32 %v1446, %v1469
      %v1486 = vadd.f32 %v1447, %v1469
      %v1487 = vadd.f32 %v1448, %v1469
      %v1488 = vadd.f32 %v1449, %v1469
      %v1489 = vadd.f32 %v1450, %v1469
      %v1490 = vadd.f32 %v1451, %v1469
      %v1491 = vadd.f32 %v1452, %v1469
      %v1492 = vadd.f32 %v1453, %v1469
      %v1493 = vadd.f32 %v1454, %v1469
      %v1494 = vadd.f32 %v1455, %v1469
      %v1495 = vadd.f32 %v1456, %v1469
      %v1496 = vadd.f32 %v1457, %v1469
      %v1497 = vadd.f32 %v1458, %v1469
      %v1498 = vadd.f32 %v1459, %v1469
      %v1499 = vadd.f32 %v1460, %v1469
      %v1500 = vadd.f32 %v1461, %v1469
      %v1501 = vadd.f32 %v1462, %v1469
      %v1502 = vadd.f32 %v1463, %v1469
      %v1503 = vxor.u32 %v1471, 2147483648
      %v1504 = vxor.u32 %v1472, 2147483648
      %v1505 = vxor.u32 %v1473, 2147483648
      %v1506 = vxor.u32 %v1474, 2147483648
      %v1507 = vxor.u32 %v1475, 2147483648
      %v1508 = vxor.u32 %v1476, 2147483648
      %v1509 = vxor.u32 %v1477, 2147483648
      %v1510 = vxor.u32 %v1478, 2147483648
      %v1511 = vxor.u32 %v1479, 2147483648
      %v1512 = vxor.u32 %v1480, 2147483648
      %v1513 = vxor.u32 %v1481, 2147483648
      %v1514 = vxor.u32 %v1482, 2147483648
      %v1515 = vxor.u32 %v1483, 2147483648
      %v1516 = vxor.u32 %v1484, 2147483648
      %v1517 = vxor.u32 %v1485, 2147483648
      %v1518 = vxor.u32 %v1486, 2147483648
      %v1519 = vxor.u32 %v1487, 2147483648
      %v1520 = vxor.u32 %v1488, 2147483648
      %v1521 = vxor.u32 %v1489, 2147483648
      %v1522 = vxor.u32 %v1490, 2147483648
      %v1523 = vxor.u32 %v1491, 2147483648
      %v1524 = vxor.u32 %v1492, 2147483648
      %v1525 = vxor.u32 %v1493, 2147483648
      %v1526 = vxor.u32 %v1494, 2147483648
      %v1527 = vxor.u32 %v1495, 2147483648
      %v1528 = vxor.u32 %v1496, 2147483648
      %v1529 = vxor.u32 %v1497, 2147483648
      %v1530 = vxor.u32 %v1498, 2147483648
      %v1531 = vxor.u32 %v1499, 2147483648
      %v1532 = vxor.u32 %v1500, 2147483648
      %v1533 = vxor.u32 %v1501, 2147483648
      %v1534 = vxor.u32 %v1502, 2147483648
      %v1535 = vmul.f32 %v1503, 1.442695
      %v1536 = vpow.pop %v1535
      %v1537 = vmul.f32 %v1504, 1.442695
      %v1538 = vpow.pop %v1537
      %v1539 = vmul.f32 %v1505, 1.442695
      %v1540 = vpow.pop %v1539
      %v1541 = vmul.f32 %v1506, 1.442695
      %v1542 = vpow.pop %v1541
      %v1543 = vmul.f32 %v1507, 1.442695
      %v1544 = vpow.pop %v1543
      %v1545 = vmul.f32 %v1508, 1.442695
      %v1546 = vpow.pop %v1545
      %v1547 = vmul.f32 %v1509, 1.442695
      %v1548 = vpow.pop %v1547
      %v1549 = vmul.f32 %v1510, 1.442695
      %v1550 = vpow.pop %v1549
      %v1551 = vmul.f32 %v1511, 1.442695
      %v1552 = vpow.pop %v1551
      %v1553 = vmul.f32 %v1512, 1.442695
      %v1554 = vpow.pop %v1553
      %v1555 = vmul.f32 %v1513, 1.442695
      %v1556 = vpow.pop %v1555
      %v1557 = vmul.f32 %v1514, 1.442695
      %v1558 = vpow.pop %v1557
      %v1559 = vmul.f32 %v1515, 1.442695
      %v1560 = vpow.pop %v1559
      %v1561 = vmul.f32 %v1516, 1.442695
      %v1562 = vpow.pop %v1561
      %v1563 = vmul.f32 %v1517, 1.442695
      %v1564 = vpow.pop %v1563
      %v1565 = vmul.f32 %v1518, 1.442695
      %v1566 = vpow.pop %v1565
      %v1567 = vmul.f32 %v1519, 1.442695
      %v1568 = vpow.pop %v1567
      %v1569 = vmul.f32 %v1520, 1.442695
      %v1570 = vpow.pop %v1569
      %v1571 = vmul.f32 %v1521, 1.442695
      %v1572 = vpow.pop %v1571
      %v1573 = vmul.f32 %v1522, 1.442695
      %v1574 = vpow.pop %v1573
      %v1575 = vmul.f32 %v1523, 1.442695
      %v1576 = vpow.pop %v1575
      %v1577 = vmul.f32 %v1524, 1.442695
      %v1578 = vpow.pop %v1577
      %v1579 = vmul.f32 %v1525, 1.442695
      %v1580 = vpow.pop %v1579
      %v1581 = vmul.f32 %v1526, 1.442695
      %v1582 = vpow.pop %v1581
      %v1583 = vmul.f32 %v1527, 1.442695
      %v1584 = vpow.pop %v1583
      %v1585 = vmul.f32 %v1528, 1.442695
      %v1586 = vpow.pop %v1585
      %v1587 = vmul.f32 %v1529, 1.442695
      %v1588 = vpow.pop %v1587
      %v1589 = vmul.f32 %v1530, 1.442695
      %v1590 = vpow.pop %v1589
      %v1591 = vmul.f32 %v1531, 1.442695
      %v1592 = vpow.pop %v1591
      %v1593 = vmul.f32 %v1532, 1.442695
      %v1594 = vpow.pop %v1593
      %v1595 = vmul.f32 %v1533, 1.442695
      %v1596 = vpow.pop %v1595
      %v1597 = vmul.f32 %v1534, 1.442695
      %v1598 = vpow.pop %v1597
      %v1599 = vadd.f32 %v1536, 1.0
      %v1600 = vadd.f32 %v1538, 1.0
      %v1601 = vadd.f32 %v1540, 1.0
      %v1602 = vadd.f32 %v1542, 1.0
      %v1603 = vadd.f32 %v1544, 1.0
      %v1604 = vadd.f32 %v1546, 1.0
      %v1605 = vadd.f32 %v1548, 1.0
      %v1606 = vadd.f32 %v1550, 1.0
      %v1607 = vadd.f32 %v1552, 1.0
      %v1608 = vadd.f32 %v1554, 1.0
      %v1609 = vadd.f32 %v1556, 1.0
      %v1610 = vadd.f32 %v1558, 1.0
      %v1611 = vadd.f32 %v1560, 1.0
      %v1612 = vadd.f32 %v1562, 1.0
      %v1613 = vadd.f32 %v1564, 1.0
      %v1614 = vadd.f32 %v1566, 1.0
      %v1615 = vadd.f32 %v1568, 1.0
      %v1616 = vadd.f32 %v1570, 1.0
      %v1617 = vadd.f32 %v1572, 1.0
      %v1618 = vadd.f32 %v1574, 1.0
      %v1619 = vadd.f32 %v1576, 1.0
      %v1620 = vadd.f32 %v1578, 1.0
      %v1621 = vadd.f32 %v1580, 1.0
      %v1622 = vadd.f32 %v1582, 1.0
      %v1623 = vadd.f32 %v1584, 1.0
      %v1624 = vadd.f32 %v1586, 1.0
      %v1625 = vadd.f32 %v1588, 1.0
      %v1626 = vadd.f32 %v1590, 1.0
      %v1627 = vadd.f32 %v1592, 1.0
      %v1628 = vadd.f32 %v1594, 1.0
      %v1629 = vadd.f32 %v1596, 1.0
      %v1630 = vadd.f32 %v1598, 1.0
      %v1631 = vrcp.pop %v1599
      %v1632 = vmul.f32 1.0, %v1631
      %v1633 = vrcp.pop %v1600
      %v1634 = vmul.f32 1.0, %v1633
      %v1635 = vrcp.pop %v1601
      %v1636 = vmul.f32 1.0, %v1635
      %v1637 = vrcp.pop %v1602
      %v1638 = vmul.f32 1.0, %v1637
      %v1639 = vrcp.pop %v1603
      %v1640 = vmul.f32 1.0, %v1639
      %v1641 = vrcp.pop %v1604
      %v1642 = vmul.f32 1.0, %v1641
      %v1643 = vrcp.pop %v1605
      %v1644 = vmul.f32 1.0, %v1643
      %v1645 = vrcp.pop %v1606
      %v1646 = vmul.f32 1.0, %v1645
      %v1647 = vrcp.pop %v1607
      %v1648 = vmul.f32 1.0, %v1647
      %v1649 = vrcp.pop %v1608
      %v1650 = vmul.f32 1.0, %v1649
      %v1651 = vrcp.pop %v1609
      %v1652 = vmul.f32 1.0, %v1651
      %v1653 = vrcp.pop %v1610
      %v1654 = vmul.f32 1.0, %v1653
      %v1655 = vrcp.pop %v1611
      %v1656 = vmul.f32 1.0, %v1655
      %v1657 = vrcp.pop %v1612
      %v1658 = vmul.f32 1.0, %v1657
      %v1659 = vrcp.pop %v1613
      %v1660 = vmul.f32 1.0, %v1659
      %v1661 = vrcp.pop %v1614
      %v1662 = vmul.f32 1.0, %v1661
      %v1663 = vrcp.pop %v1615
      %v1664 = vmul.f32 1.0, %v1663
      %v1665 = vrcp.pop %v1616
      %v1666 = vmul.f32 1.0, %v1665
      %v1667 = vrcp.pop %v1617
      %v1668 = vmul.f32 1.0, %v1667
      %v1669 = vrcp.pop %v1618
      %v1670 = vmul.f32 1.0, %v1669
      %v1671 = vrcp.pop %v1619
      %v1672 = vmul.f32 1.0, %v1671
      %v1673 = vrcp.pop %v1620
      %v1674 = vmul.f32 1.0, %v1673
      %v1675 = vrcp.pop %v1621
      %v1676 = vmul.f32 1.0, %v1675
      %v1677 = vrcp.pop %v1622
      %v1678 = vmul.f32 1.0, %v1677
      %v1679 = vrcp.pop %v1623
      %v1680 = vmul.f32 1.0, %v1679
      %v1681 = vrcp.pop %v1624
      %v1682 = vmul.f32 1.0, %v1681
      %v1683 = vrcp.pop %v1625
      %v1684 = vmul.f32 1.0, %v1683
      %v1685 = vrcp.pop %v1626
      %v1686 = vmul.f32 1.0, %v1685
      %v1687 = vrcp.pop %v1627
      %v1688 = vmul.f32 1.0, %v1687
      %v1689 = vrcp.pop %v1628
      %v1690 = vmul.f32 1.0, %v1689
      %v1691 = vrcp.pop %v1629
      %v1692 = vmul.f32 1.0, %v1691
      %v1693 = vrcp.pop %v1630
      %v1694 = vmul.f32 1.0, %v1693
      %v1695 = vmul.f32 %v1471, %v1632
      %v1696 = vmul.f32 %v1472, %v1634
      %v1697 = vmul.f32 %v1473, %v1636
      %v1698 = vmul.f32 %v1474, %v1638
      %v1699 = vmul.f32 %v1475, %v1640
      %v1700 = vmul.f32 %v1476, %v1642
      %v1701 = vmul.f32 %v1477, %v1644
      %v1702 = vmul.f32 %v1478, %v1646
      %v1703 = vmul.f32 %v1479, %v1648
      %v1704 = vmul.f32 %v1480, %v1650
      %v1705 = vmul.f32 %v1481, %v1652
      %v1706 = vmul.f32 %v1482, %v1654
      %v1707 = vmul.f32 %v1483, %v1656
      %v1708 = vmul.f32 %v1484, %v1658
      %v1709 = vmul.f32 %v1485, %v1660
      %v1710 = vmul.f32 %v1486, %v1662
      %v1711 = vmul.f32 %v1487, %v1664
      %v1712 = vmul.f32 %v1488, %v1666
      %v1713 = vmul.f32 %v1489, %v1668
      %v1714 = vmul.f32 %v1490, %v1670
      %v1715 = vmul.f32 %v1491, %v1672
      %v1716 = vmul.f32 %v1492, %v1674
      %v1717 = vmul.f32 %v1493, %v1676
      %v1718 = vmul.f32 %v1494, %v1678
      %v1719 = vmul.f32 %v1495, %v1680
      %v1720 = vmul.f32 %v1496, %v1682
      %v1721 = vmul.f32 %v1497, %v1684
      %v1722 = vmul.f32 %v1498, %v1686
      %v1723 = vmul.f32 %v1499, %v1688
      %v1724 = vmul.f32 %v1500, %v1690
      %v1725 = vmul.f32 %v1501, %v1692
      %v1726 = vmul.f32 %v1502, %v1694
      %v1727 = vpack.c.bf16 %v1696, %v1695
      %v1728 = vpack.c.bf16 %v1698, %v1697
      %v1729 = vpack.c.bf16 %v1700, %v1699
      %v1730 = vpack.c.bf16 %v1702, %v1701
      %v1731 = vpack.c.bf16 %v1704, %v1703
      %v1732 = vpack.c.bf16 %v1706, %v1705
      %v1733 = vpack.c.bf16 %v1708, %v1707
      %v1734 = vpack.c.bf16 %v1710, %v1709
      %v1735 = vpack.c.bf16 %v1712, %v1711
      %v1736 = vpack.c.bf16 %v1714, %v1713
      %v1737 = vpack.c.bf16 %v1716, %v1715
      %v1738 = vpack.c.bf16 %v1718, %v1717
      %v1739 = vpack.c.bf16 %v1720, %v1719
      %v1740 = vpack.c.bf16 %v1722, %v1721
      %v1741 = vpack.c.bf16 %v1724, %v1723
      %v1742 = vpack.c.bf16 %v1726, %v1725
      %v1759 = vunpack.c.l.b16 %v1727
      %v1760 = vunpack.c.h.b16 %v1727
      %v1761 = vunpack.c.l.b16 %v1728
      %v1762 = vunpack.c.h.b16 %v1728
      %v1763 = vunpack.c.l.b16 %v1729
      %v1764 = vunpack.c.h.b16 %v1729
      %v1765 = vunpack.c.l.b16 %v1730
      %v1766 = vunpack.c.h.b16 %v1730
      %v1767 = vunpack.c.l.b16 %v1731
      %v1768 = vunpack.c.h.b16 %v1731
      %v1769 = vunpack.c.l.b16 %v1732
      %v1770 = vunpack.c.h.b16 %v1732
      %v1771 = vunpack.c.l.b16 %v1733
      %v1772 = vunpack.c.h.b16 %v1733
      %v1773 = vunpack.c.l.b16 %v1734
      %v1774 = vunpack.c.h.b16 %v1734
      %v1775 = vunpack.c.l.b16 %v1735
      %v1776 = vunpack.c.h.b16 %v1735
      %v1777 = vunpack.c.l.b16 %v1736
      %v1778 = vunpack.c.h.b16 %v1736
      %v1779 = vunpack.c.l.b16 %v1737
      %v1780 = vunpack.c.h.b16 %v1737
      %v1781 = vunpack.c.l.b16 %v1738
      %v1782 = vunpack.c.h.b16 %v1738
      %v1783 = vunpack.c.l.b16 %v1739
      %v1784 = vunpack.c.h.b16 %v1739
      %v1785 = vunpack.c.l.b16 %v1740
      %v1786 = vunpack.c.h.b16 %v1740
      %v1787 = vunpack.c.l.b16 %v1741
      %v1788 = vunpack.c.h.b16 %v1741
      %v1789 = vunpack.c.l.b16 %v1742
      %v1790 = vunpack.c.h.b16 %v1742
      %v1791 = vpack.c.b16 %v1759, %v1759
      %v1792 = vpack.c.b16 %v1760, %v1760
      %v1793 = vpack.c.b16 %v1761, %v1761
      %v1794 = vpack.c.b16 %v1762, %v1762
      %v1795 = vpack.c.b16 %v1763, %v1763
      %v1796 = vpack.c.b16 %v1764, %v1764
      %v1797 = vpack.c.b16 %v1765, %v1765
      %v1798 = vpack.c.b16 %v1766, %v1766
      %v1799 = vpack.c.b16 %v1767, %v1767
      %v1800 = vpack.c.b16 %v1768, %v1768
      %v1801 = vpack.c.b16 %v1769, %v1769
      %v1802 = vpack.c.b16 %v1770, %v1770
      %v1803 = vpack.c.b16 %v1771, %v1771
      %v1804 = vpack.c.b16 %v1772, %v1772
      %v1805 = vpack.c.b16 %v1773, %v1773
      %v1806 = vpack.c.b16 %v1774, %v1774
      %v1807 = vpack.c.b16 %v1775, %v1775
      %v1808 = vpack.c.b16 %v1776, %v1776
      %v1809 = vpack.c.b16 %v1777, %v1777
      %v1810 = vpack.c.b16 %v1778, %v1778
      %v1811 = vpack.c.b16 %v1779, %v1779
      %v1812 = vpack.c.b16 %v1780, %v1780
      %v1813 = vpack.c.b16 %v1781, %v1781
      %v1814 = vpack.c.b16 %v1782, %v1782
      %v1815 = vpack.c.b16 %v1783, %v1783
      %v1816 = vpack.c.b16 %v1784, %v1784
      %v1817 = vpack.c.b16 %v1785, %v1785
      %v1818 = vpack.c.b16 %v1786, %v1786
      %v1819 = vpack.c.b16 %v1787, %v1787
      %v1820 = vpack.c.b16 %v1788, %v1788
      %v1821 = vpack.c.b16 %v1789, %v1789
      %v1822 = vpack.c.b16 %v1790, %v1790
      %1855 = vst [vmem:[%s367] sm:$0xf] %v1791
      %1856 = vst [vmem:[%s367 + $0x4] sm:$0xf] %v1792
      %1857 = vst [vmem:[%s367 + $0x8] sm:$0xf] %v1793
      %1858 = vst [vmem:[%s367 + $0xc] sm:$0xf] %v1794
      %1859 = vst [vmem:[%s367 + $0x10] sm:$0xf] %v1795
      %1860 = vst [vmem:[%s367 + $0x14] sm:$0xf] %v1796
      %1861 = vst [vmem:[%s367 + $0x18] sm:$0xf] %v1797
      %1862 = vst [vmem:[%s367 + $0x1c] sm:$0xf] %v1798
      %1863 = vst [vmem:[%s367 + $0x20] sm:$0xf] %v1799
      %1864 = vst [vmem:[%s367 + $0x24] sm:$0xf] %v1800
      %1865 = vst [vmem:[%s367 + $0x28] sm:$0xf] %v1801
      %1866 = vst [vmem:[%s367 + $0x2c] sm:$0xf] %v1802
      %1867 = vst [vmem:[%s367 + $0x30] sm:$0xf] %v1803
      %1868 = vst [vmem:[%s367 + $0x34] sm:$0xf] %v1804
      %1869 = vst [vmem:[%s367 + $0x38] sm:$0xf] %v1805
      %1870 = vst [vmem:[%s367 + $0x3c] sm:$0xf] %v1806
      %1871 = vst [vmem:[%s367 + $0x40] sm:$0xf] %v1807
      %1872 = vst [vmem:[%s367 + $0x44] sm:$0xf] %v1808
      %1873 = vst [vmem:[%s367 + $0x48] sm:$0xf] %v1809
      %1874 = vst [vmem:[%s367 + $0x4c] sm:$0xf] %v1810
      %1875 = vst [vmem:[%s367 + $0x50] sm:$0xf] %v1811
      %1876 = vst [vmem:[%s367 + $0x54] sm:$0xf] %v1812
      %1877 = vst [vmem:[%s367 + $0x58] sm:$0xf] %v1813
      %1878 = vst [vmem:[%s367 + $0x5c] sm:$0xf] %v1814
      %1879 = vst [vmem:[%s367 + $0x60] sm:$0xf] %v1815
      %1880 = vst [vmem:[%s367 + $0x64] sm:$0xf] %v1816
      %1881 = vst [vmem:[%s367 + $0x68] sm:$0xf] %v1817
      %1882 = vst [vmem:[%s367 + $0x6c] sm:$0xf] %v1818
      %1883 = vst [vmem:[%s367 + $0x70] sm:$0xf] %v1819
      %1884 = vst [vmem:[%s367 + $0x74] sm:$0xf] %v1820
      %1885 = vst [vmem:[%s367 + $0x78] sm:$0xf] %v1821
      %1886 = vst [vmem:[%s367 + $0x7c] sm:$0xf] %v1822
      %p1887 = scmp.eq.s32.totalorder %s23, 0
      // Predicated region
      $region41: #{elan_forward.6} parent=39 // pred_check
        %p1888 = pneg %p1887
      $region42: #{elan_forward.6} parent=39 // pred_check_branch
        %1890 = sbr.rel (%p1888) target = $region44
      $region43: #{elan_forward.6} parent=39 // pred_region
        %1891 = vst [vmem:[%s371] sm:$0x1] 0.0
      $region44: #{elan_forward.6} parent=39 // pred_fallthru
        _
      %v1892 = vld [vmem:[%s371] sm:$0x1]
      %v1893 = vadd.f32 %v1695, %v1696
      %v1894 = vadd.f32 %v1893, %v1697
      %v1895 = vadd.f32 %v1894, %v1698
      %v1896 = vadd.f32 %v1895, %v1699
      %v1897 = vadd.f32 %v1896, %v1700
      %v1898 = vadd.f32 %v1897, %v1701
      %v1899 = vadd.f32 %v1898, %v1702
      %v1900 = vadd.f32 %v1899, %v1703
      %v1901 = vadd.f32 %v1900, %v1704
      %v1902 = vadd.f32 %v1901, %v1705
      %v1903 = vadd.f32 %v1902, %v1706
      %v1904 = vadd.f32 %v1903, %v1707
      %v1905 = vadd.f32 %v1904, %v1708
      %v1906 = vadd.f32 %v1905, %v1709
      %v1907 = vadd.f32 %v1906, %v1710
      %v1908 = vadd.f32 %v1907, %v1711
      %v1909 = vadd.f32 %v1908, %v1712
      %v1910 = vadd.f32 %v1909, %v1713
      %v1911 = vadd.f32 %v1910, %v1714
      %v1912 = vadd.f32 %v1911, %v1715
      %v1913 = vadd.f32 %v1912, %v1716
      %v1914 = vadd.f32 %v1913, %v1717
      %v1915 = vadd.f32 %v1914, %v1718
      %v1916 = vadd.f32 %v1915, %v1719
      %v1917 = vadd.f32 %v1916, %v1720
      %v1918 = vadd.f32 %v1917, %v1721
      %v1919 = vadd.f32 %v1918, %v1722
      %v1920 = vadd.f32 %v1919, %v1723
      %v1921 = vadd.f32 %v1920, %v1724
      %v1922 = vadd.f32 %v1921, %v1725
      %v1923 = vadd.f32 %v1922, %v1726
      %v1924 = vrot.slane %v1923, 4
      %v1925 = vadd.f32 %v1923, %v1924
      %v1926 = vrot.slane %v1925, 2
      %v1927 = vadd.f32 %v1925, %v1926
      %v1928 = vrot.slane %v1927, 1
      %v1929 = vadd.f32 %v1927, %v1928
      %v1930 = vadd.f32 %v1892, %v1929
      %1931 = vst [vmem:[%s371] sm:$0x1] %v1930
      %s1932 = smul.u32 32, %s23
      %p1933 = scmp.lt.s32.totalorder %s22, 1
      %s1934 = scalar_select %p1933, %s22, 1
      %p1935 = scmp.lt.s32.totalorder %s1932, 31
      %s1936 = scalar_select %p1935, %s1932, 31
      %s1937 = smul.addr %s1934, 32
      %s1938 = sadd.s32 %s1936, %s1937
      %s1939 = smul.addr %s1938, 4
      %s1940 = scalar_lea.vmem %s5, %s1939
      %p1941 = scmp.lt.s32.totalorder %s22, 1
      %s1942 = scalar_select %p1941, %s22, 1
      %s1943 = scalar_lea.vmem %s6, %s1942
      // Predicated region
      $region45: #{elan_forward.6} parent=39 // pred_check
        %p1944 = pneg %p176
      $region46: #{elan_forward.6} parent=39 // pred_check_branch
        %1946 = sbr.rel (%p1944) target = $region48
      $region47: #{elan_forward.6} parent=39 // pred_region
        %s1947 = smul.u32 32, %s23
      $region48: #{elan_forward.6} parent=39 // pred_fallthru
        _
      // Predicated region
      $region49: #{elan_forward.6} parent=39 // pred_check
        %p1948 = pneg %p202
      $region50: #{elan_forward.6} parent=39 // pred_check_branch
        %1950 = sbr.rel (%p1948) target = $region52
      $region51: #{elan_forward.6} parent=39 // pred_region
        _
      $region52: #{elan_forward.6} parent=39 // pred_fallthru
        _
    $region40: #{elan_forward.6} parent=5 // pred_fallthru
      _
    %p1951 = scmp.le.s32.totalorder 2, %s13
    // Predicated region
    $region53: #{elan_forward.6} parent=5 // pred_check
      %p1952 = pneg %p1951
    $region54: #{elan_forward.6} parent=5 // pred_check_branch
      %1954 = sbr.rel (%p1952) target = $region56
    $region55: #{elan_forward.6} parent=5 // pred_region
      %s1955 = ssub.s32 %s13, 2
      // Predicated region
      $region57: #{elan_forward.6} parent=55 // pred_check
        %p1956 = pneg %p182
      $region58: #{elan_forward.6} parent=55 // pred_check_branch
        %1958 = sbr.rel (%p1956) target = $region60
      $region59: #{elan_forward.6} parent=55 // pred_region
        %s1959 = smul.u32 32, %s25
        %p1960 = scmp.lt.s32.totalorder %s24, 1
        %s1961 = scalar_select %p1960, %s24, 1
        %p1962 = scmp.lt.s32.totalorder %s1959, 31
        %s1963 = scalar_select %p1962, %s1959, 31
        %s1964 = smul.addr %s1961, 32
        %s1965 = sadd.s32 %s1963, %s1964
        %s1966 = smul.addr %s1965, 4
        %s1967 = scalar_lea.vmem %s5, %s1966
      $region60: #{elan_forward.6} parent=55 // pred_fallthru
        _
      // Predicated region
      $region61: #{elan_forward.6} parent=55 // pred_check
        %p1968 = pneg %p208
      $region62: #{elan_forward.6} parent=55 // pred_check_branch
        %1970 = sbr.rel (%p1968) target = $region64
      $region63: #{elan_forward.6} parent=55 // pred_region
        %p1971 = scmp.lt.s32.totalorder %s24, 1
        %s1972 = scalar_select %p1971, %s24, 1
        %s1973 = scalar_lea.vmem %s6, %s1972
      $region64: #{elan_forward.6} parent=55 // pred_fallthru
        _
    $region56: #{elan_forward.6} parent=5 // pred_fallthru
      _
  $region6: #{elan_forward.6} parent=0 // loop_footer
    %s17 = sadd.s32 1, %s13
  $region7: #{elan_forward.6} parent=0 // loop_footer_branch
    %12 = sbr.rel target = $region3
  $region8: #{elan_forward.6} parent=0 // loop_exit
    _

// kernel: elan_forward.4
$region0: #{elan_forward.4}
  #allocation0 [shape = 'u32[]', space=smem, size = 0x4, offset = 0x4, fixed_abs, tag = 'smem constant byte address 0x4 - core index']
  #allocation1 [shape = 'u32[144,128]{1,0:T(1,128)}', space=vmem, size = 0x12000, scoped, tag = 'internal scratch']
  %s0 = inlined_call_operand.vmem [shape: bf16[2,16,16,128], index: 0, kind: input, shape index: {}, may-alias: {0,1,2}]
  %s1 = inlined_call_operand.vmem [shape: bf16[2,16,16,128], index: 1, kind: input, shape index: {}, may-alias: {0,1,2}]
  %s2 = inlined_call_operand.vmem [shape: bf16[2,16,16,128], index: 2, kind: input, shape index: {}, may-alias: {0,1,2}]
  %s3 = inlined_call_operand.vmem [shape: bf16[1152,128], index: 3, kind: input, shape index: {}]
  %s4 = inlined_call_operand.vmem [shape: f32[1,128], index: 4, kind: input, shape index: {}]
  %s5 = inlined_call_operand.vmem [shape: bf16[2,256,128], index: 5, kind: output, shape index: {}]
  %s6 = sld [smem:[#allocation0]]
  $region53: #{elan_forward.4} parent=0
    _
  %s8 = ssub.s32 1, %s6
  %s9 = scalar_select 0, %s8, %s6
  loop: start=0, step=1, limit=4
  $region2: #{elan_forward.4} parent=0 // loop_pre_header
    _
  $region3: #{elan_forward.4} parent=0 // loop_header
    %s11 = sphi 0, %s15
    %p12 = scmp.ge.s32.totalorder %s11, 4
    %s18 = sphi 0, %s30
    %s19 = sphi 0, %s26
    %s20 = sphi 0, %s18
    %s21 = sphi 0, %s19
    %s22 = sphi 0, %s20
    %s23 = sphi 0, %s21
    %s35 = sphi 0, %s37
    %s38 = sphi 0, %s35
    %s39 = sphi 0, %s38
    %s55 = sphi 0, %s39
    %s71 = sphi 0, %s73
    %s74 = sphi 0, %s71
    %s75 = sphi 0, %s74
    %s91 = sphi 0, %s75
    %s107 = sphi 0, %s109
    %s110 = sphi 0, %s107
    %s111 = sphi 0, %s110
    %s127 = sphi 0, %s111
    %s131 = sphi 0, %s131
    %s133 = sphi 0, %s131
    %s134 = sphi 0, %s133
    %s148 = sphi 0, %s134
    %s152 = sphi 0, %s152
    %s154 = sphi 0, %s152
    %s155 = sphi 0, %s154
    %s169 = sphi 0, %s155
    %s177 = sphi 0, %s179
    %s180 = sphi 0, %s177
    %s181 = sphi 0, %s180
    %s197 = sphi 0, %s181
  $region4: #{elan_forward.4} parent=0 // loop_header_branch
    %14 = sbr.rel (%p12) target = $region8
  $region5: #{elan_forward.4} parent=0 // loop_body
    %s16 = ssub.s32 %s11, 1
    %s17 = ssub.s32 %s11, 2
    %s24 = sadd.s32 1, %s19
    %p25 = scmp.ge.s32.totalorder %s24, 1
    %s26 = scalar_select %p25, 0, %s24
    %s27 = sadd.s32 1, %s18
    %s28 = scalar_select %p25, %s27, %s18
    %p29 = scmp.ge.s32.totalorder %s28, 2
    %s30 = scalar_select %p29, 0, %s28
    %s31 = ssub.s32 %s18, %s30
    %s32 = ssub.s32 %s19, %s26
    %s33 = sor.u32 %s31, %s32
    %p34 = scmp.eq.s32.totalorder %s33, 0
    %s36 = sadd.s32 %s35, 1
    %s37 = scalar_select %p34, %s35, %s36
    %p40 = pneg %p34
    %p41 = scmp.eq.s32.totalorder %s11, 1
    %p42 = por %p40, %p41
    %p43 = scmp.ne.s32.totalorder %s35, %s38
    %p44 = scmp.eq.s32.totalorder %s11, 0
    %p45 = por %p43, %p44
    %p46 = scmp.ne.s32.totalorder %s35, %s38
    %p47 = scmp.eq.s32.totalorder %s16, 1
    %p48 = por %p46, %p47
    %p49 = scmp.ne.s32.totalorder %s38, %s39
    %p50 = scmp.eq.s32.totalorder %s16, 0
    %p51 = por %p49, %p50
    %p52 = scmp.ne.s32.totalorder %s38, %s39
    %p53 = scmp.eq.s32.totalorder %s17, 1
    %p54 = por %p52, %p53
    %p56 = scmp.ne.s32.totalorder %s39, %s55
    %p57 = scmp.eq.s32.totalorder %s17, 0
    %p58 = por %p56, %p57
    %s59 = smul.u32 %s19, 16
    %s60 = ssub.s32 %s59, 1
    %p61 = scmp.gt.s32.totalorder %s60, 0
    %s62 = scalar_select %p61, %s60, 0
    %s63 = smul.u32 %s26, 16
    %s64 = ssub.s32 %s63, 1
    %p65 = scmp.gt.s32.totalorder %s64, 0
    %s66 = scalar_select %p65, %s64, 0
    %s67 = ssub.s32 %s18, %s30
    %s68 = ssub.s32 %s62, %s66
    %s69 = sor.u32 %s67, %s68
    %p70 = scmp.eq.s32.totalorder %s69, 0
    %s72 = sadd.s32 %s71, 1
    %s73 = scalar_select %p70, %s71, %s72
    %p76 = pneg %p70
    %p77 = scmp.eq.s32.totalorder %s11, 1
    %p78 = por %p76, %p77
    %p79 = scmp.ne.s32.totalorder %s71, %s74
    %p80 = scmp.eq.s32.totalorder %s11, 0
    %p81 = por %p79, %p80
    %p82 = scmp.ne.s32.totalorder %s71, %s74
    %p83 = scmp.eq.s32.totalorder %s16, 1
    %p84 = por %p82, %p83
    %p85 = scmp.ne.s32.totalorder %s74, %s75
    %p86 = scmp.eq.s32.totalorder %s16, 0
    %p87 = por %p85, %p86
    %p88 = scmp.ne.s32.totalorder %s74, %s75
    %p89 = scmp.eq.s32.totalorder %s17, 1
    %p90 = por %p88, %p89
    %p92 = scmp.ne.s32.totalorder %s75, %s91
    %p93 = scmp.eq.s32.totalorder %s17, 0
    %p94 = por %p92, %p93
    %s95 = smul.u32 %s19, 16
    %s96 = sadd.s32 %s95, 16
    %p97 = scmp.lt.s32.totalorder %s96, 15
    %s98 = scalar_select %p97, %s96, 15
    %s99 = smul.u32 %s26, 16
    %s100 = sadd.s32 %s99, 16
    %p101 = scmp.lt.s32.totalorder %s100, 15
    %s102 = scalar_select %p101, %s100, 15
    %s103 = ssub.s32 %s18, %s30
    %s104 = ssub.s32 %s98, %s102
    %s105 = sor.u32 %s103, %s104
    %p106 = scmp.eq.s32.totalorder %s105, 0
    %s108 = sadd.s32 %s107, 1
    %s109 = scalar_select %p106, %s107, %s108
    %p112 = pneg %p106
    %p113 = scmp.eq.s32.totalorder %s11, 1
    %p114 = por %p112, %p113
    %p115 = scmp.ne.s32.totalorder %s107, %s110
    %p116 = scmp.eq.s32.totalorder %s11, 0
    %p117 = por %p115, %p116
    %p118 = scmp.ne.s32.totalorder %s107, %s110
    %p119 = scmp.eq.s32.totalorder %s16, 1
    %p120 = por %p118, %p119
    %p121 = scmp.ne.s32.totalorder %s110, %s111
    %p122 = scmp.eq.s32.totalorder %s16, 0
    %p123 = por %p121, %p122
    %p124 = scmp.ne.s32.totalorder %s110, %s111
    %p125 = scmp.eq.s32.totalorder %s17, 1
    %p126 = por %p124, %p125
    %p128 = scmp.ne.s32.totalorder %s111, %s127
    %p129 = scmp.eq.s32.totalorder %s17, 0
    %p130 = por %p128, %p129
    %s132 = sadd.s32 %s131, 1
    %p135 = scmp.eq.s32.totalorder %s11, 1
    %p136 = scmp.ne.s32.totalorder %s131, %s133
    %p137 = scmp.eq.s32.totalorder %s11, 0
    %p138 = por %p136, %p137
    %p139 = scmp.ne.s32.totalorder %s131, %s133
    %p140 = scmp.eq.s32.totalorder %s16, 1
    %p141 = por %p139, %p140
    %p142 = scmp.ne.s32.totalorder %s133, %s134
    %p143 = scmp.eq.s32.totalorder %s16, 0
    %p144 = por %p142, %p143
    %p145 = scmp.ne.s32.totalorder %s133, %s134
    %p146 = scmp.eq.s32.totalorder %s17, 1
    %p147 = por %p145, %p146
    %p149 = scmp.ne.s32.totalorder %s134, %s148
    %p150 = scmp.eq.s32.totalorder %s17, 0
    %p151 = por %p149, %p150
    %s153 = sadd.s32 %s152, 1
    %p156 = scmp.eq.s32.totalorder %s11, 1
    %p157 = scmp.ne.s32.totalorder %s152, %s154
    %p158 = scmp.eq.s32.totalorder %s11, 0
    %p159 = por %p157, %p158
    %p160 = scmp.ne.s32.totalorder %s152, %s154
    %p161 = scmp.eq.s32.totalorder %s16, 1
    %p162 = por %p160, %p161
    %p163 = scmp.ne.s32.totalorder %s154, %s155
    %p164 = scmp.eq.s32.totalorder %s16, 0
    %p165 = por %p163, %p164
    %p166 = scmp.ne.s32.totalorder %s154, %s155
    %p167 = scmp.eq.s32.totalorder %s17, 1
    %p168 = por %p166, %p167
    %p170 = scmp.ne.s32.totalorder %s155, %s169
    %p171 = scmp.eq.s32.totalorder %s17, 0
    %p172 = por %p170, %p171
    %s173 = ssub.s32 %s18, %s30
    %s174 = ssub.s32 %s19, %s26
    %s175 = sor.u32 %s173, %s174
    %p176 = scmp.eq.s32.totalorder %s175, 0
    %s178 = sadd.s32 %s177, 1
    %s179 = scalar_select %p176, %s177, %s178
    %p182 = pneg %p176
    %p183 = scmp.eq.s32.totalorder %s11, 1
    %p184 = por %p182, %p183
    %p185 = scmp.ne.s32.totalorder %s177, %s180
    %p186 = scmp.eq.s32.totalorder %s11, 0
    %p187 = por %p185, %p186
    %p188 = scmp.ne.s32.totalorder %s177, %s180
    %p189 = scmp.eq.s32.totalorder %s16, 1
    %p190 = por %p188, %p189
    %p191 = scmp.ne.s32.totalorder %s180, %s181
    %p192 = scmp.eq.s32.totalorder %s16, 0
    %p193 = por %p191, %p192
    %p194 = scmp.ne.s32.totalorder %s180, %s181
    %p195 = scmp.eq.s32.totalorder %s17, 1
    %p196 = por %p194, %p195
    %p198 = scmp.ne.s32.totalorder %s181, %s197
    %p199 = scmp.eq.s32.totalorder %s17, 0
    %p200 = por %p198, %p199
    %p201 = scmp.le.s32.totalorder 1, %s11
    %p202 = scmp.lt.s32.totalorder %s11, 3
    %p203 = pnand %p201, %p202
    %p204 = pneg %p203
    // Predicated region
    $region9: #{elan_forward.4} parent=5 // pred_check
      _
    $region10: #{elan_forward.4} parent=5 // pred_check_branch
      %206 = sbr.rel (%p203) target = $region12
    $region11: #{elan_forward.4} parent=5 // pred_region
      %s207 = ssub.s32 %s11, 1
      // Predicated region
      $region13: #{elan_forward.4} parent=11 // pred_check
        %p208 = pneg %p144
      $region14: #{elan_forward.4} parent=11 // pred_check_branch
        %210 = sbr.rel (%p208) target = $region16
      $region15: #{elan_forward.4} parent=11 // pred_region
        _
      $region16: #{elan_forward.4} parent=11 // pred_fallthru
        _
      // Predicated region
      $region17: #{elan_forward.4} parent=11 // pred_check
        %p211 = pneg %p165
      $region18: #{elan_forward.4} parent=11 // pred_check_branch
        %213 = sbr.rel (%p211) target = $region20
      $region19: #{elan_forward.4} parent=11 // pred_region
        _
      $region20: #{elan_forward.4} parent=11 // pred_fallthru
        _
    $region12: #{elan_forward.4} parent=5 // pred_fallthru
      _
    %p214 = scmp.lt.s32.totalorder %s11, 2
    // Predicated region
    $region21: #{elan_forward.4} parent=5 // pred_check
      %p215 = pneg %p214
    $region22: #{elan_forward.4} parent=5 // pred_check_branch
      %217 = sbr.rel (%p215) target = $region24
    $region23: #{elan_forward.4} parent=5 // pred_region
      // Predicated region
      $region25: #{elan_forward.4} parent=23 // pred_check
        %p218 = pneg %p45
      $region26: #{elan_forward.4} parent=23 // pred_check_branch
        %220 = sbr.rel (%p218) target = $region28
      $region27: #{elan_forward.4} parent=23 // pred_region
        %s221 = smul.u32 16, %s19
        %p222 = scmp.lt.s32.totalorder %s18, 1
        %s223 = scalar_select %p222, %s18, 1
        %p224 = scmp.lt.s32.totalorder %s221, 15
        %s225 = scalar_select %p224, %s221, 15
        %s226 = smul.addr %s225, 2
        %s227 = smul.addr %s223, 32
        %s228 = sadd.s32 %s226, %s227
        %s229 = smul.addr %s228, 4
        %s230 = scalar_lea.vmem %s0, %s229
        %s231 = smul.u32 16, %s19
      $region28: #{elan_forward.4} parent=23 // pred_fallthru
        _
      // Predicated region
      $region29: #{elan_forward.4} parent=23 // pred_check
        %p232 = pneg %p81
      $region30: #{elan_forward.4} parent=23 // pred_check_branch
        %234 = sbr.rel (%p232) target = $region32
      $region31: #{elan_forward.4} parent=23 // pred_region
        %s235 = smul.u32 %s19, 16
        %s236 = ssub.s32 %s235, 1
        %p237 = scmp.gt.s32.totalorder %s236, 0
        %s238 = scalar_select %p237, %s236, 0
        %p239 = scmp.lt.s32.totalorder %s18, 1
        %s240 = scalar_select %p239, %s18, 1
        %p241 = scmp.lt.s32.totalorder %s238, 15
        %s242 = scalar_select %p241, %s238, 15
        %s243 = smul.addr %s242, 2
        %s244 = smul.addr %s240, 32
        %s245 = sadd.s32 %s243, %s244
        %s246 = smul.addr %s245, 4
        %s247 = scalar_lea.vmem %s1, %s246
        %s248 = smul.u32 %s19, 16
        %s249 = ssub.s32 %s248, 1
        %p250 = scmp.gt.s32.totalorder %s249, 0
        %s251 = scalar_select %p250, %s249, 0
      $region32: #{elan_forward.4} parent=23 // pred_fallthru
        _
      // Predicated region
      $region33: #{elan_forward.4} parent=23 // pred_check
        %p252 = pneg %p117
      $region34: #{elan_forward.4} parent=23 // pred_check_branch
        %254 = sbr.rel (%p252) target = $region36
      $region35: #{elan_forward.4} parent=23 // pred_region
        %s255 = smul.u32 %s19, 16
        %s256 = sadd.s32 %s255, 16
        %p257 = scmp.lt.s32.totalorder %s256, 15
        %s258 = scalar_select %p257, %s256, 15
        %p259 = scmp.lt.s32.totalorder %s18, 1
        %s260 = scalar_select %p259, %s18, 1
        %p261 = scmp.lt.s32.totalorder %s258, 15
        %s262 = scalar_select %p261, %s258, 15
        %s263 = smul.addr %s262, 2
        %s264 = smul.addr %s260, 32
        %s265 = sadd.s32 %s263, %s264
        %s266 = smul.addr %s265, 4
        %s267 = scalar_lea.vmem %s2, %s266
        %s268 = smul.u32 %s19, 16
        %s269 = sadd.s32 %s268, 16
        %p270 = scmp.lt.s32.totalorder %s269, 15
        %s271 = scalar_select %p270, %s269, 15
      $region36: #{elan_forward.4} parent=23 // pred_fallthru
        _
    $region24: #{elan_forward.4} parent=5 // pred_fallthru
      _
    %p272 = scmp.le.s32.totalorder 1, %s11
    %p273 = scmp.lt.s32.totalorder %s11, 3
    %p274 = pnand %p272, %p273
    %p275 = pneg %p274
    // Predicated region
    $region37: #{elan_forward.4} parent=5 // pred_check
      _
    $region38: #{elan_forward.4} parent=5 // pred_check_branch
      %277 = sbr.rel (%p274) target = $region40
    $region39: #{elan_forward.4} parent=5 // pred_region
      %s278 = ssub.s32 %s11, 1
      %s279 = smul.u32 16, %s21
      %p280 = scmp.lt.s32.totalorder %s20, 1
      %s281 = scalar_select %p280, %s20, 1
      %p282 = scmp.lt.s32.totalorder %s279, 15
      %s283 = scalar_select %p282, %s279, 15
      %s284 = smul.addr %s283, 2
      %s285 = smul.addr %s281, 32
      %s286 = sadd.s32 %s284, %s285
      %s287 = smul.addr %s286, 4
      %s288 = scalar_lea.vmem %s0, %s287
      %p289 = pneg %p51
      %p290 = pneg %p48
      %s291 = smul.u32 %s21, 16
      %s292 = ssub.s32 %s291, 1
      %p293 = scmp.gt.s32.totalorder %s292, 0
      %s294 = scalar_select %p293, %s292, 0
      %p295 = scmp.lt.s32.totalorder %s20, 1
      %s296 = scalar_select %p295, %s20, 1
      %p297 = scmp.lt.s32.totalorder %s294, 15
      %s298 = scalar_select %p297, %s294, 15
      %s299 = smul.addr %s298, 2
      %s300 = smul.addr %s296, 32
      %s301 = sadd.s32 %s299, %s300
      %s302 = smul.addr %s301, 4
      %s303 = scalar_lea.vmem %s1, %s302
      %p304 = pneg %p87
      %p305 = pneg %p84
      %s306 = smul.u32 %s21, 16
      %s307 = sadd.s32 %s306, 16
      %p308 = scmp.lt.s32.totalorder %s307, 15
      %s309 = scalar_select %p308, %s307, 15
      %p310 = scmp.lt.s32.totalorder %s20, 1
      %s311 = scalar_select %p310, %s20, 1
      %p312 = scmp.lt.s32.totalorder %s309, 15
      %s313 = scalar_select %p312, %s309, 15
      %s314 = smul.addr %s313, 2
      %s315 = smul.addr %s311, 32
      %s316 = sadd.s32 %s314, %s315
      %s317 = smul.addr %s316, 4
      %s318 = scalar_lea.vmem %s2, %s317
      %p319 = pneg %p123
      %p320 = pneg %p120
      %p321 = pneg %p144
      %p322 = pneg %p141
      %p323 = pneg %p165
      %p324 = pneg %p162
      %p325 = pneg %p193
      %p326 = pneg %p190
      %s327 = smul.u32 32, %s21
      %p328 = scmp.lt.s32.totalorder %s20, 1
      %s329 = scalar_select %p328, %s20, 1
      %p330 = scmp.lt.s32.totalorder %s327, 31
      %s331 = scalar_select %p330, %s327, 31
      %s332 = smul.addr %s329, 32
      %s333 = sadd.s32 %s331, %s332
      %s334 = smul.addr %s333, 4
      %s335 = scalar_lea.vmem %s5, %s334
      %s336 = smul.u32 16, %s21
      %p337 = scmp.lt.s32.totalorder %s20, 1
      %s338 = scalar_select %p337, %s20, 1
      %p339 = scmp.lt.s32.totalorder %s336, 15
      %s340 = scalar_select %p339, %s336, 15
      %s341 = smul.addr %s340, 2
      %s342 = smul.addr %s338, 32
      %s343 = sadd.s32 %s341, %s342
      %s344 = smul.addr %s343, 4
      %s345 = scalar_lea.vmem %s0, %s344
      %s346 = smul.u32 16, %s21
      %s347 = smul.u32 %s21, 16
      %s348 = ssub.s32 %s347, 1
      %p349 = scmp.gt.s32.totalorder %s348, 0
      %s350 = scalar_select %p349, %s348, 0
      %p351 = scmp.lt.s32.totalorder %s20, 1
      %s352 = scalar_select %p351, %s20, 1
      %p353 = scmp.lt.s32.totalorder %s350, 15
      %s354 = scalar_select %p353, %s350, 15
      %s355 = smul.addr %s354, 2
      %s356 = smul.addr %s352, 32
      %s357 = sadd.s32 %s355, %s356
      %s358 = smul.addr %s357, 4
      %s359 = scalar_lea.vmem %s1, %s358
      %s360 = smul.u32 %s21, 16
      %s361 = ssub.s32 %s360, 1
      %p362 = scmp.gt.s32.totalorder %s361, 0
      %s363 = scalar_select %p362, %s361, 0
      %s364 = smul.u32 %s21, 16
      %s365 = sadd.s32 %s364, 16
      %p366 = scmp.lt.s32.totalorder %s365, 15
      %s367 = scalar_select %p366, %s365, 15
      %p368 = scmp.lt.s32.totalorder %s20, 1
      %s369 = scalar_select %p368, %s20, 1
      %p370 = scmp.lt.s32.totalorder %s367, 15
      %s371 = scalar_select %p370, %s367, 15
      %s372 = smul.addr %s371, 2
      %s373 = smul.addr %s369, 32
      %s374 = sadd.s32 %s372, %s373
      %s375 = smul.addr %s374, 4
      %s376 = scalar_lea.vmem %s2, %s375
      %s377 = smul.u32 %s21, 16
      %s378 = sadd.s32 %s377, 16
      %p379 = scmp.lt.s32.totalorder %s378, 15
      %s380 = scalar_select %p379, %s378, 15
      %s381 = smul.u32 32, %s21
      %p382 = scmp.lt.s32.totalorder %s20, 1
      %s383 = scalar_select %p382, %s20, 1
      %p384 = scmp.lt.s32.totalorder %s381, 31
      %s385 = scalar_select %p384, %s381, 31
      %s386 = smul.addr %s383, 32
      %s387 = sadd.s32 %s385, %s386
      %s388 = smul.addr %s387, 4
      %s389 = scalar_lea.vmem %s5, %s388
      %s390 = smul.u32 32, %s21
      %p392 = scmp.eq.s32.totalorder %s21, 0
      %v393 = vld [vmem:[%s359] sm:$0xf]
      %v394 = vld [vmem:[%s359 + $0x4] sm:$0xf]
      %s395 = scalar_select %p392, 1, 0
      %v396 = vstv %s395
      %vm397 = vcmp.eq.s32.totalorder %v396, 1
      %v398 = vsel %vm397, 0, %v393
      %v399 = vsel %vm397, 0, %v394
      %v400 = vld [vmem:[%s376] sm:$0xf]
      %v401 = vld [vmem:[%s376 + $0x4] sm:$0xf]
      %v402 = vsel %vm397, 0, %v400
      %v403 = vsel %vm397, 0, %v401
      %v404 = vld [vmem:[%s345] sm:$0xf]
      %v405 = vld [vmem:[%s345 + $0x4] sm:$0xf]
      %v406 = vld [vmem:[%s345 + $0x8] sm:$0xf]
      %v407 = vld [vmem:[%s345 + $0xc] sm:$0xf]
      %v408 = vld [vmem:[%s345 + $0x10] sm:$0xf]
      %v409 = vld [vmem:[%s345 + $0x14] sm:$0xf]
      %v410 = vld [vmem:[%s345 + $0x18] sm:$0xf]
      %v411 = vld [vmem:[%s345 + $0x1c] sm:$0xf]
      %v412 = vld [vmem:[%s345 + $0x20] sm:$0xf]
      %v413 = vld [vmem:[%s345 + $0x24] sm:$0xf]
      %v414 = vld [vmem:[%s345 + $0x28] sm:$0xf]
      %v415 = vld [vmem:[%s345 + $0x2c] sm:$0xf]
      %v416 = vld [vmem:[%s345 + $0x30] sm:$0xf]
      %v417 = vld [vmem:[%s345 + $0x34] sm:$0xf]
      %v418 = vld [vmem:[%s345 + $0x38] sm:$0xf]
      %v419 = vld [vmem:[%s345 + $0x3c] sm:$0xf]
      %v420 = vld [vmem:[%s345 + $0x40] sm:$0xf]
      %v421 = vld [vmem:[%s345 + $0x44] sm:$0xf]
      %v422 = vld [vmem:[%s345 + $0x48] sm:$0xf]
      %v423 = vld [vmem:[%s345 + $0x4c] sm:$0xf]
      %v424 = vld [vmem:[%s345 + $0x50] sm:$0xf]
      %v425 = vld [vmem:[%s345 + $0x54] sm:$0xf]
      %v426 = vld [vmem:[%s345 + $0x58] sm:$0xf]
      %v427 = vld [vmem:[%s345 + $0x5c] sm:$0xf]
      %v428 = vld [vmem:[%s345 + $0x60] sm:$0xf]
      %v429 = vld [vmem:[%s345 + $0x64] sm:$0xf]
      %v430 = vld [vmem:[%s345 + $0x68] sm:$0xf]
      %v431 = vld [vmem:[%s345 + $0x6c] sm:$0xf]
      %v432 = vld [vmem:[%s345 + $0x70] sm:$0xf]
      %v433 = vld [vmem:[%s345 + $0x74] sm:$0xf]
      %v434 = vld [vmem:[%s345 + $0x78] sm:$0xf]
      %v435 = vld [vmem:[%s345 + $0x7c] sm:$0xf]
      %v472 = vunpack.c.l.b16 %v398
      %v473 = vunpack.c.l.b16 %v399
      %v474 = vunpack.c.l.b16 %v404
      %v475 = vunpack.c.l.b16 %v405
      %v476 = vunpack.c.l.b16 %v406
      %v477 = vunpack.c.l.b16 %v407
      %v478 = vunpack.c.l.b16 %v408
      %v479 = vunpack.c.l.b16 %v409
      %v480 = vunpack.c.l.b16 %v410
      %v481 = vunpack.c.l.b16 %v411
      %v482 = vunpack.c.l.b16 %v412
      %v483 = vunpack.c.l.b16 %v413
      %v484 = vunpack.c.l.b16 %v414
      %v485 = vunpack.c.l.b16 %v415
      %v486 = vunpack.c.l.b16 %v416
      %v487 = vunpack.c.l.b16 %v417
      %v488 = vunpack.c.l.b16 %v418
      %v489 = vunpack.c.l.b16 %v419
      %v490 = vunpack.c.l.b16 %v420
      %v491 = vunpack.c.l.b16 %v421
      %v492 = vunpack.c.l.b16 %v422
      %v493 = vunpack.c.l.b16 %v423
      %v494 = vunpack.c.l.b16 %v424
      %v495 = vunpack.c.l.b16 %v425
      %v496 = vunpack.c.l.b16 %v426
      %v497 = vunpack.c.l.b16 %v427
      %v498 = vunpack.c.l.b16 %v428
      %v499 = vunpack.c.l.b16 %v429
      %v500 = vunpack.c.l.b16 %v430
      %v501 = vunpack.c.l.b16 %v431
      %v502 = vunpack.c.l.b16 %v432
      %v503 = vunpack.c.l.b16 %v433
      %v504 = vunpack.c.l.b16 %v434
      %v505 = vunpack.c.l.b16 %v435
      %v506 = vunpack.c.l.b16 %v402
      %v507 = vunpack.c.l.b16 %v403
      %v508 = vpack.c.b16 %v473, %v472
      %v509 = vpack.c.b16 %v475, %v474
      %v510 = vpack.c.b16 %v477, %v476
      %v511 = vpack.c.b16 %v479, %v478
      %v512 = vpack.c.b16 %v481, %v480
      %v513 = vpack.c.b16 %v483, %v482
      %v514 = vpack.c.b16 %v485, %v484
      %v515 = vpack.c.b16 %v487, %v486
      %v516 = vpack.c.b16 %v489, %v488
      %v517 = vpack.c.b16 %v491, %v490
      %v518 = vpack.c.b16 %v493, %v492
      %v519 = vpack.c.b16 %v495, %v494
      %v520 = vpack.c.b16 %v497, %v496
      %v521 = vpack.c.b16 %v499, %v498
      %v522 = vpack.c.b16 %v501, %v500
      %v523 = vpack.c.b16 %v503, %v502
      %v524 = vpack.c.b16 %v505, %v504
      %v525 = vpack.c.b16 %v507, %v506
      %v527 = vshrl.u32 %v508, 16
      %v529 = vrot.slane %v527, 7
      %v530 = vshll.u32 %v508, 16
      %v532 = vor.u32 %v529, %v530
      %v534 = vshrl.u32 %v509, 16
      %v536 = vrot.slane %v534, 7
      %v537 = vshll.u32 %v509, 16
      %v539 = vor.u32 %v536, %v537
      %v541 = vshrl.u32 %v510, 16
      %v543 = vrot.slane %v541, 7
      %v544 = vshll.u32 %v510, 16
      %v546 = vor.u32 %v543, %v544
      %v548 = vshrl.u32 %v511, 16
      %v550 = vrot.slane %v548, 7
      %v551 = vshll.u32 %v511, 16
      %v553 = vor.u32 %v550, %v551
      %v555 = vshrl.u32 %v512, 16
      %v557 = vrot.slane %v555, 7
      %v558 = vshll.u32 %v512, 16
      %v560 = vor.u32 %v557, %v558
      %v562 = vshrl.u32 %v513, 16
      %v564 = vrot.slane %v562, 7
      %v565 = vshll.u32 %v513, 16
      %v567 = vor.u32 %v564, %v565
      %v569 = vshrl.u32 %v514, 16
      %v571 = vrot.slane %v569, 7
      %v572 = vshll.u32 %v514, 16
      %v574 = vor.u32 %v571, %v572
      %v576 = vshrl.u32 %v515, 16
      %v578 = vrot.slane %v576, 7
      %v579 = vshll.u32 %v515, 16
      %v581 = vor.u32 %v578, %v579
      %v583 = vshrl.u32 %v516, 16
      %v585 = vrot.slane %v583, 7
      %v586 = vshll.u32 %v516, 16
      %v588 = vor.u32 %v585, %v586
      %v590 = vshrl.u32 %v517, 16
      %v592 = vrot.slane %v590, 7
      %v593 = vshll.u32 %v517, 16
      %v595 = vor.u32 %v592, %v593
      %v597 = vshrl.u32 %v518, 16
      %v599 = vrot.slane %v597, 7
      %v600 = vshll.u32 %v518, 16
      %v602 = vor.u32 %v599, %v600
      %v604 = vshrl.u32 %v519, 16
      %v606 = vrot.slane %v604, 7
      %v607 = vshll.u32 %v519, 16
      %v609 = vor.u32 %v606, %v607
      %v611 = vshrl.u32 %v520, 16
      %v613 = vrot.slane %v611, 7
      %v614 = vshll.u32 %v520, 16
      %v616 = vor.u32 %v613, %v614
      %v618 = vshrl.u32 %v521, 16
      %v620 = vrot.slane %v618, 7
      %v621 = vshll.u32 %v521, 16
      %v623 = vor.u32 %v620, %v621
      %v625 = vshrl.u32 %v522, 16
      %v627 = vrot.slane %v625, 7
      %v628 = vshll.u32 %v522, 16
      %v630 = vor.u32 %v627, %v628
      %v632 = vshrl.u32 %v523, 16
      %v634 = vrot.slane %v632, 7
      %v635 = vshll.u32 %v523, 16
      %v637 = vor.u32 %v634, %v635
      %v639 = vshrl.u32 %v524, 16
      %v641 = vrot.slane %v639, 7
      %v642 = vshll.u32 %v524, 16
      %v644 = vor.u32 %v641, %v642
      %v646 = vshrl.u32 %v525, 16
      %v648 = vrot.slane %v646, 7
      %v649 = vshll.u32 %v525, 16
      %v651 = vor.u32 %v648, %v649
      %vm688 = vcmask 1040384
      %vm689 = vsmask.f32 256
      %vm690 = vmand %vm688, %vm689
      %v691 = vsel %vm690, 0, %v532
      %v692 = vsel %vm690, 0, %v539
      %v693 = vsel %vm690, 0, %v546
      %v694 = vsel %vm690, 0, %v553
      %v695 = vsel %vm690, 0, %v560
      %v696 = vsel %vm690, 0, %v567
      %v697 = vsel %vm690, 0, %v574
      %v698 = vsel %vm690, 0, %v581
      %v699 = vsel %vm690, 0, %v588
      %v700 = vsel %vm690, 0, %v595
      %v701 = vsel %vm690, 0, %v602
      %v702 = vsel %vm690, 0, %v609
      %v703 = vsel %vm690, 0, %v616
      %v704 = vsel %vm690, 0, %v623
      %v705 = vsel %vm690, 0, %v630
      %v706 = vsel %vm690, 0, %v637
      %v707 = vsel %vm690, 0, %v644
      %v708 = vsel %vm690, 0, %v651
      %v709 = vsel %vm690, %v529, 0
      %v710 = vsel %vm690, %v536, 0
      %v711 = vsel %vm690, %v543, 0
      %v712 = vsel %vm690, %v550, 0
      %v713 = vsel %vm690, %v557, 0
      %v714 = vsel %vm690, %v564, 0
      %v715 = vsel %vm690, %v571, 0
      %v716 = vsel %vm690, %v578, 0
      %v717 = vsel %vm690, %v585, 0
      %v718 = vsel %vm690, %v592, 0
      %v719 = vsel %vm690, %v599, 0
      %v720 = vsel %vm690, %v606, 0
      %v721 = vsel %vm690, %v613, 0
      %v722 = vsel %vm690, %v620, 0
      %v723 = vsel %vm690, %v627, 0
      %v724 = vsel %vm690, %v634, 0
      %v725 = vsel %vm690, %v641, 0
      %v726 = vsel %vm690, %v648, 0
      %vm727 = vsmask.f32 7424
      %v729 = vshrl.u32 %v691, 16
      %v731 = vshll.u32 %v691, 16
      %v733 = vrot.slane %v731, 1
      %v734 = vor.u32 %v729, %v733
      %v736 = vshll.u32 %v709, 16
      %v738 = vrot.slane %v736, 1
      %v739 = vsel %vm727, %v734, %v738
      %v741 = vshrl.u32 %v692, 16
      %v743 = vshll.u32 %v692, 16
      %v745 = vrot.slane %v743, 1
      %v746 = vor.u32 %v741, %v745
      %v748 = vshll.u32 %v710, 16
      %v750 = vrot.slane %v748, 1
      %v751 = vsel %vm727, %v746, %v750
      %v753 = vshrl.u32 %v693, 16
      %v755 = vshll.u32 %v693, 16
      %v757 = vrot.slane %v755, 1
      %v758 = vor.u32 %v753, %v757
      %v760 = vshll.u32 %v711, 16
      %v762 = vrot.slane %v760, 1
      %v763 = vsel %vm727, %v758, %v762
      %v765 = vshrl.u32 %v694, 16
      %v767 = vshll.u32 %v694, 16
      %v769 = vrot.slane %v767, 1
      %v770 = vor.u32 %v765, %v769
      %v772 = vshll.u32 %v712, 16
      %v774 = vrot.slane %v772, 1
      %v775 = vsel %vm727, %v770, %v774
      %v777 = vshrl.u32 %v695, 16
      %v779 = vshll.u32 %v695, 16
      %v781 = vrot.slane %v779, 1
      %v782 = vor.u32 %v777, %v781
      %v784 = vshll.u32 %v713, 16
      %v786 = vrot.slane %v784, 1
      %v787 = vsel %vm727, %v782, %v786
      %v789 = vshrl.u32 %v696, 16
      %v791 = vshll.u32 %v696, 16
      %v793 = vrot.slane %v791, 1
      %v794 = vor.u32 %v789, %v793
      %v796 = vshll.u32 %v714, 16
      %v798 = vrot.slane %v796, 1
      %v799 = vsel %vm727, %v794, %v798
      %v801 = vshrl.u32 %v697, 16
      %v803 = vshll.u32 %v697, 16
      %v805 = vrot.slane %v803, 1
      %v806 = vor.u32 %v801, %v805
      %v808 = vshll.u32 %v715, 16
      %v810 = vrot.slane %v808, 1
      %v811 = vsel %vm727, %v806, %v810
      %v813 = vshrl.u32 %v698, 16
      %v815 = vshll.u32 %v698, 16
      %v817 = vrot.slane %v815, 1
      %v818 = vor.u32 %v813, %v817
      %v820 = vshll.u32 %v716, 16
      %v822 = vrot.slane %v820, 1
      %v823 = vsel %vm727, %v818, %v822
      %v825 = vshrl.u32 %v699, 16
      %v827 = vshll.u32 %v699, 16
      %v829 = vrot.slane %v827, 1
      %v830 = vor.u32 %v825, %v829
      %v832 = vshll.u32 %v717, 16
      %v834 = vrot.slane %v832, 1
      %v835 = vsel %vm727, %v830, %v834
      %v837 = vshrl.u32 %v700, 16
      %v839 = vshll.u32 %v700, 16
      %v841 = vrot.slane %v839, 1
      %v842 = vor.u32 %v837, %v841
      %v844 = vshll.u32 %v718, 16
      %v846 = vrot.slane %v844, 1
      %v847 = vsel %vm727, %v842, %v846
      %v849 = vshrl.u32 %v701, 16
      %v851 = vshll.u32 %v701, 16
      %v853 = vrot.slane %v851, 1
      %v854 = vor.u32 %v849, %v853
      %v856 = vshll.u32 %v719, 16
      %v858 = vrot.slane %v856, 1
      %v859 = vsel %vm727, %v854, %v858
      %v861 = vshrl.u32 %v702, 16
      %v863 = vshll.u32 %v702, 16
      %v865 = vrot.slane %v863, 1
      %v866 = vor.u32 %v861, %v865
      %v868 = vshll.u32 %v720, 16
      %v870 = vrot.slane %v868, 1
      %v871 = vsel %vm727, %v866, %v870
      %v873 = vshrl.u32 %v703, 16
      %v875 = vshll.u32 %v703, 16
      %v877 = vrot.slane %v875, 1
      %v878 = vor.u32 %v873, %v877
      %v880 = vshll.u32 %v721, 16
      %v882 = vrot.slane %v880, 1
      %v883 = vsel %vm727, %v878, %v882
      %v885 = vshrl.u32 %v704, 16
      %v887 = vshll.u32 %v704, 16
      %v889 = vrot.slane %v887, 1
      %v890 = vor.u32 %v885, %v889
      %v892 = vshll.u32 %v722, 16
      %v894 = vrot.slane %v892, 1
      %v895 = vsel %vm727, %v890, %v894
      %v897 = vshrl.u32 %v705, 16
      %v899 = vshll.u32 %v705, 16
      %v901 = vrot.slane %v899, 1
      %v902 = vor.u32 %v897, %v901
      %v904 = vshll.u32 %v723, 16
      %v906 = vrot.slane %v904, 1
      %v907 = vsel %vm727, %v902, %v906
      %v909 = vshrl.u32 %v706, 16
      %v911 = vshll.u32 %v706, 16
      %v913 = vrot.slane %v911, 1
      %v914 = vor.u32 %v909, %v913
      %v916 = vshll.u32 %v724, 16
      %v918 = vrot.slane %v916, 1
      %v919 = vsel %vm727, %v914, %v918
      %vm968 = vcmask 1046528
      %v969 = vrot.slane %v691, 1
      %v970 = vrot.slane %v709, 1
      %v971 = vsel %vm968, %v969, %v970
      %v972 = vrot.slane %v692, 1
      %v973 = vrot.slane %v710, 1
      %v974 = vsel %vm968, %v972, %v973
      %v975 = vrot.slane %v693, 1
      %v976 = vrot.slane %v711, 1
      %v977 = vsel %vm968, %v975, %v976
      %v978 = vrot.slane %v694, 1
      %v979 = vrot.slane %v712, 1
      %v980 = vsel %vm968, %v978, %v979
      %v981 = vrot.slane %v695, 1
      %v982 = vrot.slane %v713, 1
      %v983 = vsel %vm968, %v981, %v982
      %v984 = vrot.slane %v696, 1
      %v985 = vrot.slane %v714, 1
      %v986 = vsel %vm968, %v984, %v985
      %v987 = vrot.slane %v697, 1
      %v988 = vrot.slane %v715, 1
      %v989 = vsel %vm968, %v987, %v988
      %v990 = vrot.slane %v698, 1
      %v991 = vrot.slane %v716, 1
      %v992 = vsel %vm968, %v990, %v991
      %v993 = vrot.slane %v699, 1
      %v994 = vrot.slane %v717, 1
      %v995 = vsel %vm968, %v993, %v994
      %v996 = vrot.slane %v700, 1
      %v997 = vrot.slane %v718, 1
      %v998 = vsel %vm968, %v996, %v997
      %v999 = vrot.slane %v701, 1
      %v1000 = vrot.slane %v719, 1
      %v1001 = vsel %vm968, %v999, %v1000
      %v1002 = vrot.slane %v702, 1
      %v1003 = vrot.slane %v720, 1
      %v1004 = vsel %vm968, %v1002, %v1003
      %v1005 = vrot.slane %v703, 1
      %v1006 = vrot.slane %v721, 1
      %v1007 = vsel %vm968, %v1005, %v1006
      %v1008 = vrot.slane %v704, 1
      %v1009 = vrot.slane %v722, 1
      %v1010 = vsel %vm968, %v1008, %v1009
      %v1011 = vrot.slane %v705, 1
      %v1012 = vrot.slane %v723, 1
      %v1013 = vsel %vm968, %v1011, %v1012
      %v1014 = vrot.slane %v706, 1
      %v1015 = vrot.slane %v724, 1
      %v1016 = vsel %vm968, %v1014, %v1015
      %v1033 = vld [vmem:[%s3] sm:$0xf]
      %v1034 = vld [vmem:[%s3 + $0x4] sm:$0xf]
      %v1035 = vld [vmem:[%s3 + $0x8] sm:$0xf]
      %v1036 = vld [vmem:[%s3 + $0xc] sm:$0xf]
      %v1037 = vld [vmem:[%s3 + $0x10] sm:$0xf]
      %v1038 = vld [vmem:[%s3 + $0x14] sm:$0xf]
      %v1039 = vld [vmem:[%s3 + $0x18] sm:$0xf]
      %v1040 = vld [vmem:[%s3 + $0x1c] sm:$0xf]
      %v1041 = vld [vmem:[%s3 + $0x20] sm:$0xf]
      %v1042 = vld [vmem:[%s3 + $0x24] sm:$0xf]
      %v1043 = vld [vmem:[%s3 + $0x28] sm:$0xf]
      %v1044 = vld [vmem:[%s3 + $0x2c] sm:$0xf]
      %v1045 = vld [vmem:[%s3 + $0x30] sm:$0xf]
      %v1046 = vld [vmem:[%s3 + $0x34] sm:$0xf]
      %v1047 = vld [vmem:[%s3 + $0x38] sm:$0xf]
      %v1048 = vld [vmem:[%s3 + $0x3c] sm:$0xf]
      %v1049 = vld [vmem:[%s3 + $0x40] sm:$0xf]
      %v1050 = vld [vmem:[%s3 + $0x44] sm:$0xf]
      %v1051 = vld [vmem:[%s3 + $0x48] sm:$0xf]
      %v1052 = vld [vmem:[%s3 + $0x4c] sm:$0xf]
      %v1053 = vld [vmem:[%s3 + $0x50] sm:$0xf]
      %v1054 = vld [vmem:[%s3 + $0x54] sm:$0xf]
      %v1055 = vld [vmem:[%s3 + $0x58] sm:$0xf]
      %v1056 = vld [vmem:[%s3 + $0x5c] sm:$0xf]
      %v1057 = vld [vmem:[%s3 + $0x60] sm:$0xf]
      %v1058 = vld [vmem:[%s3 + $0x64] sm:$0xf]
      %v1059 = vld [vmem:[%s3 + $0x68] sm:$0xf]
      %v1060 = vld [vmem:[%s3 + $0x6c] sm:$0xf]
      %v1061 = vld [vmem:[%s3 + $0x70] sm:$0xf]
      %v1062 = vld [vmem:[%s3 + $0x74] sm:$0xf]
      %v1063 = vld [vmem:[%s3 + $0x78] sm:$0xf]
      %v1064 = vld [vmem:[%s3 + $0x7c] sm:$0xf]
      %v1065 = vld [vmem:[%s3 + $0x80] sm:$0xf]
      %v1066 = vld [vmem:[%s3 + $0x84] sm:$0xf]
      %v1067 = vld [vmem:[%s3 + $0x88] sm:$0xf]
      %v1068 = vld [vmem:[%s3 + $0x8c] sm:$0xf]
      %v1069 = vld [vmem:[%s3 + $0x90] sm:$0xf]
      %v1070 = vld [vmem:[%s3 + $0x94] sm:$0xf]
      %v1071 = vld [vmem:[%s3 + $0x98] sm:$0xf]
      %v1072 = vld [vmem:[%s3 + $0x9c] sm:$0xf]
      %v1073 = vld [vmem:[%s3 + $0xa0] sm:$0xf]
      %v1074 = vld [vmem:[%s3 + $0xa4] sm:$0xf]
      %v1075 = vld [vmem:[%s3 + $0xa8] sm:$0xf]
      %v1076 = vld [vmem:[%s3 + $0xac] sm:$0xf]
      %v1077 = vld [vmem:[%s3 + $0xb0] sm:$0xf]
      %v1078 = vld [vmem:[%s3 + $0xb4] sm:$0xf]
      %v1079 = vld [vmem:[%s3 + $0xb8] sm:$0xf]
      %v1080 = vld [vmem:[%s3 + $0xbc] sm:$0xf]
      %v1082 = vshrl.u32 %v707, 16
      %v1084 = vshll.u32 %v707, 16
      %v1086 = vrot.slane %v1084, 1
      %v1087 = vor.u32 %v1082, %v1086
      %v1089 = vshll.u32 %v725, 16
      %v1091 = vrot.slane %v1089, 1
      %v1092 = vsel %vm727, %v1087, %v1091
      %v1096 = vrot.slane %v707, 1
      %v1097 = vrot.slane %v725, 1
      %v1098 = vsel %vm968, %v1096, %v1097
      %v1100 = vld [vmem:[%s3 + $0xc0] sm:$0xf]
      %v1101 = vld [vmem:[%s3 + $0xc4] sm:$0xf]
      %v1102 = vld [vmem:[%s3 + $0xc8] sm:$0xf]
      %v1103 = vld [vmem:[%s3 + $0xcc] sm:$0xf]
      %v1104 = vld [vmem:[%s3 + $0xd0] sm:$0xf]
      %v1105 = vld [vmem:[%s3 + $0xd4] sm:$0xf]
      %v1106 = vld [vmem:[%s3 + $0xd8] sm:$0xf]
      %v1107 = vld [vmem:[%s3 + $0xdc] sm:$0xf]
      %v1108 = vld [vmem:[%s3 + $0xe0] sm:$0xf]
      %v1109 = vld [vmem:[%s3 + $0xe4] sm:$0xf]
      %v1110 = vld [vmem:[%s3 + $0xe8] sm:$0xf]
      %v1111 = vld [vmem:[%s3 + $0xec] sm:$0xf]
      %v1112 = vld [vmem:[%s3 + $0xf0] sm:$0xf]
      %v1113 = vld [vmem:[%s3 + $0xf4] sm:$0xf]
      %v1114 = vld [vmem:[%s3 + $0xf8] sm:$0xf]
      %v1115 = vld [vmem:[%s3 + $0xfc] sm:$0xf]
      %v1116 = vld [vmem:[%s3 + $0x100] sm:$0xf]
      %v1117 = vld [vmem:[%s3 + $0x104] sm:$0xf]
      %v1118 = vld [vmem:[%s3 + $0x108] sm:$0xf]
      %v1119 = vld [vmem:[%s3 + $0x10c] sm:$0xf]
      %v1120 = vld [vmem:[%s3 + $0x110] sm:$0xf]
      %v1121 = vld [vmem:[%s3 + $0x114] sm:$0xf]
      %v1122 = vld [vmem:[%s3 + $0x118] sm:$0xf]
      %v1123 = vld [vmem:[%s3 + $0x11c] sm:$0xf]
      %v1124 = vld [vmem:[%s3 + $0x120] sm:$0xf]
      %v1125 = vld [vmem:[%s3 + $0x124] sm:$0xf]
      %v1126 = vld [vmem:[%s3 + $0x128] sm:$0xf]
      %v1127 = vld [vmem:[%s3 + $0x12c] sm:$0xf]
      %v1128 = vld [vmem:[%s3 + $0x130] sm:$0xf]
      %v1129 = vld [vmem:[%s3 + $0x134] sm:$0xf]
      %v1130 = vld [vmem:[%s3 + $0x138] sm:$0xf]
      %v1131 = vld [vmem:[%s3 + $0x13c] sm:$0xf]
      %v1132 = vld [vmem:[%s3 + $0x140] sm:$0xf]
      %v1133 = vld [vmem:[%s3 + $0x144] sm:$0xf]
      %v1134 = vld [vmem:[%s3 + $0x148] sm:$0xf]
      %v1135 = vld [vmem:[%s3 + $0x14c] sm:$0xf]
      %v1136 = vld [vmem:[%s3 + $0x150] sm:$0xf]
      %v1137 = vld [vmem:[%s3 + $0x154] sm:$0xf]
      %v1138 = vld [vmem:[%s3 + $0x158] sm:$0xf]
      %v1139 = vld [vmem:[%s3 + $0x15c] sm:$0xf]
      %v1140 = vld [vmem:[%s3 + $0x160] sm:$0xf]
      %v1141 = vld [vmem:[%s3 + $0x164] sm:$0xf]
      %v1142 = vld [vmem:[%s3 + $0x168] sm:$0xf]
      %v1143 = vld [vmem:[%s3 + $0x16c] sm:$0xf]
      %v1144 = vld [vmem:[%s3 + $0x170] sm:$0xf]
      %v1145 = vld [vmem:[%s3 + $0x174] sm:$0xf]
      %v1146 = vld [vmem:[%s3 + $0x178] sm:$0xf]
      %v1147 = vld [vmem:[%s3 + $0x17c] sm:$0xf]
      %v1196 = vunpack.c.l.b16 %v1100
      %v1197 = vunpack.c.l.b16 %v1101
      %v1198 = vunpack.c.l.b16 %v1102
      %v1199 = vunpack.c.l.b16 %v1103
      %v1200 = vunpack.c.l.b16 %v1104
      %v1201 = vunpack.c.l.b16 %v1105
      %v1202 = vunpack.c.l.b16 %v1106
      %v1203 = vunpack.c.l.b16 %v1107
      %v1204 = vunpack.c.l.b16 %v1108
      %v1205 = vunpack.c.l.b16 %v1109
      %v1206 = vunpack.c.l.b16 %v1110
      %v1207 = vunpack.c.l.b16 %v1111
      %v1208 = vunpack.c.l.b16 %v1112
      %v1209 = vunpack.c.l.b16 %v1113
      %v1210 = vunpack.c.l.b16 %v1114
      %v1211 = vunpack.c.l.b16 %v1115
      %v1212 = vunpack.c.l.b16 %v1116
      %v1213 = vunpack.c.l.b16 %v1117
      %v1214 = vunpack.c.l.b16 %v1118
      %v1215 = vunpack.c.l.b16 %v1119
      %v1216 = vunpack.c.l.b16 %v1120
      %v1217 = vunpack.c.l.b16 %v1121
      %v1218 = vunpack.c.l.b16 %v1122
      %v1219 = vunpack.c.l.b16 %v1123
      %v1220 = vunpack.c.l.b16 %v1124
      %v1221 = vunpack.c.l.b16 %v1125
      %v1222 = vunpack.c.l.b16 %v1126
      %v1223 = vunpack.c.l.b16 %v1127
      %v1224 = vunpack.c.l.b16 %v1128
      %v1225 = vunpack.c.l.b16 %v1129
      %v1226 = vunpack.c.l.b16 %v1130
      %v1227 = vunpack.c.l.b16 %v1131
      %v1228 = vunpack.c.l.b16 %v1132
      %v1229 = vunpack.c.l.b16 %v1133
      %v1230 = vunpack.c.l.b16 %v1134
      %v1231 = vunpack.c.l.b16 %v1135
      %v1232 = vunpack.c.l.b16 %v1136
      %v1233 = vunpack.c.l.b16 %v1137
      %v1234 = vunpack.c.l.b16 %v1138
      %v1235 = vunpack.c.l.b16 %v1139
      %v1236 = vunpack.c.l.b16 %v1140
      %v1237 = vunpack.c.l.b16 %v1141
      %v1238 = vunpack.c.l.b16 %v1142
      %v1239 = vunpack.c.l.b16 %v1143
      %v1240 = vunpack.c.l.b16 %v1144
      %v1241 = vunpack.c.l.b16 %v1145
      %v1242 = vunpack.c.l.b16 %v1146
      %v1243 = vunpack.c.l.b16 %v1147
      %v1244 = vpack.c.b16 %v1197, %v1196
      %v1245 = vpack.c.b16 %v1199, %v1198
      %v1246 = vpack.c.b16 %v1201, %v1200
      %v1247 = vpack.c.b16 %v1203, %v1202
      %v1248 = vpack.c.b16 %v1205, %v1204
      %v1249 = vpack.c.b16 %v1207, %v1206
      %v1250 = vpack.c.b16 %v1209, %v1208
      %v1251 = vpack.c.b16 %v1211, %v1210
      %v1252 = vpack.c.b16 %v1213, %v1212
      %v1253 = vpack.c.b16 %v1215, %v1214
      %v1254 = vpack.c.b16 %v1217, %v1216
      %v1255 = vpack.c.b16 %v1219, %v1218
      %v1256 = vpack.c.b16 %v1221, %v1220
      %v1257 = vpack.c.b16 %v1223, %v1222
      %v1258 = vpack.c.b16 %v1225, %v1224
      %v1259 = vpack.c.b16 %v1227, %v1226
      %v1260 = vpack.c.b16 %v1229, %v1228
      %v1261 = vpack.c.b16 %v1231, %v1230
      %v1262 = vpack.c.b16 %v1233, %v1232
      %v1263 = vpack.c.b16 %v1235, %v1234
      %v1264 = vpack.c.b16 %v1237, %v1236
      %v1265 = vpack.c.b16 %v1239, %v1238
      %v1266 = vpack.c.b16 %v1241, %v1240
      %v1267 = vpack.c.b16 %v1243, %v1242
      %1292 = vmatprep.subr.bf16.mxu0 0
      %1293 = vmatpush1.bf16.msra.mxu0 %v1244
      %1294 = vmatprep.subr.bf16.mxu0 0
      %1295 = vmatpush1.bf16.msra.mxu0 %v1245
      %1296 = vmatprep.subr.bf16.mxu0 0
      %1297 = vmatpush1.bf16.msra.mxu0 %v1246
      %1298 = vmatprep.subr.bf16.mxu0 0
      %1299 = vmatpush1.bf16.msra.mxu0 %v1247
      %1300 = vmatprep.subr.bf16.mxu0 0
      %1301 = vmatpush1.bf16.msra.mxu0 %v1248
      %1302 = vmatprep.subr.bf16.mxu0 0
      %1303 = vmatpush1.bf16.msra.mxu0 %v1249
      %1304 = vmatprep.subr.bf16.mxu0 0
      %1305 = vmatpush1.bf16.msra.mxu0 %v1250
      %1306 = vmatprep.subr.bf16.mxu0 0
      %1307 = vmatpush1.bf16.msra.mxu0 %v1251
      %1308 = vmatprep.subr.bf16.mxu0 0
      %1309 = vmatpush1.bf16.msra.mxu0 %v1252
      %1310 = vmatprep.subr.bf16.mxu0 0
      %1311 = vmatpush1.bf16.msra.mxu0 %v1253
      %1312 = vmatprep.subr.bf16.mxu0 0
      %1313 = vmatpush1.bf16.msra.mxu0 %v1254
      %1314 = vmatprep.subr.bf16.mxu0 0
      %1315 = vmatpush1.bf16.msra.mxu0 %v1255
      %1316 = vmatprep.subr.bf16.mxu0 0
      %1317 = vmatpush1.bf16.msra.mxu0 %v1256
      %1318 = vmatprep.subr.bf16.mxu0 0
      %1319 = vmatpush1.bf16.msra.mxu0 %v1257
      %1320 = vmatprep.subr.bf16.mxu0 0
      %1321 = vmatpush1.bf16.msra.mxu0 %v1258
      %1322 = vmatprep.subr.bf16.mxu0 0
      %1323 = vmatpush1.bf16.msra.mxu0 %v1259
      %1324 = vmatprep.mubr.bf16.mxu0 %v751
      %1325 = vmatmul.mubr.bf16.gmra.mrb[0].mxu0 %v692
      %v1326 = vpop.f32.mrb[0].mxu0
      %v1327 = vadd.f32 0.0, %v1326
      %v1328 = vpop.f32.mrb[0].mxu0
      %v1329 = vpop.f32.mrb[0].mxu0
      %v1330 = vadd.f32 0.0, %v1329
      %v1331 = vpop.f32.mrb[0].mxu0
      %1332 = vmatprep.mubr.bf16.mxu0 %v763
      %1333 = vmatmul.mubr.bf16.gmra.mrb[0].mxu0 %v693
      %v1334 = vpop.f32.mrb[0].mxu0
      %v1335 = vadd.f32 0.0, %v1334
      %v1336 = vpop.f32.mrb[0].mxu0
      %v1337 = vpop.f32.mrb[0].mxu0
      %v1338 = vadd.f32 0.0, %v1337
      %v1339 = vpop.f32.mrb[0].mxu0
      %1340 = vmatprep.mubr.bf16.mxu0 %v775
      %1341 = vmatmul.mubr.bf16.gmra.mrb[0].mxu0 %v694
      %v1342 = vpop.f32.mrb[0].mxu0
      %v1343 = vadd.f32 0.0, %v1342
      %v1344 = vpop.f32.mrb[0].mxu0
      %v1345 = vpop.f32.mrb[0].mxu0
      %v1346 = vadd.f32 0.0, %v1345
      %v1347 = vpop.f32.mrb[0].mxu0
      %1348 = vmatprep.mubr.bf16.mxu0 %v787
      %1349 = vmatmul.mubr.bf16.gmra.mrb[0].mxu0 %v695
      %v1350 = vpop.f32.mrb[0].mxu0
      %v1351 = vadd.f32 0.0, %v1350
      %v1352 = vpop.f32.mrb[0].mxu0
      %v1353 = vpop.f32.mrb[0].mxu0
      %v1354 = vadd.f32 0.0, %v1353
      %v1355 = vpop.f32.mrb[0].mxu0
      %1356 = vmatprep.mubr.bf16.mxu0 %v799
      %1357 = vmatmul.mubr.bf16.gmra.mrb[0].mxu0 %v696
      %v1358 = vpop.f32.mrb[0].mxu0
      %v1359 = vadd.f32 0.0, %v1358
      %v1360 = vpop.f32.mrb[0].mxu0
      %v1361 = vpop.f32.mrb[0].mxu0
      %v1362 = vadd.f32 0.0, %v1361
      %v1363 = vpop.f32.mrb[0].mxu0
      %1364 = vmatprep.mubr.bf16.mxu0 %v811
      %1365 = vmatmul.mubr.bf16.gmra.mrb[0].mxu0 %v697
      %v1366 = vpop.f32.mrb[0].mxu0
      %v1367 = vadd.f32 0.0, %v1366
      %v1368 = vpop.f32.mrb[0].mxu0
      %v1369 = vpop.f32.mrb[0].mxu0
      %v1370 = vadd.f32 0.0, %v1369
      %v1371 = vpop.f32.mrb[0].mxu0
      %1372 = vmatprep.mubr.bf16.mxu0 %v823
      %1373 = vmatmul.mubr.bf16.gmra.mrb[0].mxu0 %v698
      %v1374 = vpop.f32.mrb[0].mxu0
      %v1375 = vadd.f32 0.0, %v1374
      %v1376 = vpop.f32.mrb[0].mxu0
      %v1377 = vpop.f32.mrb[0].mxu0
      %v1378 = vadd.f32 0.0, %v1377
      %v1379 = vpop.f32.mrb[0].mxu0
      %1380 = vmatprep.mubr.bf16.mxu0 %v835
      %1381 = vmatmul.mubr.bf16.gmra.mrb[0].mxu0 %v699
      %v1382 = vpop.f32.mrb[0].mxu0
      %v1383 = vadd.f32 0.0, %v1382
      %v1384 = vpop.f32.mrb[0].mxu0
      %v1385 = vpop.f32.mrb[0].mxu0
      %v1386 = vadd.f32 0.0, %v1385
      %v1387 = vpop.f32.mrb[0].mxu0
      %1388 = vmatprep.mubr.bf16.mxu0 %v847
      %1389 = vmatmul.mubr.bf16.gmra.mrb[0].mxu0 %v700
      %v1390 = vpop.f32.mrb[0].mxu0
      %v1391 = vadd.f32 0.0, %v1390
      %v1392 = vpop.f32.mrb[0].mxu0
      %v1393 = vpop.f32.mrb[0].mxu0
      %v1394 = vadd.f32 0.0, %v1393
      %v1395 = vpop.f32.mrb[0].mxu0
      %1396 = vmatprep.mubr.bf16.mxu0 %v859
      %1397 = vmatmul.mubr.bf16.gmra.mrb[0].mxu0 %v701
      %v1398 = vpop.f32.mrb[0].mxu0
      %v1399 = vadd.f32 0.0, %v1398
      %v1400 = vpop.f32.mrb[0].mxu0
      %v1401 = vpop.f32.mrb[0].mxu0
      %v1402 = vadd.f32 0.0, %v1401
      %v1403 = vpop.f32.mrb[0].mxu0
      %1404 = vmatprep.mubr.bf16.mxu0 %v871
      %1405 = vmatmul.mubr.bf16.gmra.mrb[0].mxu0 %v702
      %v1406 = vpop.f32.mrb[0].mxu0
      %v1407 = vadd.f32 0.0, %v1406
      %v1408 = vpop.f32.mrb[0].mxu0
      %v1409 = vpop.f32.mrb[0].mxu0
      %v1410 = vadd.f32 0.0, %v1409
      %v1411 = vpop.f32.mrb[0].mxu0
      %1412 = vmatprep.mubr.bf16.mxu0 %v883
      %1413 = vmatmul.mubr.bf16.gmra.mrb[0].mxu0 %v703
      %v1414 = vpop.f32.mrb[0].mxu0
      %v1415 = vadd.f32 0.0, %v1414
      %v1416 = vpop.f32.mrb[0].mxu0
      %v1417 = vpop.f32.mrb[0].mxu0
      %v1418 = vadd.f32 0.0, %v1417
      %v1419 = vpop.f32.mrb[0].mxu0
      %1420 = vmatprep.mubr.bf16.mxu0 %v895
      %1421 = vmatmul.mubr.bf16.gmra.mrb[0].mxu0 %v704
      %v1422 = vpop.f32.mrb[0].mxu0
      %v1423 = vadd.f32 0.0, %v1422
      %v1424 = vpop.f32.mrb[0].mxu0
      %v1425 = vpop.f32.mrb[0].mxu0
      %v1426 = vadd.f32 0.0, %v1425
      %v1427 = vpop.f32.mrb[0].mxu0
      %1428 = vmatprep.mubr.bf16.mxu0 %v907
      %1429 = vmatmul.mubr.bf16.gmra.mrb[0].mxu0 %v705
      %v1430 = vpop.f32.mrb[0].mxu0
      %v1431 = vadd.f32 0.0, %v1430
      %v1432 = vpop.f32.mrb[0].mxu0
      %v1433 = vpop.f32.mrb[0].mxu0
      %v1434 = vadd.f32 0.0, %v1433
      %v1435 = vpop.f32.mrb[0].mxu0
      %1436 = vmatprep.mubr.bf16.mxu0 %v919
      %1437 = vmatmul.mubr.bf16.gmra.mrb[0].mxu0 %v706
      %v1438 = vpop.f32.mrb[0].mxu0
      %v1439 = vadd.f32 0.0, %v1438
      %v1440 = vpop.f32.mrb[0].mxu0
      %v1441 = vpop.f32.mrb[0].mxu0
      %v1442 = vadd.f32 0.0, %v1441
      %v1443 = vpop.f32.mrb[0].mxu0
      %1444 = vmatprep.mubr.bf16.mxu0 %v1092
      %1445 = vmatmul.mubr.bf16.gmra.mrb[0].mxu0 %v707
      %v1446 = vpop.f32.mrb[0].mxu0
      %v1447 = vadd.f32 0.0, %v1446
      %v1448 = vpop.f32.mrb[0].mxu0
      %v1449 = vpop.f32.mrb[0].mxu0
      %v1450 = vadd.f32 0.0, %v1449
      %v1451 = vpop.f32.mrb[0].mxu0
      %1452 = vdwg.mxu0
      %1453 = vmatprep.subr.bf16.mxu0 0
      %1454 = vmatpush1.bf16.msra.mxu0 %v1260
      %1455 = vmatprep.subr.bf16.mxu0 0
      %1456 = vmatpush1.bf16.msra.mxu0 %v1261
      %1457 = vmatprep.subr.bf16.mxu0 0
      %1458 = vmatpush1.bf16.msra.mxu0 %v1262
      %1459 = vmatprep.subr.bf16.mxu0 0
      %1460 = vmatpush1.bf16.msra.mxu0 %v1263
      %1461 = vmatprep.subr.bf16.mxu0 0
      %1462 = vmatpush1.bf16.msra.mxu0 %v1264
      %1463 = vmatprep.subr.bf16.mxu0 0
      %1464 = vmatpush1.bf16.msra.mxu0 %v1265
      %1465 = vmatprep.subr.bf16.mxu0 0
      %1466 = vmatpush1.bf16.msra.mxu0 %v1266
      %1467 = vmatprep.subr.bf16.mxu0 0
      %1468 = vmatpush1.bf16.msra.mxu0 %v1267
      %1469 = vmatprep.subr.bf16.mxu0 0
      %1470 = vmatpush1.bf16.msra.mxu0 0
      %1471 = vmatprep.subr.bf16.mxu0 0
      %1472 = vmatpush1.bf16.msra.mxu0 0
      %1473 = vmatprep.subr.bf16.mxu0 0
      %1474 = vmatpush1.bf16.msra.mxu0 0
      %1475 = vmatprep.subr.bf16.mxu0 0
      %1476 = vmatpush1.bf16.msra.mxu0 0
      %1477 = vmatprep.subr.bf16.mxu0 0
      %1478 = vmatpush1.bf16.msra.mxu0 0
      %1479 = vmatprep.subr.bf16.mxu0 0
      %1480 = vmatpush1.bf16.msra.mxu0 0
      %1481 = vmatprep.subr.bf16.mxu0 0
      %1482 = vmatpush1.bf16.msra.mxu0 0
      %1483 = vmatprep.subr.bf16.mxu0 0
      %1484 = vmatpush1.bf16.msra.mxu0 0
      %1485 = vmatprep.mubr.bf16.mxu0 0
      %1486 = vmatmul.mubr.bf16.gmra.mrb[0].mxu0 %v974
      %v1487 = vpop.f32.mrb[0].mxu0
      %v1488 = vadd.f32 %v1327, %v1487
      %v1489 = vpop.f32.mrb[0].mxu0
      %v1490 = vpop.f32.mrb[0].mxu0
      %v1491 = vadd.f32 %v1330, %v1490
      %v1492 = vpop.f32.mrb[0].mxu0
      %1493 = vmatprep.mubr.bf16.mxu0 0
      %1494 = vmatmul.mubr.bf16.gmra.mrb[0].mxu0 %v977
      %v1495 = vpop.f32.mrb[0].mxu0
      %v1496 = vadd.f32 %v1335, %v1495
      %v1497 = vpop.f32.mrb[0].mxu0
      %v1498 = vpop.f32.mrb[0].mxu0
      %v1499 = vadd.f32 %v1338, %v1498
      %v1500 = vpop.f32.mrb[0].mxu0
      %1501 = vmatprep.mubr.bf16.mxu0 0
      %1502 = vmatmul.mubr.bf16.gmra.mrb[0].mxu0 %v980
      %v1503 = vpop.f32.mrb[0].mxu0
      %v1504 = vadd.f32 %v1343, %v1503
      %v1505 = vpop.f32.mrb[0].mxu0
      %v1506 = vpop.f32.mrb[0].mxu0
      %v1507 = vadd.f32 %v1346, %v1506
      %v1508 = vpop.f32.mrb[0].mxu0
      %1509 = vmatprep.mubr.bf16.mxu0 0
      %1510 = vmatmul.mubr.bf16.gmra.mrb[0].mxu0 %v983
      %v1511 = vpop.f32.mrb[0].mxu0
      %v1512 = vadd.f32 %v1351, %v1511
      %v1513 = vpop.f32.mrb[0].mxu0
      %v1514 = vpop.f32.mrb[0].mxu0
      %v1515 = vadd.f32 %v1354, %v1514
      %v1516 = vpop.f32.mrb[0].mxu0
      %1517 = vmatprep.mubr.bf16.mxu0 0
      %1518 = vmatmul.mubr.bf16.gmra.mrb[0].mxu0 %v986
      %v1519 = vpop.f32.mrb[0].mxu0
      %v1520 = vadd.f32 %v1359, %v1519
      %v1521 = vpop.f32.mrb[0].mxu0
      %v1522 = vpop.f32.mrb[0].mxu0
      %v1523 = vadd.f32 %v1362, %v1522
      %v1524 = vpop.f32.mrb[0].mxu0
      %1525 = vmatprep.mubr.bf16.mxu0 0
      %1526 = vmatmul.mubr.bf16.gmra.mrb[0].mxu0 %v989
      %v1527 = vpop.f32.mrb[0].mxu0
      %v1528 = vadd.f32 %v1367, %v1527
      %v1529 = vpop.f32.mrb[0].mxu0
      %v1530 = vpop.f32.mrb[0].mxu0
      %v1531 = vadd.f32 %v1370, %v1530
      %v1532 = vpop.f32.mrb[0].mxu0
      %1533 = vmatprep.mubr.bf16.mxu0 0
      %1534 = vmatmul.mubr.bf16.gmra.mrb[0].mxu0 %v992
      %v1535 = vpop.f32.mrb[0].mxu0
      %v1536 = vadd.f32 %v1375, %v1535
      %v1537 = vpop.f32.mrb[0].mxu0
      %v1538 = vpop.f32.mrb[0].mxu0
      %v1539 = vadd.f32 %v1378, %v1538
      %v1540 = vpop.f32.mrb[0].mxu0
      %1541 = vmatprep.mubr.bf16.mxu0 0
      %1542 = vmatmul.mubr.bf16.gmra.mrb[0].mxu0 %v995
      %v1543 = vpop.f32.mrb[0].mxu0
      %v1544 = vadd.f32 %v1383, %v1543
      %v1545 = vpop.f32.mrb[0].mxu0
      %v1546 = vpop.f32.mrb[0].mxu0
      %v1547 = vadd.f32 %v1386, %v1546
      %v1548 = vpop.f32.mrb[0].mxu0
      %1549 = vmatprep.mubr.bf16.mxu0 0
      %1550 = vmatmul.mubr.bf16.gmra.mrb[0].mxu0 %v998
      %v1551 = vpop.f32.mrb[0].mxu0
      %v1552 = vadd.f32 %v1391, %v1551
      %v1553 = vpop.f32.mrb[0].mxu0
      %v1554 = vpop.f32.mrb[0].mxu0
      %v1555 = vadd.f32 %v1394, %v1554
      %v1556 = vpop.f32.mrb[0].mxu0
      %1557 = vmatprep.mubr.bf16.mxu0 0
      %1558 = vmatmul.mubr.bf16.gmra.mrb[0].mxu0 %v1001
      %v1559 = vpop.f32.mrb[0].mxu0
      %v1560 = vadd.f32 %v1399, %v1559
      %v1561 = vpop.f32.mrb[0].mxu0
      %v1562 = vpop.f32.mrb[0].mxu0
      %v1563 = vadd.f32 %v1402, %v1562
      %v1564 = vpop.f32.mrb[0].mxu0
      %1565 = vmatprep.mubr.bf16.mxu0 0
      %1566 = vmatmul.mubr.bf16.gmra.mrb[0].mxu0 %v1004
      %v1567 = vpop.f32.mrb[0].mxu0
      %v1568 = vadd.f32 %v1407, %v1567
      %v1569 = vpop.f32.mrb[0].mxu0
      %v1570 = vpop.f32.mrb[0].mxu0
      %v1571 = vadd.f32 %v1410, %v1570
      %v1572 = vpop.f32.mrb[0].mxu0
      %1573 = vmatprep.mubr.bf16.mxu0 0
      %1574 = vmatmul.mubr.bf16.gmra.mrb[0].mxu0 %v1007
      %v1575 = vpop.f32.mrb[0].mxu0
      %v1576 = vadd.f32 %v1415, %v1575
      %v1577 = vpop.f32.mrb[0].mxu0
      %v1578 = vpop.f32.mrb[0].mxu0
      %v1579 = vadd.f32 %v1418, %v1578
      %v1580 = vpop.f32.mrb[0].mxu0
      %1581 = vmatprep.mubr.bf16.mxu0 0
      %1582 = vmatmul.mubr.bf16.gmra.mrb[0].mxu0 %v1010
      %v1583 = vpop.f32.mrb[0].mxu0
      %v1584 = vadd.f32 %v1423, %v1583
      %v1585 = vpop.f32.mrb[0].mxu0
      %v1586 = vpop.f32.mrb[0].mxu0
      %v1587 = vadd.f32 %v1426, %v1586
      %v1588 = vpop.f32.mrb[0].mxu0
      %1589 = vmatprep.mubr.bf16.mxu0 0
      %1590 = vmatmul.mubr.bf16.gmra.mrb[0].mxu0 %v1013
      %v1591 = vpop.f32.mrb[0].mxu0
      %v1592 = vadd.f32 %v1431, %v1591
      %v1593 = vpop.f32.mrb[0].mxu0
      %v1594 = vpop.f32.mrb[0].mxu0
      %v1595 = vadd.f32 %v1434, %v1594
      %v1596 = vpop.f32.mrb[0].mxu0
      %1597 = vmatprep.mubr.bf16.mxu0 0
      %1598 = vmatmul.mubr.bf16.gmra.mrb[0].mxu0 %v1016
      %v1599 = vpop.f32.mrb[0].mxu0
      %v1600 = vadd.f32 %v1439, %v1599
      %v1601 = vpop.f32.mrb[0].mxu0
      %v1602 = vpop.f32.mrb[0].mxu0
      %v1603 = vadd.f32 %v1442, %v1602
      %v1604 = vpop.f32.mrb[0].mxu0
      %1605 = vmatprep.mubr.bf16.mxu0 0
      %1606 = vmatmul.mubr.bf16.gmra.mrb[0].mxu0 %v1098
      %v1607 = vpop.f32.mrb[0].mxu0
      %v1608 = vadd.f32 %v1447, %v1607
      %v1609 = vpop.f32.mrb[0].mxu0
      %v1610 = vpop.f32.mrb[0].mxu0
      %v1611 = vadd.f32 %v1450, %v1610
      %v1612 = vpop.f32.mrb[0].mxu0
      %1613 = vdwg.mxu0
      %v1662 = vunpack.c.l.b16 %v1033
      %v1663 = vunpack.c.l.b16 %v1034
      %v1664 = vunpack.c.l.b16 %v1035
      %v1665 = vunpack.c.l.b16 %v1036
      %v1666 = vunpack.c.l.b16 %v1037
      %v1667 = vunpack.c.l.b16 %v1038
      %v1668 = vunpack.c.l.b16 %v1039
      %v1669 = vunpack.c.l.b16 %v1040
      %v1670 = vunpack.c.l.b16 %v1041
      %v1671 = vunpack.c.l.b16 %v1042
      %v1672 = vunpack.c.l.b16 %v1043
      %v1673 = vunpack.c.l.b16 %v1044
      %v1674 = vunpack.c.l.b16 %v1045
      %v1675 = vunpack.c.l.b16 %v1046
      %v1676 = vunpack.c.l.b16 %v1047
      %v1677 = vunpack.c.l.b16 %v1048
      %v1678 = vunpack.c.l.b16 %v1049
      %v1679 = vunpack.c.l.b16 %v1050
      %v1680 = vunpack.c.l.b16 %v1051
      %v1681 = vunpack.c.l.b16 %v1052
      %v1682 = vunpack.c.l.b16 %v1053
      %v1683 = vunpack.c.l.b16 %v1054
      %v1684 = vunpack.c.l.b16 %v1055
      %v1685 = vunpack.c.l.b16 %v1056
      %v1686 = vunpack.c.l.b16 %v1057
      %v1687 = vunpack.c.l.b16 %v1058
      %v1688 = vunpack.c.l.b16 %v1059
      %v1689 = vunpack.c.l.b16 %v1060
      %v1690 = vunpack.c.l.b16 %v1061
      %v1691 = vunpack.c.l.b16 %v1062
      %v1692 = vunpack.c.l.b16 %v1063
      %v1693 = vunpack.c.l.b16 %v1064
      %v1694 = vunpack.c.l.b16 %v1065
      %v1695 = vunpack.c.l.b16 %v1066
      %v1696 = vunpack.c.l.b16 %v1067
      %v1697 = vunpack.c.l.b16 %v1068
      %v1698 = vunpack.c.l.b16 %v1069
      %v1699 = vunpack.c.l.b16 %v1070
      %v1700 = vunpack.c.l.b16 %v1071
      %v1701 = vunpack.c.l.b16 %v1072
      %v1702 = vunpack.c.l.b16 %v1073
      %v1703 = vunpack.c.l.b16 %v1074
      %v1704 = vunpack.c.l.b16 %v1075
      %v1705 = vunpack.c.l.b16 %v1076
      %v1706 = vunpack.c.l.b16 %v1077
      %v1707 = vunpack.c.l.b16 %v1078
      %v1708 = vunpack.c.l.b16 %v1079
      %v1709 = vunpack.c.l.b16 %v1080
      %v1710 = vpack.c.b16 %v1663, %v1662
      %v1711 = vpack.c.b16 %v1665, %v1664
      %v1712 = vpack.c.b16 %v1667, %v1666
      %v1713 = vpack.c.b16 %v1669, %v1668
      %v1714 = vpack.c.b16 %v1671, %v1670
      %v1715 = vpack.c.b16 %v1673, %v1672
      %v1716 = vpack.c.b16 %v1675, %v1674
      %v1717 = vpack.c.b16 %v1677, %v1676
      %v1718 = vpack.c.b16 %v1679, %v1678
      %v1719 = vpack.c.b16 %v1681, %v1680
      %v1720 = vpack.c.b16 %v1683, %v1682
      %v1721 = vpack.c.b16 %v1685, %v1684
      %v1722 = vpack.c.b16 %v1687, %v1686
      %v1723 = vpack.c.b16 %v1689, %v1688
      %v1724 = vpack.c.b16 %v1691, %v1690
      %v1725 = vpack.c.b16 %v1693, %v1692
      %v1726 = vpack.c.b16 %v1695, %v1694
      %v1727 = vpack.c.b16 %v1697, %v1696
      %v1728 = vpack.c.b16 %v1699, %v1698
      %v1729 = vpack.c.b16 %v1701, %v1700
      %v1730 = vpack.c.b16 %v1703, %v1702
      %v1731 = vpack.c.b16 %v1705, %v1704
      %v1732 = vpack.c.b16 %v1707, %v1706
      %v1733 = vpack.c.b16 %v1709, %v1708
      %1758 = vmatprep.subr.bf16.mxu0 0
      %1759 = vmatpush1.bf16.msra.mxu0 %v1710
      %1760 = vmatprep.subr.bf16.mxu0 0
      %1761 = vmatpush1.bf16.msra.mxu0 %v1711
      %1762 = vmatprep.subr.bf16.mxu0 0
      %1763 = vmatpush1.bf16.msra.mxu0 %v1712
      %1764 = vmatprep.subr.bf16.mxu0 0
      %1765 = vmatpush1.bf16.msra.mxu0 %v1713
      %1766 = vmatprep.subr.bf16.mxu0 0
      %1767 = vmatpush1.bf16.msra.mxu0 %v1714
      %1768 = vmatprep.subr.bf16.mxu0 0
      %1769 = vmatpush1.bf16.msra.mxu0 %v1715
      %1770 = vmatprep.subr.bf16.mxu0 0
      %1771 = vmatpush1.bf16.msra.mxu0 %v1716
      %1772 = vmatprep.subr.bf16.mxu0 0
      %1773 = vmatpush1.bf16.msra.mxu0 %v1717
      %1774 = vmatprep.subr.bf16.mxu0 0
      %1775 = vmatpush1.bf16.msra.mxu0 %v1718
      %1776 = vmatprep.subr.bf16.mxu0 0
      %1777 = vmatpush1.bf16.msra.mxu0 %v1719
      %1778 = vmatprep.subr.bf16.mxu0 0
      %1779 = vmatpush1.bf16.msra.mxu0 %v1720
      %1780 = vmatprep.subr.bf16.mxu0 0
      %1781 = vmatpush1.bf16.msra.mxu0 %v1721
      %1782 = vmatprep.subr.bf16.mxu0 0
      %1783 = vmatpush1.bf16.msra.mxu0 %v1722
      %1784 = vmatprep.subr.bf16.mxu0 0
      %1785 = vmatpush1.bf16.msra.mxu0 %v1723
      %1786 = vmatprep.subr.bf16.mxu0 0
      %1787 = vmatpush1.bf16.msra.mxu0 %v1724
      %1788 = vmatprep.subr.bf16.mxu0 0
      %1789 = vmatpush1.bf16.msra.mxu0 %v1725
      %1790 = vmatprep.mubr.bf16.mxu0 %v739
      %1791 = vmatmul.mubr.bf16.gmra.mrb[0].mxu0 %v691
      %v1792 = vpop.f32.mrb[0].mxu0
      %v1793 = vadd.f32 %v1488, %v1792
      %v1794 = vpop.f32.mrb[0].mxu0
      %v1795 = vpop.f32.mrb[0].mxu0
      %v1796 = vadd.f32 %v1491, %v1795
      %v1797 = vpop.f32.mrb[0].mxu0
      %1798 = vmatprep.mubr.bf16.mxu0 %v751
      %1799 = vmatmul.mubr.bf16.gmra.mrb[0].mxu0 %v692
      %v1800 = vpop.f32.mrb[0].mxu0
      %v1801 = vadd.f32 %v1496, %v1800
      %v1802 = vpop.f32.mrb[0].mxu0
      %v1803 = vpop.f32.mrb[0].mxu0
      %v1804 = vadd.f32 %v1499, %v1803
      %v1805 = vpop.f32.mrb[0].mxu0
      %1806 = vmatprep.mubr.bf16.mxu0 %v763
      %1807 = vmatmul.mubr.bf16.gmra.mrb[0].mxu0 %v693
      %v1808 = vpop.f32.mrb[0].mxu0
      %v1809 = vadd.f32 %v1504, %v1808
      %v1810 = vpop.f32.mrb[0].mxu0
      %v1811 = vpop.f32.mrb[0].mxu0
      %v1812 = vadd.f32 %v1507, %v1811
      %v1813 = vpop.f32.mrb[0].mxu0
      %1814 = vmatprep.mubr.bf16.mxu0 %v775
      %1815 = vmatmul.mubr.bf16.gmra.mrb[0].mxu0 %v694
      %v1816 = vpop.f32.mrb[0].mxu0
      %v1817 = vadd.f32 %v1512, %v1816
      %v1818 = vpop.f32.mrb[0].mxu0
      %v1819 = vpop.f32.mrb[0].mxu0
      %v1820 = vadd.f32 %v1515, %v1819
      %v1821 = vpop.f32.mrb[0].mxu0
      %1822 = vmatprep.mubr.bf16.mxu0 %v787
      %1823 = vmatmul.mubr.bf16.gmra.mrb[0].mxu0 %v695
      %v1824 = vpop.f32.mrb[0].mxu0
      %v1825 = vadd.f32 %v1520, %v1824
      %v1826 = vpop.f32.mrb[0].mxu0
      %v1827 = vpop.f32.mrb[0].mxu0
      %v1828 = vadd.f32 %v1523, %v1827
      %v1829 = vpop.f32.mrb[0].mxu0
      %1830 = vmatprep.mubr.bf16.mxu0 %v799
      %1831 = vmatmul.mubr.bf16.gmra.mrb[0].mxu0 %v696
      %v1832 = vpop.f32.mrb[0].mxu0
      %v1833 = vadd.f32 %v1528, %v1832
      %v1834 = vpop.f32.mrb[0].mxu0
      %v1835 = vpop.f32.mrb[0].mxu0
      %v1836 = vadd.f32 %v1531, %v1835
      %v1837 = vpop.f32.mrb[0].mxu0
      %1838 = vmatprep.mubr.bf16.mxu0 %v811
      %1839 = vmatmul.mubr.bf16.gmra.mrb[0].mxu0 %v697
      %v1840 = vpop.f32.mrb[0].mxu0
      %v1841 = vadd.f32 %v1536, %v1840
      %v1842 = vpop.f32.mrb[0].mxu0
      %v1843 = vpop.f32.mrb[0].mxu0
      %v1844 = vadd.f32 %v1539, %v1843
      %v1845 = vpop.f32.mrb[0].mxu0
      %1846 = vmatprep.mubr.bf16.mxu0 %v823
      %1847 = vmatmul.mubr.bf16.gmra.mrb[0].mxu0 %v698
      %v1848 = vpop.f32.mrb[0].mxu0
      %v1849 = vadd.f32 %v1544, %v1848
      %v1850 = vpop.f32.mrb[0].mxu0
      %v1851 = vpop.f32.mrb[0].mxu0
      %v1852 = vadd.f32 %v1547, %v1851
      %v1853 = vpop.f32.mrb[0].mxu0
      %1854 = vmatprep.mubr.bf16.mxu0 %v835
      %1855 = vmatmul.mubr.bf16.gmra.mrb[0].mxu0 %v699
      %v1856 = vpop.f32.mrb[0].mxu0
      %v1857 = vadd.f32 %v1552, %v1856
      %v1858 = vpop.f32.mrb[0].mxu0
      %v1859 = vpop.f32.mrb[0].mxu0
      %v1860 = vadd.f32 %v1555, %v1859
      %v1861 = vpop.f32.mrb[0].mxu0
      %1862 = vmatprep.mubr.bf16.mxu0 %v847
      %1863 = vmatmul.mubr.bf16.gmra.mrb[0].mxu0 %v700
      %v1864 = vpop.f32.mrb[0].mxu0
      %v1865 = vadd.f32 %v1560, %v1864
      %v1866 = vpop.f32.mrb[0].mxu0
      %v1867 = vpop.f32.mrb[0].mxu0
      %v1868 = vadd.f32 %v1563, %v1867
      %v1869 = vpop.f32.mrb[0].mxu0
      %1870 = vmatprep.mubr.bf16.mxu0 %v859
      %1871 = vmatmul.mubr.bf16.gmra.mrb[0].mxu0 %v701
      %v1872 = vpop.f32.mrb[0].mxu0
      %v1873 = vadd.f32 %v1568, %v1872
      %v1874 = vpop.f32.mrb[0].mxu0
      %v1875 = vpop.f32.mrb[0].mxu0
      %v1876 = vadd.f32 %v1571, %v1875
      %v1877 = vpop.f32.mrb[0].mxu0
      %1878 = vmatprep.mubr.bf16.mxu0 %v871
      %1879 = vmatmul.mubr.bf16.gmra.mrb[0].mxu0 %v702
      %v1880 = vpop.f32.mrb[0].mxu0
      %v1881 = vadd.f32 %v1576, %v1880
      %v1882 = vpop.f32.mrb[0].mxu0
      %v1883 = vpop.f32.mrb[0].mxu0
      %v1884 = vadd.f32 %v1579, %v1883
      %v1885 = vpop.f32.mrb[0].mxu0
      %1886 = vmatprep.mubr.bf16.mxu0 %v883
      %1887 = vmatmul.mubr.bf16.gmra.mrb[0].mxu0 %v703
      %v1888 = vpop.f32.mrb[0].mxu0
      %v1889 = vadd.f32 %v1584, %v1888
      %v1890 = vpop.f32.mrb[0].mxu0
      %v1891 = vpop.f32.mrb[0].mxu0
      %v1892 = vadd.f32 %v1587, %v1891
      %v1893 = vpop.f32.mrb[0].mxu0
      %1894 = vmatprep.mubr.bf16.mxu0 %v895
      %1895 = vmatmul.mubr.bf16.gmra.mrb[0].mxu0 %v704
      %v1896 = vpop.f32.mrb[0].mxu0
      %v1897 = vadd.f32 %v1592, %v1896
      %v1898 = vpop.f32.mrb[0].mxu0
      %v1899 = vpop.f32.mrb[0].mxu0
      %v1900 = vadd.f32 %v1595, %v1899
      %v1901 = vpop.f32.mrb[0].mxu0
      %1902 = vmatprep.mubr.bf16.mxu0 %v907
      %1903 = vmatmul.mubr.bf16.gmra.mrb[0].mxu0 %v705
      %v1904 = vpop.f32.mrb[0].mxu0
      %v1905 = vadd.f32 %v1600, %v1904
      %v1906 = vpop.f32.mrb[0].mxu0
      %v1907 = vpop.f32.mrb[0].mxu0
      %v1908 = vadd.f32 %v1603, %v1907
      %v1909 = vpop.f32.mrb[0].mxu0
      %1910 = vmatprep.mubr.bf16.mxu0 %v919
      %1911 = vmatmul.mubr.bf16.gmra.mrb[0].mxu0 %v706
      %v1912 = vpop.f32.mrb[0].mxu0
      %v1913 = vadd.f32 %v1608, %v1912
      %v1914 = vpop.f32.mrb[0].mxu0
      %v1915 = vpop.f32.mrb[0].mxu0
      %v1916 = vadd.f32 %v1611, %v1915
      %v1917 = vpop.f32.mrb[0].mxu0
      %1918 = vdwg.mxu0
      %1919 = vmatprep.subr.bf16.mxu0 0
      %1920 = vmatpush1.bf16.msra.mxu0 %v1726
      %1921 = vmatprep.subr.bf16.mxu0 0
      %1922 = vmatpush1.bf16.msra.mxu0 %v1727
      %1923 = vmatprep.subr.bf16.mxu0 0
      %1924 = vmatpush1.bf16.msra.mxu0 %v1728
      %1925 = vmatprep.subr.bf16.mxu0 0
      %1926 = vmatpush1.bf16.msra.mxu0 %v1729
      %1927 = vmatprep.subr.bf16.mxu0 0
      %1928 = vmatpush1.bf16.msra.mxu0 %v1730
      %1929 = vmatprep.subr.bf16.mxu0 0
      %1930 = vmatpush1.bf16.msra.mxu0 %v1731
      %1931 = vmatprep.subr.bf16.mxu0 0
      %1932 = vmatpush1.bf16.msra.mxu0 %v1732
      %1933 = vmatprep.subr.bf16.mxu0 0
      %1934 = vmatpush1.bf16.msra.mxu0 %v1733
      %1935 = vmatprep.subr.bf16.mxu0 0
      %1936 = vmatpush1.bf16.msra.mxu0 0
      %1937 = vmatprep.subr.bf16.mxu0 0
      %1938 = vmatpush1.bf16.msra.mxu0 0
      %1939 = vmatprep.subr.bf16.mxu0 0
      %1940 = vmatpush1.bf16.msra.mxu0 0
      %1941 = vmatprep.subr.bf16.mxu0 0
      %1942 = vmatpush1.bf16.msra.mxu0 0
      %1943 = vmatprep.subr.bf16.mxu0 0
      %1944 = vmatpush1.bf16.msra.mxu0 0
      %1945 = vmatprep.subr.bf16.mxu0 0
      %1946 = vmatpush1.bf16.msra.mxu0 0
      %1947 = vmatprep.subr.bf16.mxu0 0
      %1948 = vmatpush1.bf16.msra.mxu0 0
      %1949 = vmatprep.subr.bf16.mxu0 0
      %1950 = vmatpush1.bf16.msra.mxu0 0
      %1951 = vmatprep.mubr.bf16.mxu0 0
      %1952 = vmatmul.mubr.bf16.gmra.mrb[0].mxu0 %v971
      %v1953 = vpop.f32.mrb[0].mxu0
      %v1954 = vadd.f32 %v1793, %v1953
      %v1955 = vpop.f32.mrb[0].mxu0
      %v1956 = vpop.f32.mrb[0].mxu0
      %v1957 = vadd.f32 %v1796, %v1956
      %v1958 = vpop.f32.mrb[0].mxu0
      %1959 = vmatprep.mubr.bf16.mxu0 0
      %1960 = vmatmul.mubr.bf16.gmra.mrb[0].mxu0 %v974
      %v1961 = vpop.f32.mrb[0].mxu0
      %v1962 = vadd.f32 %v1801, %v1961
      %v1963 = vpop.f32.mrb[0].mxu0
      %v1964 = vpop.f32.mrb[0].mxu0
      %v1965 = vadd.f32 %v1804, %v1964
      %v1966 = vpop.f32.mrb[0].mxu0
      %1967 = vmatprep.mubr.bf16.mxu0 0
      %1968 = vmatmul.mubr.bf16.gmra.mrb[0].mxu0 %v977
      %v1969 = vpop.f32.mrb[0].mxu0
      %v1970 = vadd.f32 %v1809, %v1969
      %v1971 = vpop.f32.mrb[0].mxu0
      %v1972 = vpop.f32.mrb[0].mxu0
      %v1973 = vadd.f32 %v1812, %v1972
      %v1974 = vpop.f32.mrb[0].mxu0
      %1975 = vmatprep.mubr.bf16.mxu0 0
      %1976 = vmatmul.mubr.bf16.gmra.mrb[0].mxu0 %v980
      %v1977 = vpop.f32.mrb[0].mxu0
      %v1978 = vadd.f32 %v1817, %v1977
      %v1979 = vpop.f32.mrb[0].mxu0
      %v1980 = vpop.f32.mrb[0].mxu0
      %v1981 = vadd.f32 %v1820, %v1980
      %v1982 = vpop.f32.mrb[0].mxu0
      %1983 = vmatprep.mubr.bf16.mxu0 0
      %1984 = vmatmul.mubr.bf16.gmra.mrb[0].mxu0 %v983
      %v1985 = vpop.f32.mrb[0].mxu0
      %v1986 = vadd.f32 %v1825, %v1985
      %v1987 = vpop.f32.mrb[0].mxu0
      %v1988 = vpop.f32.mrb[0].mxu0
      %v1989 = vadd.f32 %v1828, %v1988
      %v1990 = vpop.f32.mrb[0].mxu0
      %1991 = vmatprep.mubr.bf16.mxu0 0
      %1992 = vmatmul.mubr.bf16.gmra.mrb[0].mxu0 %v986
      %v1993 = vpop.f32.mrb[0].mxu0
      %v1994 = vadd.f32 %v1833, %v1993
      %v1995 = vpop.f32.mrb[0].mxu0
      %v1996 = vpop.f32.mrb[0].mxu0
      %v1997 = vadd.f32 %v1836, %v1996
      %v1998 = vpop.f32.mrb[0].mxu0
      %1999 = vmatprep.mubr.bf16.mxu0 0
      %2000 = vmatmul.mubr.bf16.gmra.mrb[0].mxu0 %v989
      %v2001 = vpop.f32.mrb[0].mxu0
      %v2002 = vadd.f32 %v1841, %v2001
      %v2003 = vpop.f32.mrb[0].mxu0
      %v2004 = vpop.f32.mrb[0].mxu0
      %v2005 = vadd.f32 %v1844, %v2004
      %v2006 = vpop.f32.mrb[0].mxu0
      %2007 = vmatprep.mubr.bf16.mxu0 0
      %2008 = vmatmul.mubr.bf16.gmra.mrb[0].mxu0 %v992
      %v2009 = vpop.f32.mrb[0].mxu0
      %v2010 = vadd.f32 %v1849, %v2009
      %v2011 = vpop.f32.mrb[0].mxu0
      %v2012 = vpop.f32.mrb[0].mxu0
      %v2013 = vadd.f32 %v1852, %v2012
      %v2014 = vpop.f32.mrb[0].mxu0
      %2015 = vmatprep.mubr.bf16.mxu0 0
      %2016 = vmatmul.mubr.bf16.gmra.mrb[0].mxu0 %v995
      %v2017 = vpop.f32.mrb[0].mxu0
      %v2018 = vadd.f32 %v1857, %v2017
      %v2019 = vpop.f32.mrb[0].mxu0
      %v2020 = vpop.f32.mrb[0].mxu0
      %v2021 = vadd.f32 %v1860, %v2020
      %v2022 = vpop.f32.mrb[0].mxu0
      %2023 = vmatprep.mubr.bf16.mxu0 0
      %2024 = vmatmul.mubr.bf16.gmra.mrb[0].mxu0 %v998
      %v2025 = vpop.f32.mrb[0].mxu0
      %v2026 = vadd.f32 %v1865, %v2025
      %v2027 = vpop.f32.mrb[0].mxu0
      %v2028 = vpop.f32.mrb[0].mxu0
      %v2029 = vadd.f32 %v1868, %v2028
      %v2030 = vpop.f32.mrb[0].mxu0
      %2031 = vmatprep.mubr.bf16.mxu0 0
      %2032 = vmatmul.mubr.bf16.gmra.mrb[0].mxu0 %v1001
      %v2033 = vpop.f32.mrb[0].mxu0
      %v2034 = vadd.f32 %v1873, %v2033
      %v2035 = vpop.f32.mrb[0].mxu0
      %v2036 = vpop.f32.mrb[0].mxu0
      %v2037 = vadd.f32 %v1876, %v2036
      %v2038 = vpop.f32.mrb[0].mxu0
      %2039 = vmatprep.mubr.bf16.mxu0 0
      %2040 = vmatmul.mubr.bf16.gmra.mrb[0].mxu0 %v1004
      %v2041 = vpop.f32.mrb[0].mxu0
      %v2042 = vadd.f32 %v1881, %v2041
      %v2043 = vpop.f32.mrb[0].mxu0
      %v2044 = vpop.f32.mrb[0].mxu0
      %v2045 = vadd.f32 %v1884, %v2044
      %v2046 = vpop.f32.mrb[0].mxu0
      %2047 = vmatprep.mubr.bf16.mxu0 0
      %2048 = vmatmul.mubr.bf16.gmra.mrb[0].mxu0 %v1007
      %v2049 = vpop.f32.mrb[0].mxu0
      %v2050 = vadd.f32 %v1889, %v2049
      %v2051 = vpop.f32.mrb[0].mxu0
      %v2052 = vpop.f32.mrb[0].mxu0
      %v2053 = vadd.f32 %v1892, %v2052
      %v2054 = vpop.f32.mrb[0].mxu0
      %2055 = vmatprep.mubr.bf16.mxu0 0
      %2056 = vmatmul.mubr.bf16.gmra.mrb[0].mxu0 %v1010
      %v2057 = vpop.f32.mrb[0].mxu0
      %v2058 = vadd.f32 %v1897, %v2057
      %v2059 = vpop.f32.mrb[0].mxu0
      %v2060 = vpop.f32.mrb[0].mxu0
      %v2061 = vadd.f32 %v1900, %v2060
      %v2062 = vpop.f32.mrb[0].mxu0
      %2063 = vmatprep.mubr.bf16.mxu0 0
      %2064 = vmatmul.mubr.bf16.gmra.mrb[0].mxu0 %v1013
      %v2065 = vpop.f32.mrb[0].mxu0
      %v2066 = vadd.f32 %v1905, %v2065
      %v2067 = vpop.f32.mrb[0].mxu0
      %v2068 = vpop.f32.mrb[0].mxu0
      %v2069 = vadd.f32 %v1908, %v2068
      %v2070 = vpop.f32.mrb[0].mxu0
      %2071 = vmatprep.mubr.bf16.mxu0 0
      %2072 = vmatmul.mubr.bf16.gmra.mrb[0].mxu0 %v1016
      %v2073 = vpop.f32.mrb[0].mxu0
      %v2074 = vadd.f32 %v1913, %v2073
      %v2075 = vpop.f32.mrb[0].mxu0
      %v2076 = vpop.f32.mrb[0].mxu0
      %v2077 = vadd.f32 %v1916, %v2076
      %v2078 = vpop.f32.mrb[0].mxu0
      %2079 = vdwg.mxu0
      %v2081 = vshrl.u32 %v708, 16
      %v2083 = vshll.u32 %v708, 16
      %v2085 = vrot.slane %v2083, 1
      %v2086 = vor.u32 %v2081, %v2085
      %v2088 = vshll.u32 %v726, 16
      %v2090 = vrot.slane %v2088, 1
      %v2091 = vsel %vm727, %v2086, %v2090
      %v2095 = vrot.slane %v708, 1
      %v2096 = vrot.slane %v726, 1
      %v2097 = vsel %vm968, %v2095, %v2096
      %v2099 = vld [vmem:[%s3 + $0x180] sm:$0xf]
      %v2100 = vld [vmem:[%s3 + $0x184] sm:$0xf]
      %v2101 = vld [vmem:[%s3 + $0x188] sm:$0xf]
      %v2102 = vld [vmem:[%s3 + $0x18c] sm:$0xf]
      %v2103 = vld [vmem:[%s3 + $0x190] sm:$0xf]
      %v2104 = vld [vmem:[%s3 + $0x194] sm:$0xf]
      %v2105 = vld [vmem:[%s3 + $0x198] sm:$0xf]
      %v2106 = vld [vmem:[%s3 + $0x19c] sm:$0xf]
      %v2107 = vld [vmem:[%s3 + $0x1a0] sm:$0xf]
      %v2108 = vld [vmem:[%s3 + $0x1a4] sm:$0xf]
      %v2109 = vld [vmem:[%s3 + $0x1a8] sm:$0xf]
      %v2110 = vld [vmem:[%s3 + $0x1ac] sm:$0xf]
      %v2111 = vld [vmem:[%s3 + $0x1b0] sm:$0xf]
      %v2112 = vld [vmem:[%s3 + $0x1b4] sm:$0xf]
      %v2113 = vld [vmem:[%s3 + $0x1b8] sm:$0xf]
      %v2114 = vld [vmem:[%s3 + $0x1bc] sm:$0xf]
      %v2115 = vld [vmem:[%s3 + $0x1c0] sm:$0xf]
      %v2116 = vld [vmem:[%s3 + $0x1c4] sm:$0xf]
      %v2117 = vld [vmem:[%s3 + $0x1c8] sm:$0xf]
      %v2118 = vld [vmem:[%s3 + $0x1cc] sm:$0xf]
      %v2119 = vld [vmem:[%s3 + $0x1d0] sm:$0xf]
      %v2120 = vld [vmem:[%s3 + $0x1d4] sm:$0xf]
      %v2121 = vld [vmem:[%s3 + $0x1d8] sm:$0xf]
      %v2122 = vld [vmem:[%s3 + $0x1dc] sm:$0xf]
      %v2123 = vld [vmem:[%s3 + $0x1e0] sm:$0xf]
      %v2124 = vld [vmem:[%s3 + $0x1e4] sm:$0xf]
      %v2125 = vld [vmem:[%s3 + $0x1e8] sm:$0xf]
      %v2126 = vld [vmem:[%s3 + $0x1ec] sm:$0xf]
      %v2127 = vld [vmem:[%s3 + $0x1f0] sm:$0xf]
      %v2128 = vld [vmem:[%s3 + $0x1f4] sm:$0xf]
      %v2129 = vld [vmem:[%s3 + $0x1f8] sm:$0xf]
      %v2130 = vld [vmem:[%s3 + $0x1fc] sm:$0xf]
      %v2131 = vld [vmem:[%s3 + $0x200] sm:$0xf]
      %v2132 = vld [vmem:[%s3 + $0x204] sm:$0xf]
      %v2133 = vld [vmem:[%s3 + $0x208] sm:$0xf]
      %v2134 = vld [vmem:[%s3 + $0x20c] sm:$0xf]
      %v2135 = vld [vmem:[%s3 + $0x210] sm:$0xf]
      %v2136 = vld [vmem:[%s3 + $0x214] sm:$0xf]
      %v2137 = vld [vmem:[%s3 + $0x218] sm:$0xf]
      %v2138 = vld [vmem:[%s3 + $0x21c] sm:$0xf]
      %v2139 = vld [vmem:[%s3 + $0x220] sm:$0xf]
      %v2140 = vld [vmem:[%s3 + $0x224] sm:$0xf]
      %v2141 = vld [vmem:[%s3 + $0x228] sm:$0xf]
      %v2142 = vld [vmem:[%s3 + $0x22c] sm:$0xf]
      %v2143 = vld [vmem:[%s3 + $0x230] sm:$0xf]
      %v2144 = vld [vmem:[%s3 + $0x234] sm:$0xf]
      %v2145 = vld [vmem:[%s3 + $0x238] sm:$0xf]
      %v2146 = vld [vmem:[%s3 + $0x23c] sm:$0xf]
      %v2195 = vunpack.c.l.b16 %v2099
      %v2196 = vunpack.c.l.b16 %v2100
      %v2197 = vunpack.c.l.b16 %v2101
      %v2198 = vunpack.c.l.b16 %v2102
      %v2199 = vunpack.c.l.b16 %v2103
      %v2200 = vunpack.c.l.b16 %v2104
      %v2201 = vunpack.c.l.b16 %v2105
      %v2202 = vunpack.c.l.b16 %v2106
      %v2203 = vunpack.c.l.b16 %v2107
      %v2204 = vunpack.c.l.b16 %v2108
      %v2205 = vunpack.c.l.b16 %v2109
      %v2206 = vunpack.c.l.b16 %v2110
      %v2207 = vunpack.c.l.b16 %v2111
      %v2208 = vunpack.c.l.b16 %v2112
      %v2209 = vunpack.c.l.b16 %v2113
      %v2210 = vunpack.c.l.b16 %v2114
      %v2211 = vunpack.c.l.b16 %v2115
      %v2212 = vunpack.c.l.b16 %v2116
      %v2213 = vunpack.c.l.b16 %v2117
      %v2214 = vunpack.c.l.b16 %v2118
      %v2215 = vunpack.c.l.b16 %v2119
      %v2216 = vunpack.c.l.b16 %v2120
      %v2217 = vunpack.c.l.b16 %v2121
      %v2218 = vunpack.c.l.b16 %v2122
      %v2219 = vunpack.c.l.b16 %v2123
      %v2220 = vunpack.c.l.b16 %v2124
      %v2221 = vunpack.c.l.b16 %v2125
      %v2222 = vunpack.c.l.b16 %v2126
      %v2223 = vunpack.c.l.b16 %v2127
      %v2224 = vunpack.c.l.b16 %v2128
      %v2225 = vunpack.c.l.b16 %v2129
      %v2226 = vunpack.c.l.b16 %v2130
      %v2227 = vunpack.c.l.b16 %v2131
      %v2228 = vunpack.c.l.b16 %v2132
      %v2229 = vunpack.c.l.b16 %v2133
      %v2230 = vunpack.c.l.b16 %v2134
      %v2231 = vunpack.c.l.b16 %v2135
      %v2232 = vunpack.c.l.b16 %v2136
      %v2233 = vunpack.c.l.b16 %v2137
      %v2234 = vunpack.c.l.b16 %v2138
      %v2235 = vunpack.c.l.b16 %v2139
      %v2236 = vunpack.c.l.b16 %v2140
      %v2237 = vunpack.c.l.b16 %v2141
      %v2238 = vunpack.c.l.b16 %v2142
      %v2239 = vunpack.c.l.b16 %v2143
      %v2240 = vunpack.c.l.b16 %v2144
      %v2241 = vunpack.c.l.b16 %v2145
      %v2242 = vunpack.c.l.b16 %v2146
      %v2243 = vpack.c.b16 %v2196, %v2195
      %v2244 = vpack.c.b16 %v2198, %v2197
      %v2245 = vpack.c.b16 %v2200, %v2199
      %v2246 = vpack.c.b16 %v2202, %v2201
      %v2247 = vpack.c.b16 %v2204, %v2203
      %v2248 = vpack.c.b16 %v2206, %v2205
      %v2249 = vpack.c.b16 %v2208, %v2207
      %v2250 = vpack.c.b16 %v2210, %v2209
      %v2251 = vpack.c.b16 %v2212, %v2211
      %v2252 = vpack.c.b16 %v2214, %v2213
      %v2253 = vpack.c.b16 %v2216, %v2215
      %v2254 = vpack.c.b16 %v2218, %v2217
      %v2255 = vpack.c.b16 %v2220, %v2219
      %v2256 = vpack.c.b16 %v2222, %v2221
      %v2257 = vpack.c.b16 %v2224, %v2223
      %v2258 = vpack.c.b16 %v2226, %v2225
      %v2259 = vpack.c.b16 %v2228, %v2227
      %v2260 = vpack.c.b16 %v2230, %v2229
      %v2261 = vpack.c.b16 %v2232, %v2231
      %v2262 = vpack.c.b16 %v2234, %v2233
      %v2263 = vpack.c.b16 %v2236, %v2235
      %v2264 = vpack.c.b16 %v2238, %v2237
      %v2265 = vpack.c.b16 %v2240, %v2239
      %v2266 = vpack.c.b16 %v2242, %v2241
      %2291 = vmatprep.subr.bf16.mxu0 0
      %2292 = vmatpush1.bf16.msra.mxu0 %v2243
      %2293 = vmatprep.subr.bf16.mxu0 0
      %2294 = vmatpush1.bf16.msra.mxu0 %v2244
      %2295 = vmatprep.subr.bf16.mxu0 0
      %2296 = vmatpush1.bf16.msra.mxu0 %v2245
      %2297 = vmatprep.subr.bf16.mxu0 0
      %2298 = vmatpush1.bf16.msra.mxu0 %v2246
      %2299 = vmatprep.subr.bf16.mxu0 0
      %2300 = vmatpush1.bf16.msra.mxu0 %v2247
      %2301 = vmatprep.subr.bf16.mxu0 0
      %2302 = vmatpush1.bf16.msra.mxu0 %v2248
      %2303 = vmatprep.subr.bf16.mxu0 0
      %2304 = vmatpush1.bf16.msra.mxu0 %v2249
      %2305 = vmatprep.subr.bf16.mxu0 0
      %2306 = vmatpush1.bf16.msra.mxu0 %v2250
      %2307 = vmatprep.subr.bf16.mxu0 0
      %2308 = vmatpush1.bf16.msra.mxu0 %v2251
      %2309 = vmatprep.subr.bf16.mxu0 0
      %2310 = vmatpush1.bf16.msra.mxu0 %v2252
      %2311 = vmatprep.subr.bf16.mxu0 0
      %2312 = vmatpush1.bf16.msra.mxu0 %v2253
      %2313 = vmatprep.subr.bf16.mxu0 0
      %2314 = vmatpush1.bf16.msra.mxu0 %v2254
      %2315 = vmatprep.subr.bf16.mxu0 0
      %2316 = vmatpush1.bf16.msra.mxu0 %v2255
      %2317 = vmatprep.subr.bf16.mxu0 0
      %2318 = vmatpush1.bf16.msra.mxu0 %v2256
      %2319 = vmatprep.subr.bf16.mxu0 0
      %2320 = vmatpush1.bf16.msra.mxu0 %v2257
      %2321 = vmatprep.subr.bf16.mxu0 0
      %2322 = vmatpush1.bf16.msra.mxu0 %v2258
      %2323 = vmatprep.mubr.bf16.mxu0 %v763
      %2324 = vmatmul.mubr.bf16.gmra.mrb[0].mxu0 %v693
      %v2325 = vpop.f32.mrb[0].mxu0
      %v2326 = vadd.f32 0.0, %v2325
      %v2327 = vpop.f32.mrb[0].mxu0
      %v2328 = vpop.f32.mrb[0].mxu0
      %v2329 = vadd.f32 0.0, %v2328
      %v2330 = vpop.f32.mrb[0].mxu0
      %2331 = vmatprep.mubr.bf16.mxu0 %v775
      %2332 = vmatmul.mubr.bf16.gmra.mrb[0].mxu0 %v694
      %v2333 = vpop.f32.mrb[0].mxu0
      %v2334 = vadd.f32 0.0, %v2333
      %v2335 = vpop.f32.mrb[0].mxu0
      %v2336 = vpop.f32.mrb[0].mxu0
      %v2337 = vadd.f32 0.0, %v2336
      %v2338 = vpop.f32.mrb[0].mxu0
      %2339 = vmatprep.mubr.bf16.mxu0 %v787
      %2340 = vmatmul.mubr.bf16.gmra.mrb[0].mxu0 %v695
      %v2341 = vpop.f32.mrb[0].mxu0
      %v2342 = vadd.f32 0.0, %v2341
      %v2343 = vpop.f32.mrb[0].mxu0
      %v2344 = vpop.f32.mrb[0].mxu0
      %v2345 = vadd.f32 0.0, %v2344
      %v2346 = vpop.f32.mrb[0].mxu0
      %2347 = vmatprep.mubr.bf16.mxu0 %v799
      %2348 = vmatmul.mubr.bf16.gmra.mrb[0].mxu0 %v696
      %v2349 = vpop.f32.mrb[0].mxu0
      %v2350 = vadd.f32 0.0, %v2349
      %v2351 = vpop.f32.mrb[0].mxu0
      %v2352 = vpop.f32.mrb[0].mxu0
      %v2353 = vadd.f32 0.0, %v2352
      %v2354 = vpop.f32.mrb[0].mxu0
      %2355 = vmatprep.mubr.bf16.mxu0 %v811
      %2356 = vmatmul.mubr.bf16.gmra.mrb[0].mxu0 %v697
      %v2357 = vpop.f32.mrb[0].mxu0
      %v2358 = vadd.f32 0.0, %v2357
      %v2359 = vpop.f32.mrb[0].mxu0
      %v2360 = vpop.f32.mrb[0].mxu0
      %v2361 = vadd.f32 0.0, %v2360
      %v2362 = vpop.f32.mrb[0].mxu0
      %2363 = vmatprep.mubr.bf16.mxu0 %v823
      %2364 = vmatmul.mubr.bf16.gmra.mrb[0].mxu0 %v698
      %v2365 = vpop.f32.mrb[0].mxu0
      %v2366 = vadd.f32 0.0, %v2365
      %v2367 = vpop.f32.mrb[0].mxu0
      %v2368 = vpop.f32.mrb[0].mxu0
      %v2369 = vadd.f32 0.0, %v2368
      %v2370 = vpop.f32.mrb[0].mxu0
      %2371 = vmatprep.mubr.bf16.mxu0 %v835
      %2372 = vmatmul.mubr.bf16.gmra.mrb[0].mxu0 %v699
      %v2373 = vpop.f32.mrb[0].mxu0
      %v2374 = vadd.f32 0.0, %v2373
      %v2375 = vpop.f32.mrb[0].mxu0
      %v2376 = vpop.f32.mrb[0].mxu0
      %v2377 = vadd.f32 0.0, %v2376
      %v2378 = vpop.f32.mrb[0].mxu0
      %2379 = vmatprep.mubr.bf16.mxu0 %v847
      %2380 = vmatmul.mubr.bf16.gmra.mrb[0].mxu0 %v700
      %v2381 = vpop.f32.mrb[0].mxu0
      %v2382 = vadd.f32 0.0, %v2381
      %v2383 = vpop.f32.mrb[0].mxu0
      %v2384 = vpop.f32.mrb[0].mxu0
      %v2385 = vadd.f32 0.0, %v2384
      %v2386 = vpop.f32.mrb[0].mxu0
      %2387 = vmatprep.mubr.bf16.mxu0 %v859
      %2388 = vmatmul.mubr.bf16.gmra.mrb[0].mxu0 %v701
      %v2389 = vpop.f32.mrb[0].mxu0
      %v2390 = vadd.f32 0.0, %v2389
      %v2391 = vpop.f32.mrb[0].mxu0
      %v2392 = vpop.f32.mrb[0].mxu0
      %v2393 = vadd.f32 0.0, %v2392
      %v2394 = vpop.f32.mrb[0].mxu0
      %2395 = vmatprep.mubr.bf16.mxu0 %v871
      %2396 = vmatmul.mubr.bf16.gmra.mrb[0].mxu0 %v702
      %v2397 = vpop.f32.mrb[0].mxu0
      %v2398 = vadd.f32 0.0, %v2397
      %v2399 = vpop.f32.mrb[0].mxu0
      %v2400 = vpop.f32.mrb[0].mxu0
      %v2401 = vadd.f32 0.0, %v2400
      %v2402 = vpop.f32.mrb[0].mxu0
      %2403 = vmatprep.mubr.bf16.mxu0 %v883
      %2404 = vmatmul.mubr.bf16.gmra.mrb[0].mxu0 %v703
      %v2405 = vpop.f32.mrb[0].mxu0
      %v2406 = vadd.f32 0.0, %v2405
      %v2407 = vpop.f32.mrb[0].mxu0
      %v2408 = vpop.f32.mrb[0].mxu0
      %v2409 = vadd.f32 0.0, %v2408
      %v2410 = vpop.f32.mrb[0].mxu0
      %2411 = vmatprep.mubr.bf16.mxu0 %v895
      %2412 = vmatmul.mubr.bf16.gmra.mrb[0].mxu0 %v704
      %v2413 = vpop.f32.mrb[0].mxu0
      %v2414 = vadd.f32 0.0, %v2413
      %v2415 = vpop.f32.mrb[0].mxu0
      %v2416 = vpop.f32.mrb[0].mxu0
      %v2417 = vadd.f32 0.0, %v2416
      %v2418 = vpop.f32.mrb[0].mxu0
      %2419 = vmatprep.mubr.bf16.mxu0 %v907
      %2420 = vmatmul.mubr.bf16.gmra.mrb[0].mxu0 %v705
      %v2421 = vpop.f32.mrb[0].mxu0
      %v2422 = vadd.f32 0.0, %v2421
      %v2423 = vpop.f32.mrb[0].mxu0
      %v2424 = vpop.f32.mrb[0].mxu0
      %v2425 = vadd.f32 0.0, %v2424
      %v2426 = vpop.f32.mrb[0].mxu0
      %2427 = vmatprep.mubr.bf16.mxu0 %v919
      %2428 = vmatmul.mubr.bf16.gmra.mrb[0].mxu0 %v706
      %v2429 = vpop.f32.mrb[0].mxu0
      %v2430 = vadd.f32 0.0, %v2429
      %v2431 = vpop.f32.mrb[0].mxu0
      %v2432 = vpop.f32.mrb[0].mxu0
      %v2433 = vadd.f32 0.0, %v2432
      %v2434 = vpop.f32.mrb[0].mxu0
      %2435 = vmatprep.mubr.bf16.mxu0 %v1092
      %2436 = vmatmul.mubr.bf16.gmra.mrb[0].mxu0 %v707
      %v2437 = vpop.f32.mrb[0].mxu0
      %v2438 = vadd.f32 0.0, %v2437
      %v2439 = vpop.f32.mrb[0].mxu0
      %v2440 = vpop.f32.mrb[0].mxu0
      %v2441 = vadd.f32 0.0, %v2440
      %v2442 = vpop.f32.mrb[0].mxu0
      %2443 = vmatprep.mubr.bf16.mxu0 %v2091
      %2444 = vmatmul.mubr.bf16.gmra.mrb[0].mxu0 %v708
      %v2445 = vpop.f32.mrb[0].mxu0
      %v2446 = vadd.f32 0.0, %v2445
      %v2447 = vpop.f32.mrb[0].mxu0
      %v2448 = vpop.f32.mrb[0].mxu0
      %v2449 = vadd.f32 0.0, %v2448
      %v2450 = vpop.f32.mrb[0].mxu0
      %2451 = vdwg.mxu0
      %2452 = vmatprep.subr.bf16.mxu0 0
      %2453 = vmatpush1.bf16.msra.mxu0 %v2259
      %2454 = vmatprep.subr.bf16.mxu0 0
      %2455 = vmatpush1.bf16.msra.mxu0 %v2260
      %2456 = vmatprep.subr.bf16.mxu0 0
      %2457 = vmatpush1.bf16.msra.mxu0 %v2261
      %2458 = vmatprep.subr.bf16.mxu0 0
      %2459 = vmatpush1.bf16.msra.mxu0 %v2262
      %2460 = vmatprep.subr.bf16.mxu0 0
      %2461 = vmatpush1.bf16.msra.mxu0 %v2263
      %2462 = vmatprep.subr.bf16.mxu0 0
      %2463 = vmatpush1.bf16.msra.mxu0 %v2264
      %2464 = vmatprep.subr.bf16.mxu0 0
      %2465 = vmatpush1.bf16.msra.mxu0 %v2265
      %2466 = vmatprep.subr.bf16.mxu0 0
      %2467 = vmatpush1.bf16.msra.mxu0 %v2266
      %2468 = vmatprep.subr.bf16.mxu0 0
      %2469 = vmatpush1.bf16.msra.mxu0 0
      %2470 = vmatprep.subr.bf16.mxu0 0
      %2471 = vmatpush1.bf16.msra.mxu0 0
      %2472 = vmatprep.subr.bf16.mxu0 0
      %2473 = vmatpush1.bf16.msra.mxu0 0
      %2474 = vmatprep.subr.bf16.mxu0 0
      %2475 = vmatpush1.bf16.msra.mxu0 0
      %2476 = vmatprep.subr.bf16.mxu0 0
      %2477 = vmatpush1.bf16.msra.mxu0 0
      %2478 = vmatprep.subr.bf16.mxu0 0
      %2479 = vmatpush1.bf16.msra.mxu0 0
      %2480 = vmatprep.subr.bf16.mxu0 0
      %2481 = vmatpush1.bf16.msra.mxu0 0
      %2482 = vmatprep.subr.bf16.mxu0 0
      %2483 = vmatpush1.bf16.msra.mxu0 0
      %2484 = vmatprep.mubr.bf16.mxu0 0
      %2485 = vmatmul.mubr.bf16.gmra.mrb[0].mxu0 %v977
      %v2486 = vpop.f32.mrb[0].mxu0
      %v2487 = vadd.f32 %v2326, %v2486
      %v2488 = vpop.f32.mrb[0].mxu0
      %v2489 = vpop.f32.mrb[0].mxu0
      %v2490 = vadd.f32 %v2329, %v2489
      %v2491 = vpop.f32.mrb[0].mxu0
      %2492 = vmatprep.mubr.bf16.mxu0 0
      %2493 = vmatmul.mubr.bf16.gmra.mrb[0].mxu0 %v980
      %v2494 = vpop.f32.mrb[0].mxu0
      %v2495 = vadd.f32 %v2334, %v2494
      %v2496 = vpop.f32.mrb[0].mxu0
      %v2497 = vpop.f32.mrb[0].mxu0
      %v2498 = vadd.f32 %v2337, %v2497
      %v2499 = vpop.f32.mrb[0].mxu0
      %2500 = vmatprep.mubr.bf16.mxu0 0
      %2501 = vmatmul.mubr.bf16.gmra.mrb[0].mxu0 %v983
      %v2502 = vpop.f32.mrb[0].mxu0
      %v2503 = vadd.f32 %v2342, %v2502
      %v2504 = vpop.f32.mrb[0].mxu0
      %v2505 = vpop.f32.mrb[0].mxu0
      %v2506 = vadd.f32 %v2345, %v2505
      %v2507 = vpop.f32.mrb[0].mxu0
      %2508 = vmatprep.mubr.bf16.mxu0 0
      %2509 = vmatmul.mubr.bf16.gmra.mrb[0].mxu0 %v986
      %v2510 = vpop.f32.mrb[0].mxu0
      %v2511 = vadd.f32 %v2350, %v2510
      %v2512 = vpop.f32.mrb[0].mxu0
      %v2513 = vpop.f32.mrb[0].mxu0
      %v2514 = vadd.f32 %v2353, %v2513
      %v2515 = vpop.f32.mrb[0].mxu0
      %2516 = vmatprep.mubr.bf16.mxu0 0
      %2517 = vmatmul.mubr.bf16.gmra.mrb[0].mxu0 %v989
      %v2518 = vpop.f32.mrb[0].mxu0
      %v2519 = vadd.f32 %v2358, %v2518
      %v2520 = vpop.f32.mrb[0].mxu0
      %v2521 = vpop.f32.mrb[0].mxu0
      %v2522 = vadd.f32 %v2361, %v2521
      %v2523 = vpop.f32.mrb[0].mxu0
      %2524 = vmatprep.mubr.bf16.mxu0 0
      %2525 = vmatmul.mubr.bf16.gmra.mrb[0].mxu0 %v992
      %v2526 = vpop.f32.mrb[0].mxu0
      %v2527 = vadd.f32 %v2366, %v2526
      %v2528 = vpop.f32.mrb[0].mxu0
      %v2529 = vpop.f32.mrb[0].mxu0
      %v2530 = vadd.f32 %v2369, %v2529
      %v2531 = vpop.f32.mrb[0].mxu0
      %2532 = vmatprep.mubr.bf16.mxu0 0
      %2533 = vmatmul.mubr.bf16.gmra.mrb[0].mxu0 %v995
      %v2534 = vpop.f32.mrb[0].mxu0
      %v2535 = vadd.f32 %v2374, %v2534
      %v2536 = vpop.f32.mrb[0].mxu0
      %v2537 = vpop.f32.mrb[0].mxu0
      %v2538 = vadd.f32 %v2377, %v2537
      %v2539 = vpop.f32.mrb[0].mxu0
      %2540 = vmatprep.mubr.bf16.mxu0 0
      %2541 = vmatmul.mubr.bf16.gmra.mrb[0].mxu0 %v998
      %v2542 = vpop.f32.mrb[0].mxu0
      %v2543 = vadd.f32 %v2382, %v2542
      %v2544 = vpop.f32.mrb[0].mxu0
      %v2545 = vpop.f32.mrb[0].mxu0
      %v2546 = vadd.f32 %v2385, %v2545
      %v2547 = vpop.f32.mrb[0].mxu0
      %2548 = vmatprep.mubr.bf16.mxu0 0
      %2549 = vmatmul.mubr.bf16.gmra.mrb[0].mxu0 %v1001
      %v2550 = vpop.f32.mrb[0].mxu0
      %v2551 = vadd.f32 %v2390, %v2550
      %v2552 = vpop.f32.mrb[0].mxu0
      %v2553 = vpop.f32.mrb[0].mxu0
      %v2554 = vadd.f32 %v2393, %v2553
      %v2555 = vpop.f32.mrb[0].mxu0
      %2556 = vmatprep.mubr.bf16.mxu0 0
      %2557 = vmatmul.mubr.bf16.gmra.mrb[0].mxu0 %v1004
      %v2558 = vpop.f32.mrb[0].mxu0
      %v2559 = vadd.f32 %v2398, %v2558
      %v2560 = vpop.f32.mrb[0].mxu0
      %v2561 = vpop.f32.mrb[0].mxu0
      %v2562 = vadd.f32 %v2401, %v2561
      %v2563 = vpop.f32.mrb[0].mxu0
      %2564 = vmatprep.mubr.bf16.mxu0 0
      %2565 = vmatmul.mubr.bf16.gmra.mrb[0].mxu0 %v1007
      %v2566 = vpop.f32.mrb[0].mxu0
      %v2567 = vadd.f32 %v2406, %v2566
      %v2568 = vpop.f32.mrb[0].mxu0
      %v2569 = vpop.f32.mrb[0].mxu0
      %v2570 = vadd.f32 %v2409, %v2569
      %v2571 = vpop.f32.mrb[0].mxu0
      %2572 = vmatprep.mubr.bf16.mxu0 0
      %2573 = vmatmul.mubr.bf16.gmra.mrb[0].mxu0 %v1010
      %v2574 = vpop.f32.mrb[0].mxu0
      %v2575 = vadd.f32 %v2414, %v2574
      %v2576 = vpop.f32.mrb[0].mxu0
      %v2577 = vpop.f32.mrb[0].mxu0
      %v2578 = vadd.f32 %v2417, %v2577
      %v2579 = vpop.f32.mrb[0].mxu0
      %2580 = vmatprep.mubr.bf16.mxu0 0
      %2581 = vmatmul.mubr.bf16.gmra.mrb[0].mxu0 %v1013
      %v2582 = vpop.f32.mrb[0].mxu0
      %v2583 = vadd.f32 %v2422, %v2582
      %v2584 = vpop.f32.mrb[0].mxu0
      %v2585 = vpop.f32.mrb[0].mxu0
      %v2586 = vadd.f32 %v2425, %v2585
      %v2587 = vpop.f32.mrb[0].mxu0
      %2588 = vmatprep.mubr.bf16.mxu0 0
      %2589 = vmatmul.mubr.bf16.gmra.mrb[0].mxu0 %v1016
      %v2590 = vpop.f32.mrb[0].mxu0
      %v2591 = vadd.f32 %v2430, %v2590
      %v2592 = vpop.f32.mrb[0].mxu0
      %v2593 = vpop.f32.mrb[0].mxu0
      %v2594 = vadd.f32 %v2433, %v2593
      %v2595 = vpop.f32.mrb[0].mxu0
      %2596 = vmatprep.mubr.bf16.mxu0 0
      %2597 = vmatmul.mubr.bf16.gmra.mrb[0].mxu0 %v1098
      %v2598 = vpop.f32.mrb[0].mxu0
      %v2599 = vadd.f32 %v2438, %v2598
      %v2600 = vpop.f32.mrb[0].mxu0
      %v2601 = vpop.f32.mrb[0].mxu0
      %v2602 = vadd.f32 %v2441, %v2601
      %v2603 = vpop.f32.mrb[0].mxu0
      %2604 = vmatprep.mubr.bf16.mxu0 0
      %2605 = vmatmul.mubr.bf16.gmra.mrb[0].mxu0 %v2097
      %v2606 = vpop.f32.mrb[0].mxu0
      %v2607 = vadd.f32 %v2446, %v2606
      %v2608 = vpop.f32.mrb[0].mxu0
      %v2609 = vpop.f32.mrb[0].mxu0
      %v2610 = vadd.f32 %v2449, %v2609
      %v2611 = vpop.f32.mrb[0].mxu0
      %2612 = vdwg.mxu0
      %v2613 = vadd.f32 %v1954, %v2487
      %v2614 = vadd.f32 %v1957, %v2490
      %v2615 = vadd.f32 %v1962, %v2495
      %v2616 = vadd.f32 %v1965, %v2498
      %v2617 = vadd.f32 %v1970, %v2503
      %v2618 = vadd.f32 %v1973, %v2506
      %v2619 = vadd.f32 %v1978, %v2511
      %v2620 = vadd.f32 %v1981, %v2514
      %v2621 = vadd.f32 %v1986, %v2519
      %v2622 = vadd.f32 %v1989, %v2522
      %v2623 = vadd.f32 %v1994, %v2527
      %v2624 = vadd.f32 %v1997, %v2530
      %v2625 = vadd.f32 %v2002, %v2535
      %v2626 = vadd.f32 %v2005, %v2538
      %v2627 = vadd.f32 %v2010, %v2543
      %v2628 = vadd.f32 %v2013, %v2546
      %v2629 = vadd.f32 %v2018, %v2551
      %v2630 = vadd.f32 %v2021, %v2554
      %v2631 = vadd.f32 %v2026, %v2559
      %v2632 = vadd.f32 %v2029, %v2562
      %v2633 = vadd.f32 %v2034, %v2567
      %v2634 = vadd.f32 %v2037, %v2570
      %v2635 = vadd.f32 %v2042, %v2575
      %v2636 = vadd.f32 %v2045, %v2578
      %v2637 = vadd.f32 %v2050, %v2583
      %v2638 = vadd.f32 %v2053, %v2586
      %v2639 = vadd.f32 %v2058, %v2591
      %v2640 = vadd.f32 %v2061, %v2594
      %v2641 = vadd.f32 %v2066, %v2599
      %v2642 = vadd.f32 %v2069, %v2602
      %v2643 = vadd.f32 %v2074, %v2607
      %v2644 = vadd.f32 %v2077, %v2610
      %v2645 = vld [vmem:[%s4] sm:$0x1]
      %v2647 = vlaneseq
      %v2648 = vshrl.u32 %v2647, 7
      %v2649 = vsub.s32 0, %v2648
      %v2650 = vrot.slane %v2645, %v2649
      %v2652 = vadd.f32 %v2613, %v2650
      %v2653 = vadd.f32 %v2614, %v2650
      %v2654 = vadd.f32 %v2615, %v2650
      %v2655 = vadd.f32 %v2616, %v2650
      %v2656 = vadd.f32 %v2617, %v2650
      %v2657 = vadd.f32 %v2618, %v2650
      %v2658 = vadd.f32 %v2619, %v2650
      %v2659 = vadd.f32 %v2620, %v2650
      %v2660 = vadd.f32 %v2621, %v2650
      %v2661 = vadd.f32 %v2622, %v2650
      %v2662 = vadd.f32 %v2623, %v2650
      %v2663 = vadd.f32 %v2624, %v2650
      %v2664 = vadd.f32 %v2625, %v2650
      %v2665 = vadd.f32 %v2626, %v2650
      %v2666 = vadd.f32 %v2627, %v2650
      %v2667 = vadd.f32 %v2628, %v2650
      %v2668 = vadd.f32 %v2629, %v2650
      %v2669 = vadd.f32 %v2630, %v2650
      %v2670 = vadd.f32 %v2631, %v2650
      %v2671 = vadd.f32 %v2632, %v2650
      %v2672 = vadd.f32 %v2633, %v2650
      %v2673 = vadd.f32 %v2634, %v2650
      %v2674 = vadd.f32 %v2635, %v2650
      %v2675 = vadd.f32 %v2636, %v2650
      %v2676 = vadd.f32 %v2637, %v2650
      %v2677 = vadd.f32 %v2638, %v2650
      %v2678 = vadd.f32 %v2639, %v2650
      %v2679 = vadd.f32 %v2640, %v2650
      %v2680 = vadd.f32 %v2641, %v2650
      %v2681 = vadd.f32 %v2642, %v2650
      %v2682 = vadd.f32 %v2643, %v2650
      %v2683 = vadd.f32 %v2644, %v2650
      %v2684 = vxor.u32 %v2652, 2147483648
      %v2685 = vxor.u32 %v2653, 2147483648
      %v2686 = vxor.u32 %v2654, 2147483648
      %v2687 = vxor.u32 %v2655, 2147483648
      %v2688 = vxor.u32 %v2656, 2147483648
      %v2689 = vxor.u32 %v2657, 2147483648
      %v2690 = vxor.u32 %v2658, 2147483648
      %v2691 = vxor.u32 %v2659, 2147483648
      %v2692 = vxor.u32 %v2660, 2147483648
      %v2693 = vxor.u32 %v2661, 2147483648
      %v2694 = vxor.u32 %v2662, 2147483648
      %v2695 = vxor.u32 %v2663, 2147483648
      %v2696 = vxor.u32 %v2664, 2147483648
      %v2697 = vxor.u32 %v2665, 2147483648
      %v2698 = vxor.u32 %v2666, 2147483648
      %v2699 = vxor.u32 %v2667, 2147483648
      %v2700 = vxor.u32 %v2668, 2147483648
      %v2701 = vxor.u32 %v2669, 2147483648
      %v2702 = vxor.u32 %v2670, 2147483648
      %v2703 = vxor.u32 %v2671, 2147483648
      %v2704 = vxor.u32 %v2672, 2147483648
      %v2705 = vxor.u32 %v2673, 2147483648
      %v2706 = vxor.u32 %v2674, 2147483648
      %v2707 = vxor.u32 %v2675, 2147483648
      %v2708 = vxor.u32 %v2676, 2147483648
      %v2709 = vxor.u32 %v2677, 2147483648
      %v2710 = vxor.u32 %v2678, 2147483648
      %v2711 = vxor.u32 %v2679, 2147483648
      %v2712 = vxor.u32 %v2680, 2147483648
      %v2713 = vxor.u32 %v2681, 2147483648
      %v2714 = vxor.u32 %v2682, 2147483648
      %v2715 = vxor.u32 %v2683, 2147483648
      %v2716 = vmul.f32 %v2684, 1.442695
      %v2717 = vpow.pop %v2716
      %v2718 = vmul.f32 %v2685, 1.442695
      %v2719 = vpow.pop %v2718
      %v2720 = vmul.f32 %v2686, 1.442695
      %v2721 = vpow.pop %v2720
      %v2722 = vmul.f32 %v2687, 1.442695
      %v2723 = vpow.pop %v2722
      %v2724 = vmul.f32 %v2688, 1.442695
      %v2725 = vpow.pop %v2724
      %v2726 = vmul.f32 %v2689, 1.442695
      %v2727 = vpow.pop %v2726
      %v2728 = vmul.f32 %v2690, 1.442695
      %v2729 = vpow.pop %v2728
      %v2730 = vmul.f32 %v2691, 1.442695
      %v2731 = vpow.pop %v2730
      %v2732 = vmul.f32 %v2692, 1.442695
      %v2733 = vpow.pop %v2732
      %v2734 = vmul.f32 %v2693, 1.442695
      %v2735 = vpow.pop %v2734
      %v2736 = vmul.f32 %v2694, 1.442695
      %v2737 = vpow.pop %v2736
      %v2738 = vmul.f32 %v2695, 1.442695
      %v2739 = vpow.pop %v2738
      %v2740 = vmul.f32 %v2696, 1.442695
      %v2741 = vpow.pop %v2740
      %v2742 = vmul.f32 %v2697, 1.442695
      %v2743 = vpow.pop %v2742
      %v2744 = vmul.f32 %v2698, 1.442695
      %v2745 = vpow.pop %v2744
      %v2746 = vmul.f32 %v2699, 1.442695
      %v2747 = vpow.pop %v2746
      %v2748 = vmul.f32 %v2700, 1.442695
      %v2749 = vpow.pop %v2748
      %v2750 = vmul.f32 %v2701, 1.442695
      %v2751 = vpow.pop %v2750
      %v2752 = vmul.f32 %v2702, 1.442695
      %v2753 = vpow.pop %v2752
      %v2754 = vmul.f32 %v2703, 1.442695
      %v2755 = vpow.pop %v2754
      %v2756 = vmul.f32 %v2704, 1.442695
      %v2757 = vpow.pop %v2756
      %v2758 = vmul.f32 %v2705, 1.442695
      %v2759 = vpow.pop %v2758
      %v2760 = vmul.f32 %v2706, 1.442695
      %v2761 = vpow.pop %v2760
      %v2762 = vmul.f32 %v2707, 1.442695
      %v2763 = vpow.pop %v2762
      %v2764 = vmul.f32 %v2708, 1.442695
      %v2765 = vpow.pop %v2764
      %v2766 = vmul.f32 %v2709, 1.442695
      %v2767 = vpow.pop %v2766
      %v2768 = vmul.f32 %v2710, 1.442695
      %v2769 = vpow.pop %v2768
      %v2770 = vmul.f32 %v2711, 1.442695
      %v2771 = vpow.pop %v2770
      %v2772 = vmul.f32 %v2712, 1.442695
      %v2773 = vpow.pop %v2772
      %v2774 = vmul.f32 %v2713, 1.442695
      %v2775 = vpow.pop %v2774
      %v2776 = vmul.f32 %v2714, 1.442695
      %v2777 = vpow.pop %v2776
      %v2778 = vmul.f32 %v2715, 1.442695
      %v2779 = vpow.pop %v2778
      %v2780 = vadd.f32 %v2717, 1.0
      %v2781 = vadd.f32 %v2719, 1.0
      %v2782 = vadd.f32 %v2721, 1.0
      %v2783 = vadd.f32 %v2723, 1.0
      %v2784 = vadd.f32 %v2725, 1.0
      %v2785 = vadd.f32 %v2727, 1.0
      %v2786 = vadd.f32 %v2729, 1.0
      %v2787 = vadd.f32 %v2731, 1.0
      %v2788 = vadd.f32 %v2733, 1.0
      %v2789 = vadd.f32 %v2735, 1.0
      %v2790 = vadd.f32 %v2737, 1.0
      %v2791 = vadd.f32 %v2739, 1.0
      %v2792 = vadd.f32 %v2741, 1.0
      %v2793 = vadd.f32 %v2743, 1.0
      %v2794 = vadd.f32 %v2745, 1.0
      %v2795 = vadd.f32 %v2747, 1.0
      %v2796 = vadd.f32 %v2749, 1.0
      %v2797 = vadd.f32 %v2751, 1.0
      %v2798 = vadd.f32 %v2753, 1.0
      %v2799 = vadd.f32 %v2755, 1.0
      %v2800 = vadd.f32 %v2757, 1.0
      %v2801 = vadd.f32 %v2759, 1.0
      %v2802 = vadd.f32 %v2761, 1.0
      %v2803 = vadd.f32 %v2763, 1.0
      %v2804 = vadd.f32 %v2765, 1.0
      %v2805 = vadd.f32 %v2767, 1.0
      %v2806 = vadd.f32 %v2769, 1.0
      %v2807 = vadd.f32 %v2771, 1.0
      %v2808 = vadd.f32 %v2773, 1.0
      %v2809 = vadd.f32 %v2775, 1.0
      %v2810 = vadd.f32 %v2777, 1.0
      %v2811 = vadd.f32 %v2779, 1.0
      %v2812 = vrcp.pop %v2780
      %v2813 = vmul.f32 1.0, %v2812
      %v2814 = vrcp.pop %v2781
      %v2815 = vmul.f32 1.0, %v2814
      %v2816 = vrcp.pop %v2782
      %v2817 = vmul.f32 1.0, %v2816
      %v2818 = vrcp.pop %v2783
      %v2819 = vmul.f32 1.0, %v2818
      %v2820 = vrcp.pop %v2784
      %v2821 = vmul.f32 1.0, %v2820
      %v2822 = vrcp.pop %v2785
      %v2823 = vmul.f32 1.0, %v2822
      %v2824 = vrcp.pop %v2786
      %v2825 = vmul.f32 1.0, %v2824
      %v2826 = vrcp.pop %v2787
      %v2827 = vmul.f32 1.0, %v2826
      %v2828 = vrcp.pop %v2788
      %v2829 = vmul.f32 1.0, %v2828
      %v2830 = vrcp.pop %v2789
      %v2831 = vmul.f32 1.0, %v2830
      %v2832 = vrcp.pop %v2790
      %v2833 = vmul.f32 1.0, %v2832
      %v2834 = vrcp.pop %v2791
      %v2835 = vmul.f32 1.0, %v2834
      %v2836 = vrcp.pop %v2792
      %v2837 = vmul.f32 1.0, %v2836
      %v2838 = vrcp.pop %v2793
      %v2839 = vmul.f32 1.0, %v2838
      %v2840 = vrcp.pop %v2794
      %v2841 = vmul.f32 1.0, %v2840
      %v2842 = vrcp.pop %v2795
      %v2843 = vmul.f32 1.0, %v2842
      %v2844 = vrcp.pop %v2796
      %v2845 = vmul.f32 1.0, %v2844
      %v2846 = vrcp.pop %v2797
      %v2847 = vmul.f32 1.0, %v2846
      %v2848 = vrcp.pop %v2798
      %v2849 = vmul.f32 1.0, %v2848
      %v2850 = vrcp.pop %v2799
      %v2851 = vmul.f32 1.0, %v2850
      %v2852 = vrcp.pop %v2800
      %v2853 = vmul.f32 1.0, %v2852
      %v2854 = vrcp.pop %v2801
      %v2855 = vmul.f32 1.0, %v2854
      %v2856 = vrcp.pop %v2802
      %v2857 = vmul.f32 1.0, %v2856
      %v2858 = vrcp.pop %v2803
      %v2859 = vmul.f32 1.0, %v2858
      %v2860 = vrcp.pop %v2804
      %v2861 = vmul.f32 1.0, %v2860
      %v2862 = vrcp.pop %v2805
      %v2863 = vmul.f32 1.0, %v2862
      %v2864 = vrcp.pop %v2806
      %v2865 = vmul.f32 1.0, %v2864
      %v2866 = vrcp.pop %v2807
      %v2867 = vmul.f32 1.0, %v2866
      %v2868 = vrcp.pop %v2808
      %v2869 = vmul.f32 1.0, %v2868
      %v2870 = vrcp.pop %v2809
      %v2871 = vmul.f32 1.0, %v2870
      %v2872 = vrcp.pop %v2810
      %v2873 = vmul.f32 1.0, %v2872
      %v2874 = vrcp.pop %v2811
      %v2875 = vmul.f32 1.0, %v2874
      %v2876 = vmul.f32 %v2652, %v2813
      %v2877 = vmul.f32 %v2653, %v2815
      %v2878 = vmul.f32 %v2654, %v2817
      %v2879 = vmul.f32 %v2655, %v2819
      %v2880 = vmul.f32 %v2656, %v2821
      %v2881 = vmul.f32 %v2657, %v2823
      %v2882 = vmul.f32 %v2658, %v2825
      %v2883 = vmul.f32 %v2659, %v2827
      %v2884 = vmul.f32 %v2660, %v2829
      %v2885 = vmul.f32 %v2661, %v2831
      %v2886 = vmul.f32 %v2662, %v2833
      %v2887 = vmul.f32 %v2663, %v2835
      %v2888 = vmul.f32 %v2664, %v2837
      %v2889 = vmul.f32 %v2665, %v2839
      %v2890 = vmul.f32 %v2666, %v2841
      %v2891 = vmul.f32 %v2667, %v2843
      %v2892 = vmul.f32 %v2668, %v2845
      %v2893 = vmul.f32 %v2669, %v2847
      %v2894 = vmul.f32 %v2670, %v2849
      %v2895 = vmul.f32 %v2671, %v2851
      %v2896 = vmul.f32 %v2672, %v2853
      %v2897 = vmul.f32 %v2673, %v2855
      %v2898 = vmul.f32 %v2674, %v2857
      %v2899 = vmul.f32 %v2675, %v2859
      %v2900 = vmul.f32 %v2676, %v2861
      %v2901 = vmul.f32 %v2677, %v2863
      %v2902 = vmul.f32 %v2678, %v2865
      %v2903 = vmul.f32 %v2679, %v2867
      %v2904 = vmul.f32 %v2680, %v2869
      %v2905 = vmul.f32 %v2681, %v2871
      %v2906 = vmul.f32 %v2682, %v2873
      %v2907 = vmul.f32 %v2683, %v2875
      %v2908 = vpack.c.bf16 %v2877, %v2876
      %v2909 = vpack.c.bf16 %v2879, %v2878
      %v2910 = vpack.c.bf16 %v2881, %v2880
      %v2911 = vpack.c.bf16 %v2883, %v2882
      %v2912 = vpack.c.bf16 %v2885, %v2884
      %v2913 = vpack.c.bf16 %v2887, %v2886
      %v2914 = vpack.c.bf16 %v2889, %v2888
      %v2915 = vpack.c.bf16 %v2891, %v2890
      %v2916 = vpack.c.bf16 %v2893, %v2892
      %v2917 = vpack.c.bf16 %v2895, %v2894
      %v2918 = vpack.c.bf16 %v2897, %v2896
      %v2919 = vpack.c.bf16 %v2899, %v2898
      %v2920 = vpack.c.bf16 %v2901, %v2900
      %v2921 = vpack.c.bf16 %v2903, %v2902
      %v2922 = vpack.c.bf16 %v2905, %v2904
      %v2923 = vpack.c.bf16 %v2907, %v2906
      %v2940 = vunpack.c.l.b16 %v2908
      %v2941 = vunpack.c.h.b16 %v2908
      %v2942 = vunpack.c.l.b16 %v2909
      %v2943 = vunpack.c.h.b16 %v2909
      %v2944 = vunpack.c.l.b16 %v2910
      %v2945 = vunpack.c.h.b16 %v2910
      %v2946 = vunpack.c.l.b16 %v2911
      %v2947 = vunpack.c.h.b16 %v2911
      %v2948 = vunpack.c.l.b16 %v2912
      %v2949 = vunpack.c.h.b16 %v2912
      %v2950 = vunpack.c.l.b16 %v2913
      %v2951 = vunpack.c.h.b16 %v2913
      %v2952 = vunpack.c.l.b16 %v2914
      %v2953 = vunpack.c.h.b16 %v2914
      %v2954 = vunpack.c.l.b16 %v2915
      %v2955 = vunpack.c.h.b16 %v2915
      %v2956 = vunpack.c.l.b16 %v2916
      %v2957 = vunpack.c.h.b16 %v2916
      %v2958 = vunpack.c.l.b16 %v2917
      %v2959 = vunpack.c.h.b16 %v2917
      %v2960 = vunpack.c.l.b16 %v2918
      %v2961 = vunpack.c.h.b16 %v2918
      %v2962 = vunpack.c.l.b16 %v2919
      %v2963 = vunpack.c.h.b16 %v2919
      %v2964 = vunpack.c.l.b16 %v2920
      %v2965 = vunpack.c.h.b16 %v2920
      %v2966 = vunpack.c.l.b16 %v2921
      %v2967 = vunpack.c.h.b16 %v2921
      %v2968 = vunpack.c.l.b16 %v2922
      %v2969 = vunpack.c.h.b16 %v2922
      %v2970 = vunpack.c.l.b16 %v2923
      %v2971 = vunpack.c.h.b16 %v2923
      %v2972 = vpack.c.b16 %v2940, %v2940
      %v2973 = vpack.c.b16 %v2941, %v2941
      %v2974 = vpack.c.b16 %v2942, %v2942
      %v2975 = vpack.c.b16 %v2943, %v2943
      %v2976 = vpack.c.b16 %v2944, %v2944
      %v2977 = vpack.c.b16 %v2945, %v2945
      %v2978 = vpack.c.b16 %v2946, %v2946
      %v2979 = vpack.c.b16 %v2947, %v2947
      %v2980 = vpack.c.b16 %v2948, %v2948
      %v2981 = vpack.c.b16 %v2949, %v2949
      %v2982 = vpack.c.b16 %v2950, %v2950
      %v2983 = vpack.c.b16 %v2951, %v2951
      %v2984 = vpack.c.b16 %v2952, %v2952
      %v2985 = vpack.c.b16 %v2953, %v2953
      %v2986 = vpack.c.b16 %v2954, %v2954
      %v2987 = vpack.c.b16 %v2955, %v2955
      %v2988 = vpack.c.b16 %v2956, %v2956
      %v2989 = vpack.c.b16 %v2957, %v2957
      %v2990 = vpack.c.b16 %v2958, %v2958
      %v2991 = vpack.c.b16 %v2959, %v2959
      %v2992 = vpack.c.b16 %v2960, %v2960
      %v2993 = vpack.c.b16 %v2961, %v2961
      %v2994 = vpack.c.b16 %v2962, %v2962
      %v2995 = vpack.c.b16 %v2963, %v2963
      %v2996 = vpack.c.b16 %v2964, %v2964
      %v2997 = vpack.c.b16 %v2965, %v2965
      %v2998 = vpack.c.b16 %v2966, %v2966
      %v2999 = vpack.c.b16 %v2967, %v2967
      %v3000 = vpack.c.b16 %v2968, %v2968
      %v3001 = vpack.c.b16 %v2969, %v2969
      %v3002 = vpack.c.b16 %v2970, %v2970
      %v3003 = vpack.c.b16 %v2971, %v2971
      %3036 = vst [vmem:[%s389] sm:$0xf] %v2972
      %3037 = vst [vmem:[%s389 + $0x4] sm:$0xf] %v2973
      %3038 = vst [vmem:[%s389 + $0x8] sm:$0xf] %v2974
      %3039 = vst [vmem:[%s389 + $0xc] sm:$0xf] %v2975
      %3040 = vst [vmem:[%s389 + $0x10] sm:$0xf] %v2976
      %3041 = vst [vmem:[%s389 + $0x14] sm:$0xf] %v2977
      %3042 = vst [vmem:[%s389 + $0x18] sm:$0xf] %v2978
      %3043 = vst [vmem:[%s389 + $0x1c] sm:$0xf] %v2979
      %3044 = vst [vmem:[%s389 + $0x20] sm:$0xf] %v2980
      %3045 = vst [vmem:[%s389 + $0x24] sm:$0xf] %v2981
      %3046 = vst [vmem:[%s389 + $0x28] sm:$0xf] %v2982
      %3047 = vst [vmem:[%s389 + $0x2c] sm:$0xf] %v2983
      %3048 = vst [vmem:[%s389 + $0x30] sm:$0xf] %v2984
      %3049 = vst [vmem:[%s389 + $0x34] sm:$0xf] %v2985
      %3050 = vst [vmem:[%s389 + $0x38] sm:$0xf] %v2986
      %3051 = vst [vmem:[%s389 + $0x3c] sm:$0xf] %v2987
      %3052 = vst [vmem:[%s389 + $0x40] sm:$0xf] %v2988
      %3053 = vst [vmem:[%s389 + $0x44] sm:$0xf] %v2989
      %3054 = vst [vmem:[%s389 + $0x48] sm:$0xf] %v2990
      %3055 = vst [vmem:[%s389 + $0x4c] sm:$0xf] %v2991
      %3056 = vst [vmem:[%s389 + $0x50] sm:$0xf] %v2992
      %3057 = vst [vmem:[%s389 + $0x54] sm:$0xf] %v2993
      %3058 = vst [vmem:[%s389 + $0x58] sm:$0xf] %v2994
      %3059 = vst [vmem:[%s389 + $0x5c] sm:$0xf] %v2995
      %3060 = vst [vmem:[%s389 + $0x60] sm:$0xf] %v2996
      %3061 = vst [vmem:[%s389 + $0x64] sm:$0xf] %v2997
      %3062 = vst [vmem:[%s389 + $0x68] sm:$0xf] %v2998
      %3063 = vst [vmem:[%s389 + $0x6c] sm:$0xf] %v2999
      %3064 = vst [vmem:[%s389 + $0x70] sm:$0xf] %v3000
      %3065 = vst [vmem:[%s389 + $0x74] sm:$0xf] %v3001
      %3066 = vst [vmem:[%s389 + $0x78] sm:$0xf] %v3002
      %3067 = vst [vmem:[%s389 + $0x7c] sm:$0xf] %v3003
      %s3068 = smul.u32 32, %s21
      %p3069 = scmp.lt.s32.totalorder %s20, 1
      %s3070 = scalar_select %p3069, %s20, 1
      %p3071 = scmp.lt.s32.totalorder %s3068, 31
      %s3072 = scalar_select %p3071, %s3068, 31
      %s3073 = smul.addr %s3070, 32
      %s3074 = sadd.s32 %s3072, %s3073
      %s3075 = smul.addr %s3074, 4
      %s3076 = scalar_lea.vmem %s5, %s3075
      // Predicated region
      $region41: #{elan_forward.4} parent=39 // pred_check
        %p3077 = pneg %p190
      $region42: #{elan_forward.4} parent=39 // pred_check_branch
        %3079 = sbr.rel (%p3077) target = $region44
      $region43: #{elan_forward.4} parent=39 // pred_region
        %s3080 = smul.u32 32, %s21
      $region44: #{elan_forward.4} parent=39 // pred_fallthru
        _
    $region40: #{elan_forward.4} parent=5 // pred_fallthru
      _
    %p3081 = scmp.le.s32.totalorder 2, %s11
    // Predicated region
    $region45: #{elan_forward.4} parent=5 // pred_check
      %p3082 = pneg %p3081
    $region46: #{elan_forward.4} parent=5 // pred_check_branch
      %3084 = sbr.rel (%p3082) target = $region48
    $region47: #{elan_forward.4} parent=5 // pred_region
      %s3085 = ssub.s32 %s11, 2
      // Predicated region
      $region49: #{elan_forward.4} parent=47 // pred_check
        %p3086 = pneg %p196
      $region50: #{elan_forward.4} parent=47 // pred_check_branch
        %3088 = sbr.rel (%p3086) target = $region52
      $region51: #{elan_forward.4} parent=47 // pred_region
        %s3089 = smul.u32 32, %s23
        %p3090 = scmp.lt.s32.totalorder %s22, 1
        %s3091 = scalar_select %p3090, %s22, 1
        %p3092 = scmp.lt.s32.totalorder %s3089, 31
        %s3093 = scalar_select %p3092, %s3089, 31
        %s3094 = smul.addr %s3091, 32
        %s3095 = sadd.s32 %s3093, %s3094
        %s3096 = smul.addr %s3095, 4
        %s3097 = scalar_lea.vmem %s5, %s3096
      $region52: #{elan_forward.4} parent=47 // pred_fallthru
        _
    $region48: #{elan_forward.4} parent=5 // pred_fallthru
      _
  $region6: #{elan_forward.4} parent=0 // loop_footer
    %s15 = sadd.s32 1, %s11
  $region7: #{elan_forward.4} parent=0 // loop_footer_branch
    %10 = sbr.rel target = $region3
  $region8: #{elan_forward.4} parent=0 // loop_exit
    _

</llo_original>
